<compile_context>
chip_gen: v6e
topology: v6e:2x2x1
jax: 0.10.0
libtpu: 0.0.40
codegen_flags: <defaults>
</compile_context>

<pallas_src>
import functools

import jax
import jax.numpy as jnp
from jax.experimental import pallas as pl
from jax.experimental.pallas import tpu as pltpu

# ----- model sizes (small, synthetic) -----
B = 2        # batch
TX = 8       # encoder (source) sequence length
TY = 8       # decoder (target) sequence length
E = 16       # embedding size
HE = 16      # encoder hidden size per direction (context is 2*HE)
HD = 32      # decoder hidden size
V_SRC = 24   # source vocab
V_TGT = 32   # target vocab


# ---------------------------------------------------------------------------
# Fused Pallas kernel (single invocation, no grid, everything in VMEM)
# ---------------------------------------------------------------------------
def _seq2seq_fused_kernel(
    xid_ref, yid_ref, mx_ref, my_ref, smask_ref,
    enc_gitab_ref, enc_bih_ref, enc_whh_ref, enc_bhh_ref,
    fc_w_ref, fc_b_ref,
    dec_gitab_ref, dec_bih_ref, dec_whh_ref, dec_bhh_ref,
    win_ref, wout_ref, bo_ref, wv_ref, bv_ref,
    logp_ref, attn_ref,
    ctx_ref, dec_ref):
  """Fused Seq2Seq forward.

  xid_ref/yid_ref: [T*B, 1] int32 token ids, time-major flat (row = t*B + b)
  mx_ref/my_ref:   [T*B, 1]  validity masks (1.0 valid)
  smask_ref:       [Ty*B, Tx*B] score fill (0 valid, -1e6 in-batch pad, -1e9 cross)
  enc_gitab_ref:   [Vsrc, 6He] = emb_enc @ [W_ih_fwd | W_ih_bwd]
  dec_gitab_ref:   [Vtgt, 3Hd] = emb_dec @ W_ih_dec
  enc_whh_ref:     [2He, 6He] block-diagonal recurrent matrix (fwd|bwd).
  Outputs: logp_ref [Ty*B, Vtgt], attn_ref [Ty*B, Tx*B] (block-structured).
  """
  f32 = jnp.float32

  # ---- 1. embedding + input-gate projection fused: onehot(ids) @ (emb @ Wih) ----
  src_hot = (jax.lax.broadcasted_iota(jnp.int32, (TX * B, V_SRC), 1)
             == xid_ref[...]).astype(f32)                               # [Tx*B, Vsrc]
  gi_enc = (jnp.dot(src_hot, enc_gitab_ref[...], preferred_element_type=f32)
            + enc_bih_ref[...])                                         # [Tx*B, 6He]
  tgt_hot = (jax.lax.broadcasted_iota(jnp.int32, (TY * B, V_TGT), 1)
             == yid_ref[...]).astype(f32)                               # [Ty*B, Vtgt]
  gi_dec = (jnp.dot(tgt_hot, dec_gitab_ref[...], preferred_element_type=f32)
            + dec_bih_ref[...])                                         # [Ty*B, 3Hd]

  enc_whh = enc_whh_ref[...]
  enc_bhh = enc_bhh_ref[...]
  dec_whh = dec_whh_ref[...]
  dec_bhh = dec_bhh_ref[...]

  def gru_gates(gi, gh, h, H):
    r = jax.nn.sigmoid(gi[:, 0:H] + gh[:, 0:H])
    z = jax.nn.sigmoid(gi[:, H:2 * H] + gh[:, H:2 * H])
    n = jnp.tanh(gi[:, 2 * H:3 * H] + r * gh[:, 2 * H:3 * H])
    return (1.0 - z) * n + z * h

  # ---- 2. bidirectional encoder: fwd + bwd fused in one unrolled time loop ----
  h_cat = jnp.zeros((B, 2 * HE), f32)          # [h_fwd | h_bwd]
  for t in range(TX):                          # static unroll (Tx = 8)
    rt = TX - 1 - t                            # bwd direction walks reversed time
    gh = jnp.dot(h_cat, enc_whh, preferred_element_type=f32) + enc_bhh   # [B, 6He]
    gi_f = gi_enc[t * B:(t + 1) * B, 0:3 * HE]
    gi_b = gi_enc[rt * B:(rt + 1) * B, 3 * HE:6 * HE]
    h_f = h_cat[:, 0:HE]
    h_b = h_cat[:, HE:2 * HE]
    hf_new = gru_gates(gi_f, gh[:, 0:3 * HE], h_f, HE)
    hb_new = gru_gates(gi_b, gh[:, 3 * HE:6 * HE], h_b, HE)
    m_f = mx_ref[t * B:(t + 1) * B, :] > 0.0   # [B, 1]
    m_b = mx_ref[rt * B:(rt + 1) * B, :] > 0.0
    # outputs: zero past length (pack_padded semantics)
    ctx_ref[t * B:(t + 1) * B, 0:HE] = jnp.where(m_f, hf_new, 0.0)
    ctx_ref[rt * B:(rt + 1) * B, HE:2 * HE] = jnp.where(m_b, hb_new, 0.0)
    # hidden: frozen past length
    h_f = jnp.where(m_f, hf_new, h_f)
    h_b = jnp.where(m_b, hb_new, h_b)
    h_cat = jnp.concatenate([h_f, h_b], axis=-1)

  # ---- 3. bridge: hid = tanh([h_f, h_b] @ fc_w + fc_b) ----
  hid = jnp.tanh(jnp.dot(h_cat, fc_w_ref[...], preferred_element_type=f32)
                 + fc_b_ref[...])                                        # [B, Hd]

  # ---- 4. decoder GRU (unrolled time loop) ----
  h = hid
  for t in range(TY):
    gh = jnp.dot(h, dec_whh, preferred_element_type=f32) + dec_bhh       # [B, 3Hd]
    gi = gi_dec[t * B:(t + 1) * B, :]
    h_new = gru_gates(gi, gh, h, HD)
    m = my_ref[t * B:(t + 1) * B, :] > 0.0
    dec_ref[t * B:(t + 1) * B, :] = jnp.where(m, h_new, 0.0)
    h = jnp.where(m, h_new, h)

  # ---- 5. attention + output head on flattened [Ty*B, *] rows ----
  ctx = ctx_ref[...]          # [Tx*B, 2He]
  dec = dec_ref[...]          # [Ty*B, Hd]
  smask = smask_ref[...]      # [Ty*B, Tx*B]

  ctx_in = jnp.dot(ctx, win_ref[...], preferred_element_type=f32)        # [Tx*B, Hd]
  scores = jax.lax.dot_general(dec, ctx_in, (((1,), (1,)), ((), ())),
                               preferred_element_type=f32)               # [Ty*B, Tx*B]
  # single select: 0 in smask marks valid; otherwise the fill value (-1e6 / -1e9)
  scores = jnp.where(smask == 0.0, scores, smask)
  scores = scores - jnp.max(scores, axis=-1, keepdims=True)
  e = jnp.exp(scores)
  attn = e / jnp.sum(e, axis=-1, keepdims=True)                          # [Ty*B, Tx*B]

  attn_ctx = jnp.dot(attn, ctx, preferred_element_type=f32)              # [Ty*B, 2He]
  h_cat2 = jnp.concatenate([attn_ctx, dec], axis=-1)                     # [Ty*B, 2He+Hd]
  h_out = jnp.tanh(jnp.dot(h_cat2, wout_ref[...], preferred_element_type=f32)
                   + bo_ref[...])                                        # [Ty*B, Hd]

  logits = jnp.dot(h_out, wv_ref[...], preferred_element_type=f32) + bv_ref[...]
  m_log = jnp.max(logits, axis=-1, keepdims=True)
  lse = m_log + jnp.log(jnp.sum(jnp.exp(logits - m_log), axis=-1, keepdims=True))
  logp_ref[...] = logits - lse
  attn_ref[...] = attn


# ---------------------------------------------------------------------------
# Parameters
# ---------------------------------------------------------------------------
def init_params(key):
  ks = jax.random.split(key, 22)

  def u(k, shape, scale=0.1):
    return jax.random.uniform(k, shape, jnp.float32, -1.0, 1.0) * scale

  p = {}
  p["emb_enc"] = u(ks[0], (V_SRC, E))
  p["emb_dec"] = u(ks[1], (V_TGT, E))
  # encoder bidirectional GRU (PyTorch gate order r,z,n), weights stored transposed
  p["enc_wih_f"] = u(ks[2], (E, 3 * HE)); p["enc_whh_f"] = u(ks[3], (HE, 3 * HE))
  p["enc_bih_f"] = u(ks[4], (1, 3 * HE)); p["enc_bhh_f"] = u(ks[5], (1, 3 * HE))
  p["enc_wih_b"] = u(ks[6], (E, 3 * HE)); p["enc_whh_b"] = u(ks[7], (HE, 3 * HE))
  p["enc_bih_b"] = u(ks[8], (1, 3 * HE)); p["enc_bhh_b"] = u(ks[9], (1, 3 * HE))
  p["fc_w"] = u(ks[10], (2 * HE, HD)); p["fc_b"] = u(ks[11], (1, HD))
  # decoder GRU
  p["dec_wih"] = u(ks[12], (E, 3 * HD)); p["dec_whh"] = u(ks[13], (HD, 3 * HD))
  p["dec_bih"] = u(ks[14], (1, 3 * HD)); p["dec_bhh"] = u(ks[15], (1, 3 * HD))
  # attention: linear_in (2He->Hd, no bias); linear_out (2He+Hd->Hd) split in two
  p["attn_win"] = u(ks[16], (2 * HE, HD))
  p["attn_woc"] = u(ks[17], (2 * HE, HD))
  p["attn_wod"] = u(ks[18], (HD, HD))
  p["attn_bo"] = u(ks[19], (1, HD))
  # output vocab projection
  p["out_w"] = u(ks[20], (HD, V_TGT))
  p["out_b"] = u(ks[21], (1, V_TGT))
  return p


# ---------------------------------------------------------------------------
# Forward pass (one fused pallas_call + tiny XLA glue for masks / reshapes)
# ---------------------------------------------------------------------------
def seq2seq_forward(params, enc_input, enc_lengths, dec_input, dec_lengths):
  # token ids, time-major flat (row = t*B + b)
  xid = jnp.transpose(enc_input).reshape(TX * B, 1).astype(jnp.int32)
  yid = jnp.transpose(dec_input).reshape(TY * B, 1).astype(jnp.int32)

  # length masks, time-major flat [T*B, 1]
  mx = (jnp.arange(TX)[:, None] < enc_lengths[None, :]).astype(jnp.float32)
  my = (jnp.arange(TY)[:, None] < dec_lengths[None, :]).astype(jnp.float32)
  mx = mx.reshape(TX * B, 1)
  my = my.reshape(TY * B, 1)

  # attention score fill on the flattened [Ty*B, Tx*B] score matrix:
  #   0 = valid, -1e6 = same batch but padded query/key, -1e9 = cross-batch pair
  q_b = jnp.arange(TY * B) % B
  q_t = jnp.arange(TY * B) // B
  k_b = jnp.arange(TX * B) % B
  k_t = jnp.arange(TX * B) // B
  same = q_b[:, None] == k_b[None, :]
  valid = (same
           & (q_t[:, None] < dec_lengths[q_b][:, None])
           & (k_t[None, :] < enc_lengths[k_b][None, :]))
  smask = jnp.where(~same, jnp.float32(-1e9),
                    jnp.where(valid, jnp.float32(0.0), jnp.float32(-1e6)))

  # repacked weights (constant-folded under jit since params are closed over):
  #   * fused (embedding @ W_ih) gate tables -> in-kernel one-hot matmul gather
  #   * block-diagonal encoder recurrent matrix (fwd | bwd)
  #   * combined attention output projection (one K = 2He+Hd matmul)
  enc_wih_c = jnp.concatenate([params["enc_wih_f"], params["enc_wih_b"]], axis=1)
  enc_gitab = params["emb_enc"] @ enc_wih_c                    # [Vsrc, 6He]
  enc_bih_c = jnp.concatenate([params["enc_bih_f"], params["enc_bih_b"]], axis=1)
  enc_whh_c = jnp.zeros((2 * HE, 6 * HE), jnp.float32)
  enc_whh_c = enc_whh_c.at[:HE, :3 * HE].set(params["enc_whh_f"])
  enc_whh_c = enc_whh_c.at[HE:, 3 * HE:].set(params["enc_whh_b"])
  enc_bhh_c = jnp.concatenate([params["enc_bhh_f"], params["enc_bhh_b"]], axis=1)
  dec_gitab = params["emb_dec"] @ params["dec_wih"]            # [Vtgt, 3Hd]
  wout_c = jnp.concatenate([params["attn_woc"], params["attn_wod"]], axis=0)

  vmem = functools.partial(pl.BlockSpec, memory_space=pltpu.MemorySpace.VMEM)
  n_in = 20
  logp_flat, attn_full = pl.pallas_call(
      _seq2seq_fused_kernel,
      out_shape=(jax.ShapeDtypeStruct((TY * B, V_TGT), jnp.float32),
                 jax.ShapeDtypeStruct((TY * B, TX * B), jnp.float32)),
      in_specs=[vmem() for _ in range(n_in)],
      out_specs=(vmem(), vmem()),
      scratch_shapes=[
          pltpu.VMEM((TX * B, 2 * HE), jnp.float32),   # encoder context
          pltpu.VMEM((TY * B, HD), jnp.float32),       # decoder outputs
      ],
  )(xid, yid, mx, my, smask,
    enc_gitab, enc_bih_c, enc_whh_c, enc_bhh_c,
    params["fc_w"], params["fc_b"],
    dec_gitab, params["dec_bih"], params["dec_whh"], params["dec_bhh"],
    params["attn_win"], wout_c, params["attn_bo"],
    params["out_w"], params["out_b"])

  # un-flatten: rows are time-major (ty*B + b)
  logp = jnp.transpose(logp_flat.reshape(TY, B, V_TGT), (1, 0, 2))       # [B, Ty, V]
  attn4 = attn_full.reshape(TY, B, TX, B)
  attn = jnp.transpose(jnp.diagonal(attn4, axis1=1, axis2=3), (2, 0, 1))  # [B, Ty, Tx]
  return logp, attn


# ---------------------------------------------------------------------------
# Pure-JAX reference (for correctness check of the Pallas lowering)
# ---------------------------------------------------------------------------
def _time_mask(lengths, T):
  m = (jnp.arange(T)[:, None] < lengths[None, :]).astype(jnp.float32)
  return m[:, :, None]  # [T, B, 1]


def _gru_ref(x_tm, m_tm, h0, wih, whh, bih, bhh):
  H = h0.shape[-1]

  def step(h, inp):
    x_t, m_t = inp
    gi = x_t @ wih + bih
    gh = h @ whh + bhh
    r = jax.nn.sigmoid(gi[:, :H] + gh[:, :H])
    z = jax.nn.sigmoid(gi[:, H:2 * H] + gh[:, H:2 * H])
    n = jnp.tanh(gi[:, 2 * H:] + r * gh[:, 2 * H:])
    h_new = (1.0 - z) * n + z * h
    out = jnp.where(m_t > 0, h_new, 0.0)
    h = jnp.where(m_t > 0, h_new, h)
    return h, out

  hf, outs = jax.lax.scan(step, h0, (x_tm, m_tm))
  return outs, hf


def reference_forward(params, enc_input, enc_lengths, dec_input, dec_lengths):
  x_emb = jnp.take(params["emb_enc"], enc_input, axis=0)
  y_emb = jnp.take(params["emb_dec"], dec_input, axis=0)
  mx = _time_mask(enc_lengths, TX)
  my = _time_mask(dec_lengths, TY)
  x_tm = jnp.transpose(x_emb, (1, 0, 2))
  y_tm = jnp.transpose(y_emb, (1, 0, 2))
  h0e = jnp.zeros((B, HE), jnp.float32)

  out_f, hid_f = _gru_ref(x_tm, mx, h0e, params["enc_wih_f"], params["enc_whh_f"],
                          params["enc_bih_f"], params["enc_bhh_f"])
  out_b_rev, hid_b = _gru_ref(x_tm[::-1], mx[::-1], h0e, params["enc_wih_b"],
                              params["enc_whh_b"], params["enc_bih_b"],
                              params["enc_bhh_b"])
  out_b = out_b_rev[::-1]
  context = jnp.transpose(jnp.concatenate([out_f, out_b], axis=-1), (1, 0, 2))
  hid = jnp.tanh(jnp.concatenate([hid_f, hid_b], axis=-1) @ params["fc_w"]
                 + params["fc_b"])
  dec_out_tm, _ = _gru_ref(y_tm, my, hid, params["dec_wih"], params["dec_whh"],
                           params["dec_bih"], params["dec_bhh"])
  dec_out = jnp.transpose(dec_out_tm, (1, 0, 2))

  yv = jnp.arange(TY)[None, :] < dec_lengths[:, None]
  xv = jnp.arange(TX)[None, :] < enc_lengths[:, None]
  inv_mask = 1.0 - (yv[:, :, None] & xv[:, None, :]).astype(jnp.float32)

  ctx_in = context @ params["attn_win"]
  scores = jnp.einsum("bqd,bkd->bqk", dec_out, ctx_in)
  scores = jnp.where(inv_mask > 0, -1e6, scores)
  attn = jax.nn.softmax(scores, axis=-1)
  attn_ctx = jnp.einsum("bqk,bkd->bqd", attn, context)
  h = jnp.tanh(attn_ctx @ params["attn_woc"] + dec_out @ params["attn_wod"]
               + params["attn_bo"])
  logits = h @ params["out_w"] + params["out_b"]
  logp = jax.nn.log_softmax(logits, axis=-1)
  return logp, attn


# ---------------------------------------------------------------------------
if __name__ == "__main__":
  key = jax.random.PRNGKey(0)
  pkey, k1, k2 = jax.random.split(key, 3)
  params = init_params(pkey)

  enc_input = jax.random.randint(k1, (B, TX), 0, V_SRC, dtype=jnp.int32)
  dec_input = jax.random.randint(k2, (B, TY), 0, V_TGT, dtype=jnp.int32)
  enc_lengths = jnp.array([TX, TX - 2], dtype=jnp.int32)
  dec_lengths = jnp.array([TY, TY - 1], dtype=jnp.int32)

  fwd = jax.jit(functools.partial(seq2seq_forward, params))
  logp, attn = fwd(enc_input, enc_lengths, dec_input, dec_lengths)
  (logp, attn) = jax.block_until_ready((logp, attn))

  ref_logp, ref_attn = reference_forward(params, enc_input, enc_lengths,
                                         dec_input, dec_lengths)
  assert logp.shape == (B, TY, V_TGT) and attn.shape == (B, TY, TX)
  assert jnp.allclose(logp, ref_logp, atol=1e-4, rtol=1e-4)
  assert jnp.allclose(attn, ref_attn, atol=1e-4, rtol=1e-4)

  print("KERNEL_OK")
</pallas_src>

<mosaic_0001>
module attributes {stable_mosaic.version = 11 : i64} {
  func.func @_seq2seq_fused_kernel(%arg0: memref<16x1xi32, #tpu.memory_space<vmem>>, %arg1: memref<16x1xi32, #tpu.memory_space<vmem>>, %arg2: memref<16x1xf32, #tpu.memory_space<vmem>>, %arg3: memref<16x1xf32, #tpu.memory_space<vmem>>, %arg4: memref<16x16xf32, #tpu.memory_space<vmem>>, %arg5: memref<24x96xf32, #tpu.memory_space<vmem>>, %arg6: memref<1x96xf32, #tpu.memory_space<vmem>>, %arg7: memref<32x96xf32, #tpu.memory_space<vmem>>, %arg8: memref<1x96xf32, #tpu.memory_space<vmem>>, %arg9: memref<32x32xf32, #tpu.memory_space<vmem>>, %arg10: memref<1x32xf32, #tpu.memory_space<vmem>>, %arg11: memref<32x96xf32, #tpu.memory_space<vmem>>, %arg12: memref<1x96xf32, #tpu.memory_space<vmem>>, %arg13: memref<32x96xf32, #tpu.memory_space<vmem>>, %arg14: memref<1x96xf32, #tpu.memory_space<vmem>>, %arg15: memref<32x32xf32, #tpu.memory_space<vmem>>, %arg16: memref<64x32xf32, #tpu.memory_space<vmem>>, %arg17: memref<1x32xf32, #tpu.memory_space<vmem>>, %arg18: memref<32x32xf32, #tpu.memory_space<vmem>>, %arg19: memref<1x32xf32, #tpu.memory_space<vmem>>, %arg20: memref<16x32xf32, #tpu.memory_space<vmem>>, %arg21: memref<16x16xf32, #tpu.memory_space<vmem>>, %arg22: memref<16x32xf32, #tpu.memory_space<vmem>>, %arg23: memref<16x32xf32, #tpu.memory_space<vmem>>) attributes {dimension_semantics = [], scalar_prefetch = 0 : i64, scratch_operands = 2 : i64, tpu.core_type = #tpu.core_type<tc>} {
    %0 = tpu.iota {dimensions = array<i32: 1>} : vector<16x24xi32>
    %c0 = arith.constant 0 : index
    %c0_0 = arith.constant 0 : index
    %1 = vector.load %arg0[%c0, %c0_0] : memref<16x1xi32, #tpu.memory_space<vmem>>, vector<16x1xi32>
    %2 = vector.broadcast %1 : vector<16x1xi32> to vector<16x24xi32>
    %3 = arith.cmpi eq, %0, %2 : vector<16x24xi32>
    %4 = arith.extui %3 : vector<16x24xi1> to vector<16x24xi32>
    %5 = arith.sitofp %4 : vector<16x24xi32> to vector<16x24xf32>
    %c0_1 = arith.constant 0 : index
    %c0_2 = arith.constant 0 : index
    %6 = vector.load %arg5[%c0_1, %c0_2] : memref<24x96xf32, #tpu.memory_space<vmem>>, vector<24x96xf32>
    %cst = arith.constant dense<0.000000e+00> : vector<16x96xf32>
    %7 = tpu.matmul %5, %6, %cst {dimension_numbers = #tpu.dot_dimension_numbers<[1], [0], [0], [1], [0, 0, 1, 1], [], []>} : vector<16x24xf32>, vector<24x96xf32>, vector<16x96xf32> -> vector<16x96xf32>
    %c0_3 = arith.constant 0 : index
    %c0_4 = arith.constant 0 : index
    %8 = vector.load %arg6[%c0_3, %c0_4] : memref<1x96xf32, #tpu.memory_space<vmem>>, vector<1x96xf32>
    %9 = vector.broadcast %8 : vector<1x96xf32> to vector<16x96xf32>
    %10 = arith.addf %7, %9 : vector<16x96xf32>
    %11 = tpu.iota {dimensions = array<i32: 1>} : vector<16x32xi32>
    %c0_5 = arith.constant 0 : index
    %c0_6 = arith.constant 0 : index
    %12 = vector.load %arg1[%c0_5, %c0_6] : memref<16x1xi32, #tpu.memory_space<vmem>>, vector<16x1xi32>
    %13 = vector.broadcast %12 : vector<16x1xi32> to vector<16x32xi32>
    %14 = arith.cmpi eq, %11, %13 : vector<16x32xi32>
    %15 = arith.extui %14 : vector<16x32xi1> to vector<16x32xi32>
    %16 = arith.sitofp %15 : vector<16x32xi32> to vector<16x32xf32>
    %c0_7 = arith.constant 0 : index
    %c0_8 = arith.constant 0 : index
    %17 = vector.load %arg11[%c0_7, %c0_8] : memref<32x96xf32, #tpu.memory_space<vmem>>, vector<32x96xf32>
    %cst_9 = arith.constant dense<0.000000e+00> : vector<16x96xf32>
    %18 = tpu.matmul %16, %17, %cst_9 {dimension_numbers = #tpu.dot_dimension_numbers<[1], [0], [0], [1], [0, 0, 1, 1], [], []>} : vector<16x32xf32>, vector<32x96xf32>, vector<16x96xf32> -> vector<16x96xf32>
    %c0_10 = arith.constant 0 : index
    %c0_11 = arith.constant 0 : index
    %19 = vector.load %arg12[%c0_10, %c0_11] : memref<1x96xf32, #tpu.memory_space<vmem>>, vector<1x96xf32>
    %20 = vector.broadcast %19 : vector<1x96xf32> to vector<16x96xf32>
    %21 = arith.addf %18, %20 : vector<16x96xf32>
    %c0_12 = arith.constant 0 : index
    %c0_13 = arith.constant 0 : index
    %22 = vector.load %arg7[%c0_12, %c0_13] : memref<32x96xf32, #tpu.memory_space<vmem>>, vector<32x96xf32>
    %c0_14 = arith.constant 0 : index
    %c0_15 = arith.constant 0 : index
    %23 = vector.load %arg8[%c0_14, %c0_15] : memref<1x96xf32, #tpu.memory_space<vmem>>, vector<1x96xf32>
    %c0_16 = arith.constant 0 : index
    %c0_17 = arith.constant 0 : index
    %24 = vector.load %arg13[%c0_16, %c0_17] : memref<32x96xf32, #tpu.memory_space<vmem>>, vector<32x96xf32>
    %c0_18 = arith.constant 0 : index
    %c0_19 = arith.constant 0 : index
    %25 = vector.load %arg14[%c0_18, %c0_19] : memref<1x96xf32, #tpu.memory_space<vmem>>, vector<1x96xf32>
    %cst_20 = arith.constant 0.000000e+00 : f32
    %26 = vector.broadcast %cst_20 : f32 to vector<2x32xf32>
    %cst_21 = arith.constant dense<0.000000e+00> : vector<2x96xf32>
    %27 = tpu.matmul %26, %22, %cst_21 {dimension_numbers = #tpu.dot_dimension_numbers<[1], [0], [0], [1], [0, 0, 1, 1], [], []>} : vector<2x32xf32>, vector<32x96xf32>, vector<2x96xf32> -> vector<2x96xf32>
    %28 = vector.broadcast %23 : vector<1x96xf32> to vector<2x96xf32>
    %29 = arith.addf %27, %28 : vector<2x96xf32>
    %30 = vector.extract_strided_slice %10 {offsets = [0, 0], sizes = [2, 48], strides = [1, 1]} : vector<16x96xf32> to vector<2x48xf32>
    %31 = vector.extract_strided_slice %10 {offsets = [14, 48], sizes = [2, 48], strides = [1, 1]} : vector<16x96xf32> to vector<2x48xf32>
    %32 = vector.extract_strided_slice %26 {offsets = [0, 0], sizes = [2, 16], strides = [1, 1]} : vector<2x32xf32> to vector<2x16xf32>
    %33 = vector.extract_strided_slice %26 {offsets = [0, 16], sizes = [2, 16], strides = [1, 1]} : vector<2x32xf32> to vector<2x16xf32>
    %34 = vector.extract_strided_slice %29 {offsets = [0, 0], sizes = [2, 48], strides = [1, 1]} : vector<2x96xf32> to vector<2x48xf32>
    %35 = vector.extract_strided_slice %30 {offsets = [0, 0], sizes = [2, 16], strides = [1, 1]} : vector<2x48xf32> to vector<2x16xf32>
    %36 = vector.extract_strided_slice %34 {offsets = [0, 0], sizes = [2, 16], strides = [1, 1]} : vector<2x48xf32> to vector<2x16xf32>
    %37 = arith.addf %35, %36 : vector<2x16xf32>
    %38 = arith.negf %37 : vector<2x16xf32>
    %39 = math.exp %38 : vector<2x16xf32>
    %cst_22 = arith.constant 1.000000e+00 : f32
    %40 = vector.broadcast %cst_22 : f32 to vector<2x16xf32>
    %41 = arith.addf %40, %39 : vector<2x16xf32>
    %42 = arith.divf %40, %41 : vector<2x16xf32>
    %43 = vector.extract_strided_slice %30 {offsets = [0, 16], sizes = [2, 16], strides = [1, 1]} : vector<2x48xf32> to vector<2x16xf32>
    %44 = vector.extract_strided_slice %34 {offsets = [0, 16], sizes = [2, 16], strides = [1, 1]} : vector<2x48xf32> to vector<2x16xf32>
    %45 = arith.addf %43, %44 : vector<2x16xf32>
    %46 = arith.negf %45 : vector<2x16xf32>
    %47 = math.exp %46 : vector<2x16xf32>
    %cst_23 = arith.constant 1.000000e+00 : f32
    %48 = vector.broadcast %cst_23 : f32 to vector<2x16xf32>
    %49 = arith.addf %48, %47 : vector<2x16xf32>
    %50 = arith.divf %48, %49 : vector<2x16xf32>
    %51 = vector.extract_strided_slice %30 {offsets = [0, 32], sizes = [2, 16], strides = [1, 1]} : vector<2x48xf32> to vector<2x16xf32>
    %52 = vector.extract_strided_slice %34 {offsets = [0, 32], sizes = [2, 16], strides = [1, 1]} : vector<2x48xf32> to vector<2x16xf32>
    %53 = arith.mulf %42, %52 : vector<2x16xf32>
    %54 = arith.addf %51, %53 : vector<2x16xf32>
    %55 = math.tanh %54 : vector<2x16xf32>
    %cst_24 = arith.constant 1.000000e+00 : f32
    %56 = vector.broadcast %cst_24 : f32 to vector<2x16xf32>
    %57 = arith.subf %56, %50 : vector<2x16xf32>
    %58 = arith.mulf %57, %55 : vector<2x16xf32>
    %59 = arith.mulf %50, %32 : vector<2x16xf32>
    %60 = arith.addf %58, %59 : vector<2x16xf32>
    %61 = vector.extract_strided_slice %29 {offsets = [0, 48], sizes = [2, 48], strides = [1, 1]} : vector<2x96xf32> to vector<2x48xf32>
    %62 = vector.extract_strided_slice %31 {offsets = [0, 0], sizes = [2, 16], strides = [1, 1]} : vector<2x48xf32> to vector<2x16xf32>
    %63 = vector.extract_strided_slice %61 {offsets = [0, 0], sizes = [2, 16], strides = [1, 1]} : vector<2x48xf32> to vector<2x16xf32>
    %64 = arith.addf %62, %63 : vector<2x16xf32>
    %65 = arith.negf %64 : vector<2x16xf32>
    %66 = math.exp %65 : vector<2x16xf32>
    %cst_25 = arith.constant 1.000000e+00 : f32
    %67 = vector.broadcast %cst_25 : f32 to vector<2x16xf32>
    %68 = arith.addf %67, %66 : vector<2x16xf32>
    %69 = arith.divf %67, %68 : vector<2x16xf32>
    %70 = vector.extract_strided_slice %31 {offsets = [0, 16], sizes = [2, 16], strides = [1, 1]} : vector<2x48xf32> to vector<2x16xf32>
    %71 = vector.extract_strided_slice %61 {offsets = [0, 16], sizes = [2, 16], strides = [1, 1]} : vector<2x48xf32> to vector<2x16xf32>
    %72 = arith.addf %70, %71 : vector<2x16xf32>
    %73 = arith.negf %72 : vector<2x16xf32>
    %74 = math.exp %73 : vector<2x16xf32>
    %cst_26 = arith.constant 1.000000e+00 : f32
    %75 = vector.broadcast %cst_26 : f32 to vector<2x16xf32>
    %76 = arith.addf %75, %74 : vector<2x16xf32>
    %77 = arith.divf %75, %76 : vector<2x16xf32>
    %78 = vector.extract_strided_slice %31 {offsets = [0, 32], sizes = [2, 16], strides = [1, 1]} : vector<2x48xf32> to vector<2x16xf32>
    %79 = vector.extract_strided_slice %61 {offsets = [0, 32], sizes = [2, 16], strides = [1, 1]} : vector<2x48xf32> to vector<2x16xf32>
    %80 = arith.mulf %69, %79 : vector<2x16xf32>
    %81 = arith.addf %78, %80 : vector<2x16xf32>
    %82 = math.tanh %81 : vector<2x16xf32>
    %cst_27 = arith.constant 1.000000e+00 : f32
    %83 = vector.broadcast %cst_27 : f32 to vector<2x16xf32>
    %84 = arith.subf %83, %77 : vector<2x16xf32>
    %85 = arith.mulf %84, %82 : vector<2x16xf32>
    %86 = arith.mulf %77, %33 : vector<2x16xf32>
    %87 = arith.addf %85, %86 : vector<2x16xf32>
    %c0_28 = arith.constant 0 : index
    %c0_29 = arith.constant 0 : index
    %88 = vector.load %arg2[%c0_28, %c0_29] : memref<16x1xf32, #tpu.memory_space<vmem>>, vector<2x1xf32>
    %cst_30 = arith.constant 0.000000e+00 : f32
    %89 = vector.broadcast %cst_30 : f32 to vector<2x1xf32>
    %90 = arith.cmpf ogt, %88, %89 : vector<2x1xf32>
    %c14 = arith.constant 14 : index
    %c0_31 = arith.constant 0 : index
    %91 = vector.load %arg2[%c14, %c0_31] : memref<16x1xf32, #tpu.memory_space<vmem>>, vector<2x1xf32>
    %cst_32 = arith.constant 0.000000e+00 : f32
    %92 = vector.broadcast %cst_32 : f32 to vector<2x1xf32>
    %93 = arith.cmpf ogt, %91, %92 : vector<2x1xf32>
    %cst_33 = arith.constant 0.000000e+00 : f32
    %94 = vector.shape_cast %90 : vector<2x1xi1> to vector<2x1xi1>
    %95 = vector.broadcast %94 : vector<2x1xi1> to vector<2x16xi1>
    %96 = vector.broadcast %cst_33 : f32 to vector<2x16xf32>
    %97 = arith.select %95, %60, %96 : vector<2x16xi1>, vector<2x16xf32>
    %c0_34 = arith.constant 0 : index
    %c0_35 = arith.constant 0 : index
    %98 = vector.load %arg22[%c0_34, %c0_35] : memref<16x32xf32, #tpu.memory_space<vmem>>, vector<2x16xf32>
    tpu.vector_store %arg22[%c0_34, %c0_35], %97 {strides = array<i32>} : memref<16x32xf32, #tpu.memory_space<vmem>>, vector<2x16xf32>,
    %cst_36 = arith.constant 0.000000e+00 : f32
    %99 = vector.shape_cast %93 : vector<2x1xi1> to vector<2x1xi1>
    %100 = vector.broadcast %99 : vector<2x1xi1> to vector<2x16xi1>
    %101 = vector.broadcast %cst_36 : f32 to vector<2x16xf32>
    %102 = arith.select %100, %87, %101 : vector<2x16xi1>, vector<2x16xf32>
    %c14_37 = arith.constant 14 : index
    %c16 = arith.constant 16 : index
    %103 = vector.load %arg22[%c14_37, %c16] : memref<16x32xf32, #tpu.memory_space<vmem>>, vector<2x16xf32>
    tpu.vector_store %arg22[%c14_37, %c16], %102 {strides = array<i32>} : memref<16x32xf32, #tpu.memory_space<vmem>>, vector<2x16xf32>,
    %104 = vector.shape_cast %90 : vector<2x1xi1> to vector<2x1xi1>
    %105 = vector.broadcast %104 : vector<2x1xi1> to vector<2x16xi1>
    %106 = arith.select %105, %60, %32 : vector<2x16xi1>, vector<2x16xf32>
    %107 = vector.shape_cast %93 : vector<2x1xi1> to vector<2x1xi1>
    %108 = vector.broadcast %107 : vector<2x1xi1> to vector<2x16xi1>
    %109 = arith.select %108, %87, %33 : vector<2x16xi1>, vector<2x16xf32>
    %110 = tpu.concatenate %106, %109 in 1 : vector<2x16xf32>, vector<2x16xf32> -> vector<2x32xf32>
    %cst_38 = arith.constant dense<0.000000e+00> : vector<2x96xf32>
    %111 = tpu.matmul %110, %22, %cst_38 {dimension_numbers = #tpu.dot_dimension_numbers<[1], [0], [0], [1], [0, 0, 1, 1], [], []>} : vector<2x32xf32>, vector<32x96xf32>, vector<2x96xf32> -> vector<2x96xf32>
    %112 = vector.broadcast %23 : vector<1x96xf32> to vector<2x96xf32>
    %113 = arith.addf %111, %112 : vector<2x96xf32>
    %114 = vector.extract_strided_slice %10 {offsets = [2, 0], sizes = [2, 48], strides = [1, 1]} : vector<16x96xf32> to vector<2x48xf32>
    %115 = vector.extract_strided_slice %10 {offsets = [12, 48], sizes = [2, 48], strides = [1, 1]} : vector<16x96xf32> to vector<2x48xf32>
    %116 = vector.extract_strided_slice %110 {offsets = [0, 0], sizes = [2, 16], strides = [1, 1]} : vector<2x32xf32> to vector<2x16xf32>
    %117 = vector.extract_strided_slice %110 {offsets = [0, 16], sizes = [2, 16], strides = [1, 1]} : vector<2x32xf32> to vector<2x16xf32>
    %118 = vector.extract_strided_slice %113 {offsets = [0, 0], sizes = [2, 48], strides = [1, 1]} : vector<2x96xf32> to vector<2x48xf32>
    %119 = vector.extract_strided_slice %114 {offsets = [0, 0], sizes = [2, 16], strides = [1, 1]} : vector<2x48xf32> to vector<2x16xf32>
    %120 = vector.extract_strided_slice %118 {offsets = [0, 0], sizes = [2, 16], strides = [1, 1]} : vector<2x48xf32> to vector<2x16xf32>
    %121 = arith.addf %119, %120 : vector<2x16xf32>
    %122 = arith.negf %121 : vector<2x16xf32>
    %123 = math.exp %122 : vector<2x16xf32>
    %cst_39 = arith.constant 1.000000e+00 : f32
    %124 = vector.broadcast %cst_39 : f32 to vector<2x16xf32>
    %125 = arith.addf %124, %123 : vector<2x16xf32>
    %126 = arith.divf %124, %125 : vector<2x16xf32>
    %127 = vector.extract_strided_slice %114 {offsets = [0, 16], sizes = [2, 16], strides = [1, 1]} : vector<2x48xf32> to vector<2x16xf32>
    %128 = vector.extract_strided_slice %118 {offsets = [0, 16], sizes = [2, 16], strides = [1, 1]} : vector<2x48xf32> to vector<2x16xf32>
    %129 = arith.addf %127, %128 : vector<2x16xf32>
    %130 = arith.negf %129 : vector<2x16xf32>
    %131 = math.exp %130 : vector<2x16xf32>
    %cst_40 = arith.constant 1.000000e+00 : f32
    %132 = vector.broadcast %cst_40 : f32 to vector<2x16xf32>
    %133 = arith.addf %132, %131 : vector<2x16xf32>
    %134 = arith.divf %132, %133 : vector<2x16xf32>
    %135 = vector.extract_strided_slice %114 {offsets = [0, 32], sizes = [2, 16], strides = [1, 1]} : vector<2x48xf32> to vector<2x16xf32>
    %136 = vector.extract_strided_slice %118 {offsets = [0, 32], sizes = [2, 16], strides = [1, 1]} : vector<2x48xf32> to vector<2x16xf32>
    %137 = arith.mulf %126, %136 : vector<2x16xf32>
    %138 = arith.addf %135, %137 : vector<2x16xf32>
    %139 = math.tanh %138 : vector<2x16xf32>
    %cst_41 = arith.constant 1.000000e+00 : f32
    %140 = vector.broadcast %cst_41 : f32 to vector<2x16xf32>
    %141 = arith.subf %140, %134 : vector<2x16xf32>
    %142 = arith.mulf %141, %139 : vector<2x16xf32>
    %143 = arith.mulf %134, %116 : vector<2x16xf32>
    %144 = arith.addf %142, %143 : vector<2x16xf32>
    %145 = vector.extract_strided_slice %113 {offsets = [0, 48], sizes = [2, 48], strides = [1, 1]} : vector<2x96xf32> to vector<2x48xf32>
    %146 = vector.extract_strided_slice %115 {offsets = [0, 0], sizes = [2, 16], strides = [1, 1]} : vector<2x48xf32> to vector<2x16xf32>
    %147 = vector.extract_strided_slice %145 {offsets = [0, 0], sizes = [2, 16], strides = [1, 1]} : vector<2x48xf32> to vector<2x16xf32>
    %148 = arith.addf %146, %147 : vector<2x16xf32>
    %149 = arith.negf %148 : vector<2x16xf32>
    %150 = math.exp %149 : vector<2x16xf32>
    %cst_42 = arith.constant 1.000000e+00 : f32
    %151 = vector.broadcast %cst_42 : f32 to vector<2x16xf32>
    %152 = arith.addf %151, %150 : vector<2x16xf32>
    %153 = arith.divf %151, %152 : vector<2x16xf32>
    %154 = vector.extract_strided_slice %115 {offsets = [0, 16], sizes = [2, 16], strides = [1, 1]} : vector<2x48xf32> to vector<2x16xf32>
    %155 = vector.extract_strided_slice %145 {offsets = [0, 16], sizes = [2, 16], strides = [1, 1]} : vector<2x48xf32> to vector<2x16xf32>
    %156 = arith.addf %154, %155 : vector<2x16xf32>
    %157 = arith.negf %156 : vector<2x16xf32>
    %158 = math.exp %157 : vector<2x16xf32>
    %cst_43 = arith.constant 1.000000e+00 : f32
    %159 = vector.broadcast %cst_43 : f32 to vector<2x16xf32>
    %160 = arith.addf %159, %158 : vector<2x16xf32>
    %161 = arith.divf %159, %160 : vector<2x16xf32>
    %162 = vector.extract_strided_slice %115 {offsets = [0, 32], sizes = [2, 16], strides = [1, 1]} : vector<2x48xf32> to vector<2x16xf32>
    %163 = vector.extract_strided_slice %145 {offsets = [0, 32], sizes = [2, 16], strides = [1, 1]} : vector<2x48xf32> to vector<2x16xf32>
    %164 = arith.mulf %153, %163 : vector<2x16xf32>
    %165 = arith.addf %162, %164 : vector<2x16xf32>
    %166 = math.tanh %165 : vector<2x16xf32>
    %cst_44 = arith.constant 1.000000e+00 : f32
    %167 = vector.broadcast %cst_44 : f32 to vector<2x16xf32>
    %168 = arith.subf %167, %161 : vector<2x16xf32>
    %169 = arith.mulf %168, %166 : vector<2x16xf32>
    %170 = arith.mulf %161, %117 : vector<2x16xf32>
    %171 = arith.addf %169, %170 : vector<2x16xf32>
    %c2 = arith.constant 2 : index
    %c0_45 = arith.constant 0 : index
    %172 = vector.load %arg2[%c2, %c0_45] : memref<16x1xf32, #tpu.memory_space<vmem>>, vector<2x1xf32>
    %cst_46 = arith.constant 0.000000e+00 : f32
    %173 = vector.broadcast %cst_46 : f32 to vector<2x1xf32>
    %174 = arith.cmpf ogt, %172, %173 : vector<2x1xf32>
    %c12 = arith.constant 12 : index
    %c0_47 = arith.constant 0 : index
    %175 = vector.load %arg2[%c12, %c0_47] : memref<16x1xf32, #tpu.memory_space<vmem>>, vector<2x1xf32>
    %cst_48 = arith.constant 0.000000e+00 : f32
    %176 = vector.broadcast %cst_48 : f32 to vector<2x1xf32>
    %177 = arith.cmpf ogt, %175, %176 : vector<2x1xf32>
    %cst_49 = arith.constant 0.000000e+00 : f32
    %178 = vector.shape_cast %174 : vector<2x1xi1> to vector<2x1xi1>
    %179 = vector.broadcast %178 : vector<2x1xi1> to vector<2x16xi1>
    %180 = vector.broadcast %cst_49 : f32 to vector<2x16xf32>
    %181 = arith.select %179, %144, %180 : vector<2x16xi1>, vector<2x16xf32>
    %c2_50 = arith.constant 2 : index
    %c0_51 = arith.constant 0 : index
    %182 = vector.load %arg22[%c2_50, %c0_51] : memref<16x32xf32, #tpu.memory_space<vmem>>, vector<2x16xf32>
    tpu.vector_store %arg22[%c2_50, %c0_51], %181 {strides = array<i32>} : memref<16x32xf32, #tpu.memory_space<vmem>>, vector<2x16xf32>,
    %cst_52 = arith.constant 0.000000e+00 : f32
    %183 = vector.shape_cast %177 : vector<2x1xi1> to vector<2x1xi1>
    %184 = vector.broadcast %183 : vector<2x1xi1> to vector<2x16xi1>
    %185 = vector.broadcast %cst_52 : f32 to vector<2x16xf32>
    %186 = arith.select %184, %171, %185 : vector<2x16xi1>, vector<2x16xf32>
    %c12_53 = arith.constant 12 : index
    %c16_54 = arith.constant 16 : index
    %187 = vector.load %arg22[%c12_53, %c16_54] : memref<16x32xf32, #tpu.memory_space<vmem>>, vector<2x16xf32>
    tpu.vector_store %arg22[%c12_53, %c16_54], %186 {strides = array<i32>} : memref<16x32xf32, #tpu.memory_space<vmem>>, vector<2x16xf32>,
    %188 = vector.shape_cast %174 : vector<2x1xi1> to vector<2x1xi1>
    %189 = vector.broadcast %188 : vector<2x1xi1> to vector<2x16xi1>
    %190 = arith.select %189, %144, %116 : vector<2x16xi1>, vector<2x16xf32>
    %191 = vector.shape_cast %177 : vector<2x1xi1> to vector<2x1xi1>
    %192 = vector.broadcast %191 : vector<2x1xi1> to vector<2x16xi1>
    %193 = arith.select %192, %171, %117 : vector<2x16xi1>, vector<2x16xf32>
    %194 = tpu.concatenate %190, %193 in 1 : vector<2x16xf32>, vector<2x16xf32> -> vector<2x32xf32>
    %cst_55 = arith.constant dense<0.000000e+00> : vector<2x96xf32>
    %195 = tpu.matmul %194, %22, %cst_55 {dimension_numbers = #tpu.dot_dimension_numbers<[1], [0], [0], [1], [0, 0, 1, 1], [], []>} : vector<2x32xf32>, vector<32x96xf32>, vector<2x96xf32> -> vector<2x96xf32>
    %196 = vector.broadcast %23 : vector<1x96xf32> to vector<2x96xf32>
    %197 = arith.addf %195, %196 : vector<2x96xf32>
    %198 = vector.extract_strided_slice %10 {offsets = [4, 0], sizes = [2, 48], strides = [1, 1]} : vector<16x96xf32> to vector<2x48xf32>
    %199 = vector.extract_strided_slice %10 {offsets = [10, 48], sizes = [2, 48], strides = [1, 1]} : vector<16x96xf32> to vector<2x48xf32>
    %200 = vector.extract_strided_slice %194 {offsets = [0, 0], sizes = [2, 16], strides = [1, 1]} : vector<2x32xf32> to vector<2x16xf32>
    %201 = vector.extract_strided_slice %194 {offsets = [0, 16], sizes = [2, 16], strides = [1, 1]} : vector<2x32xf32> to vector<2x16xf32>
    %202 = vector.extract_strided_slice %197 {offsets = [0, 0], sizes = [2, 48], strides = [1, 1]} : vector<2x96xf32> to vector<2x48xf32>
    %203 = vector.extract_strided_slice %198 {offsets = [0, 0], sizes = [2, 16], strides = [1, 1]} : vector<2x48xf32> to vector<2x16xf32>
    %204 = vector.extract_strided_slice %202 {offsets = [0, 0], sizes = [2, 16], strides = [1, 1]} : vector<2x48xf32> to vector<2x16xf32>
    %205 = arith.addf %203, %204 : vector<2x16xf32>
    %206 = arith.negf %205 : vector<2x16xf32>
    %207 = math.exp %206 : vector<2x16xf32>
    %cst_56 = arith.constant 1.000000e+00 : f32
    %208 = vector.broadcast %cst_56 : f32 to vector<2x16xf32>
    %209 = arith.addf %208, %207 : vector<2x16xf32>
    %210 = arith.divf %208, %209 : vector<2x16xf32>
    %211 = vector.extract_strided_slice %198 {offsets = [0, 16], sizes = [2, 16], strides = [1, 1]} : vector<2x48xf32> to vector<2x16xf32>
    %212 = vector.extract_strided_slice %202 {offsets = [0, 16], sizes = [2, 16], strides = [1, 1]} : vector<2x48xf32> to vector<2x16xf32>
    %213 = arith.addf %211, %212 : vector<2x16xf32>
    %214 = arith.negf %213 : vector<2x16xf32>
    %215 = math.exp %214 : vector<2x16xf32>
    %cst_57 = arith.constant 1.000000e+00 : f32
    %216 = vector.broadcast %cst_57 : f32 to vector<2x16xf32>
    %217 = arith.addf %216, %215 : vector<2x16xf32>
    %218 = arith.divf %216, %217 : vector<2x16xf32>
    %219 = vector.extract_strided_slice %198 {offsets = [0, 32], sizes = [2, 16], strides = [1, 1]} : vector<2x48xf32> to vector<2x16xf32>
    %220 = vector.extract_strided_slice %202 {offsets = [0, 32], sizes = [2, 16], strides = [1, 1]} : vector<2x48xf32> to vector<2x16xf32>
    %221 = arith.mulf %210, %220 : vector<2x16xf32>
    %222 = arith.addf %219, %221 : vector<2x16xf32>
    %223 = math.tanh %222 : vector<2x16xf32>
    %cst_58 = arith.constant 1.000000e+00 : f32
    %224 = vector.broadcast %cst_58 : f32 to vector<2x16xf32>
    %225 = arith.subf %224, %218 : vector<2x16xf32>
    %226 = arith.mulf %225, %223 : vector<2x16xf32>
    %227 = arith.mulf %218, %200 : vector<2x16xf32>
    %228 = arith.addf %226, %227 : vector<2x16xf32>
    %229 = vector.extract_strided_slice %197 {offsets = [0, 48], sizes = [2, 48], strides = [1, 1]} : vector<2x96xf32> to vector<2x48xf32>
    %230 = vector.extract_strided_slice %199 {offsets = [0, 0], sizes = [2, 16], strides = [1, 1]} : vector<2x48xf32> to vector<2x16xf32>
    %231 = vector.extract_strided_slice %229 {offsets = [0, 0], sizes = [2, 16], strides = [1, 1]} : vector<2x48xf32> to vector<2x16xf32>
    %232 = arith.addf %230, %231 : vector<2x16xf32>
    %233 = arith.negf %232 : vector<2x16xf32>
    %234 = math.exp %233 : vector<2x16xf32>
    %cst_59 = arith.constant 1.000000e+00 : f32
    %235 = vector.broadcast %cst_59 : f32 to vector<2x16xf32>
    %236 = arith.addf %235, %234 : vector<2x16xf32>
    %237 = arith.divf %235, %236 : vector<2x16xf32>
    %238 = vector.extract_strided_slice %199 {offsets = [0, 16], sizes = [2, 16], strides = [1, 1]} : vector<2x48xf32> to vector<2x16xf32>
    %239 = vector.extract_strided_slice %229 {offsets = [0, 16], sizes = [2, 16], strides = [1, 1]} : vector<2x48xf32> to vector<2x16xf32>
    %240 = arith.addf %238, %239 : vector<2x16xf32>
    %241 = arith.negf %240 : vector<2x16xf32>
    %242 = math.exp %241 : vector<2x16xf32>
    %cst_60 = arith.constant 1.000000e+00 : f32
    %243 = vector.broadcast %cst_60 : f32 to vector<2x16xf32>
    %244 = arith.addf %243, %242 : vector<2x16xf32>
    %245 = arith.divf %243, %244 : vector<2x16xf32>
    %246 = vector.extract_strided_slice %199 {offsets = [0, 32], sizes = [2, 16], strides = [1, 1]} : vector<2x48xf32> to vector<2x16xf32>
    %247 = vector.extract_strided_slice %229 {offsets = [0, 32], sizes = [2, 16], strides = [1, 1]} : vector<2x48xf32> to vector<2x16xf32>
    %248 = arith.mulf %237, %247 : vector<2x16xf32>
    %249 = arith.addf %246, %248 : vector<2x16xf32>
    %250 = math.tanh %249 : vector<2x16xf32>
    %cst_61 = arith.constant 1.000000e+00 : f32
    %251 = vector.broadcast %cst_61 : f32 to vector<2x16xf32>
    %252 = arith.subf %251, %245 : vector<2x16xf32>
    %253 = arith.mulf %252, %250 : vector<2x16xf32>
    %254 = arith.mulf %245, %201 : vector<2x16xf32>
    %255 = arith.addf %253, %254 : vector<2x16xf32>
    %c4 = arith.constant 4 : index
    %c0_62 = arith.constant 0 : index
    %256 = vector.load %arg2[%c4, %c0_62] : memref<16x1xf32, #tpu.memory_space<vmem>>, vector<2x1xf32>
    %cst_63 = arith.constant 0.000000e+00 : f32
    %257 = vector.broadcast %cst_63 : f32 to vector<2x1xf32>
    %258 = arith.cmpf ogt, %256, %257 : vector<2x1xf32>
    %c10 = arith.constant 10 : index
    %c0_64 = arith.constant 0 : index
    %259 = vector.load %arg2[%c10, %c0_64] : memref<16x1xf32, #tpu.memory_space<vmem>>, vector<2x1xf32>
    %cst_65 = arith.constant 0.000000e+00 : f32
    %260 = vector.broadcast %cst_65 : f32 to vector<2x1xf32>
    %261 = arith.cmpf ogt, %259, %260 : vector<2x1xf32>
    %cst_66 = arith.constant 0.000000e+00 : f32
    %262 = vector.shape_cast %258 : vector<2x1xi1> to vector<2x1xi1>
    %263 = vector.broadcast %262 : vector<2x1xi1> to vector<2x16xi1>
    %264 = vector.broadcast %cst_66 : f32 to vector<2x16xf32>
    %265 = arith.select %263, %228, %264 : vector<2x16xi1>, vector<2x16xf32>
    %c4_67 = arith.constant 4 : index
    %c0_68 = arith.constant 0 : index
    %266 = vector.load %arg22[%c4_67, %c0_68] : memref<16x32xf32, #tpu.memory_space<vmem>>, vector<2x16xf32>
    tpu.vector_store %arg22[%c4_67, %c0_68], %265 {strides = array<i32>} : memref<16x32xf32, #tpu.memory_space<vmem>>, vector<2x16xf32>,
    %cst_69 = arith.constant 0.000000e+00 : f32
    %267 = vector.shape_cast %261 : vector<2x1xi1> to vector<2x1xi1>
    %268 = vector.broadcast %267 : vector<2x1xi1> to vector<2x16xi1>
    %269 = vector.broadcast %cst_69 : f32 to vector<2x16xf32>
    %270 = arith.select %268, %255, %269 : vector<2x16xi1>, vector<2x16xf32>
    %c10_70 = arith.constant 10 : index
    %c16_71 = arith.constant 16 : index
    %271 = vector.load %arg22[%c10_70, %c16_71] : memref<16x32xf32, #tpu.memory_space<vmem>>, vector<2x16xf32>
    tpu.vector_store %arg22[%c10_70, %c16_71], %270 {strides = array<i32>} : memref<16x32xf32, #tpu.memory_space<vmem>>, vector<2x16xf32>,
    %272 = vector.shape_cast %258 : vector<2x1xi1> to vector<2x1xi1>
    %273 = vector.broadcast %272 : vector<2x1xi1> to vector<2x16xi1>
    %274 = arith.select %273, %228, %200 : vector<2x16xi1>, vector<2x16xf32>
    %275 = vector.shape_cast %261 : vector<2x1xi1> to vector<2x1xi1>
    %276 = vector.broadcast %275 : vector<2x1xi1> to vector<2x16xi1>
    %277 = arith.select %276, %255, %201 : vector<2x16xi1>, vector<2x16xf32>
    %278 = tpu.concatenate %274, %277 in 1 : vector<2x16xf32>, vector<2x16xf32> -> vector<2x32xf32>
    %cst_72 = arith.constant dense<0.000000e+00> : vector<2x96xf32>
    %279 = tpu.matmul %278, %22, %cst_72 {dimension_numbers = #tpu.dot_dimension_numbers<[1], [0], [0], [1], [0, 0, 1, 1], [], []>} : vector<2x32xf32>, vector<32x96xf32>, vector<2x96xf32> -> vector<2x96xf32>
    %280 = vector.broadcast %23 : vector<1x96xf32> to vector<2x96xf32>
    %281 = arith.addf %279, %280 : vector<2x96xf32>
    %282 = vector.extract_strided_slice %10 {offsets = [6, 0], sizes = [2, 48], strides = [1, 1]} : vector<16x96xf32> to vector<2x48xf32>
    %283 = vector.extract_strided_slice %10 {offsets = [8, 48], sizes = [2, 48], strides = [1, 1]} : vector<16x96xf32> to vector<2x48xf32>
    %284 = vector.extract_strided_slice %278 {offsets = [0, 0], sizes = [2, 16], strides = [1, 1]} : vector<2x32xf32> to vector<2x16xf32>
    %285 = vector.extract_strided_slice %278 {offsets = [0, 16], sizes = [2, 16], strides = [1, 1]} : vector<2x32xf32> to vector<2x16xf32>
    %286 = vector.extract_strided_slice %281 {offsets = [0, 0], sizes = [2, 48], strides = [1, 1]} : vector<2x96xf32> to vector<2x48xf32>
    %287 = vector.extract_strided_slice %282 {offsets = [0, 0], sizes = [2, 16], strides = [1, 1]} : vector<2x48xf32> to vector<2x16xf32>
    %288 = vector.extract_strided_slice %286 {offsets = [0, 0], sizes = [2, 16], strides = [1, 1]} : vector<2x48xf32> to vector<2x16xf32>
    %289 = arith.addf %287, %288 : vector<2x16xf32>
    %290 = arith.negf %289 : vector<2x16xf32>
    %291 = math.exp %290 : vector<2x16xf32>
    %cst_73 = arith.constant 1.000000e+00 : f32
    %292 = vector.broadcast %cst_73 : f32 to vector<2x16xf32>
    %293 = arith.addf %292, %291 : vector<2x16xf32>
    %294 = arith.divf %292, %293 : vector<2x16xf32>
    %295 = vector.extract_strided_slice %282 {offsets = [0, 16], sizes = [2, 16], strides = [1, 1]} : vector<2x48xf32> to vector<2x16xf32>
    %296 = vector.extract_strided_slice %286 {offsets = [0, 16], sizes = [2, 16], strides = [1, 1]} : vector<2x48xf32> to vector<2x16xf32>
    %297 = arith.addf %295, %296 : vector<2x16xf32>
    %298 = arith.negf %297 : vector<2x16xf32>
    %299 = math.exp %298 : vector<2x16xf32>
    %cst_74 = arith.constant 1.000000e+00 : f32
    %300 = vector.broadcast %cst_74 : f32 to vector<2x16xf32>
    %301 = arith.addf %300, %299 : vector<2x16xf32>
    %302 = arith.divf %300, %301 : vector<2x16xf32>
    %303 = vector.extract_strided_slice %282 {offsets = [0, 32], sizes = [2, 16], strides = [1, 1]} : vector<2x48xf32> to vector<2x16xf32>
    %304 = vector.extract_strided_slice %286 {offsets = [0, 32], sizes = [2, 16], strides = [1, 1]} : vector<2x48xf32> to vector<2x16xf32>
    %305 = arith.mulf %294, %304 : vector<2x16xf32>
    %306 = arith.addf %303, %305 : vector<2x16xf32>
    %307 = math.tanh %306 : vector<2x16xf32>
    %cst_75 = arith.constant 1.000000e+00 : f32
    %308 = vector.broadcast %cst_75 : f32 to vector<2x16xf32>
    %309 = arith.subf %308, %302 : vector<2x16xf32>
    %310 = arith.mulf %309, %307 : vector<2x16xf32>
    %311 = arith.mulf %302, %284 : vector<2x16xf32>
    %312 = arith.addf %310, %311 : vector<2x16xf32>
    %313 = vector.extract_strided_slice %281 {offsets = [0, 48], sizes = [2, 48], strides = [1, 1]} : vector<2x96xf32> to vector<2x48xf32>
    %314 = vector.extract_strided_slice %283 {offsets = [0, 0], sizes = [2, 16], strides = [1, 1]} : vector<2x48xf32> to vector<2x16xf32>
    %315 = vector.extract_strided_slice %313 {offsets = [0, 0], sizes = [2, 16], strides = [1, 1]} : vector<2x48xf32> to vector<2x16xf32>
    %316 = arith.addf %314, %315 : vector<2x16xf32>
    %317 = arith.negf %316 : vector<2x16xf32>
    %318 = math.exp %317 : vector<2x16xf32>
    %cst_76 = arith.constant 1.000000e+00 : f32
    %319 = vector.broadcast %cst_76 : f32 to vector<2x16xf32>
    %320 = arith.addf %319, %318 : vector<2x16xf32>
    %321 = arith.divf %319, %320 : vector<2x16xf32>
    %322 = vector.extract_strided_slice %283 {offsets = [0, 16], sizes = [2, 16], strides = [1, 1]} : vector<2x48xf32> to vector<2x16xf32>
    %323 = vector.extract_strided_slice %313 {offsets = [0, 16], sizes = [2, 16], strides = [1, 1]} : vector<2x48xf32> to vector<2x16xf32>
    %324 = arith.addf %322, %323 : vector<2x16xf32>
    %325 = arith.negf %324 : vector<2x16xf32>
    %326 = math.exp %325 : vector<2x16xf32>
    %cst_77 = arith.constant 1.000000e+00 : f32
    %327 = vector.broadcast %cst_77 : f32 to vector<2x16xf32>
    %328 = arith.addf %327, %326 : vector<2x16xf32>
    %329 = arith.divf %327, %328 : vector<2x16xf32>
    %330 = vector.extract_strided_slice %283 {offsets = [0, 32], sizes = [2, 16], strides = [1, 1]} : vector<2x48xf32> to vector<2x16xf32>
    %331 = vector.extract_strided_slice %313 {offsets = [0, 32], sizes = [2, 16], strides = [1, 1]} : vector<2x48xf32> to vector<2x16xf32>
    %332 = arith.mulf %321, %331 : vector<2x16xf32>
    %333 = arith.addf %330, %332 : vector<2x16xf32>
    %334 = math.tanh %333 : vector<2x16xf32>
    %cst_78 = arith.constant 1.000000e+00 : f32
    %335 = vector.broadcast %cst_78 : f32 to vector<2x16xf32>
    %336 = arith.subf %335, %329 : vector<2x16xf32>
    %337 = arith.mulf %336, %334 : vector<2x16xf32>
    %338 = arith.mulf %329, %285 : vector<2x16xf32>
    %339 = arith.addf %337, %338 : vector<2x16xf32>
    %c6 = arith.constant 6 : index
    %c0_79 = arith.constant 0 : index
    %340 = vector.load %arg2[%c6, %c0_79] : memref<16x1xf32, #tpu.memory_space<vmem>>, vector<2x1xf32>
    %cst_80 = arith.constant 0.000000e+00 : f32
    %341 = vector.broadcast %cst_80 : f32 to vector<2x1xf32>
    %342 = arith.cmpf ogt, %340, %341 : vector<2x1xf32>
    %c8 = arith.constant 8 : index
    %c0_81 = arith.constant 0 : index
    %343 = vector.load %arg2[%c8, %c0_81] : memref<16x1xf32, #tpu.memory_space<vmem>>, vector<2x1xf32>
    %cst_82 = arith.constant 0.000000e+00 : f32
    %344 = vector.broadcast %cst_82 : f32 to vector<2x1xf32>
    %345 = arith.cmpf ogt, %343, %344 : vector<2x1xf32>
    %cst_83 = arith.constant 0.000000e+00 : f32
    %346 = vector.shape_cast %342 : vector<2x1xi1> to vector<2x1xi1>
    %347 = vector.broadcast %346 : vector<2x1xi1> to vector<2x16xi1>
    %348 = vector.broadcast %cst_83 : f32 to vector<2x16xf32>
    %349 = arith.select %347, %312, %348 : vector<2x16xi1>, vector<2x16xf32>
    %c6_84 = arith.constant 6 : index
    %c0_85 = arith.constant 0 : index
    %350 = vector.load %arg22[%c6_84, %c0_85] : memref<16x32xf32, #tpu.memory_space<vmem>>, vector<2x16xf32>
    tpu.vector_store %arg22[%c6_84, %c0_85], %349 {strides = array<i32>} : memref<16x32xf32, #tpu.memory_space<vmem>>, vector<2x16xf32>,
    %cst_86 = arith.constant 0.000000e+00 : f32
    %351 = vector.shape_cast %345 : vector<2x1xi1> to vector<2x1xi1>
    %352 = vector.broadcast %351 : vector<2x1xi1> to vector<2x16xi1>
    %353 = vector.broadcast %cst_86 : f32 to vector<2x16xf32>
    %354 = arith.select %352, %339, %353 : vector<2x16xi1>, vector<2x16xf32>
    %c8_87 = arith.constant 8 : index
    %c16_88 = arith.constant 16 : index
    %355 = vector.load %arg22[%c8_87, %c16_88] : memref<16x32xf32, #tpu.memory_space<vmem>>, vector<2x16xf32>
    tpu.vector_store %arg22[%c8_87, %c16_88], %354 {strides = array<i32>} : memref<16x32xf32, #tpu.memory_space<vmem>>, vector<2x16xf32>,
    %356 = vector.shape_cast %342 : vector<2x1xi1> to vector<2x1xi1>
    %357 = vector.broadcast %356 : vector<2x1xi1> to vector<2x16xi1>
    %358 = arith.select %357, %312, %284 : vector<2x16xi1>, vector<2x16xf32>
    %359 = vector.shape_cast %345 : vector<2x1xi1> to vector<2x1xi1>
    %360 = vector.broadcast %359 : vector<2x1xi1> to vector<2x16xi1>
    %361 = arith.select %360, %339, %285 : vector<2x16xi1>, vector<2x16xf32>
    %362 = tpu.concatenate %358, %361 in 1 : vector<2x16xf32>, vector<2x16xf32> -> vector<2x32xf32>
    %cst_89 = arith.constant dense<0.000000e+00> : vector<2x96xf32>
    %363 = tpu.matmul %362, %22, %cst_89 {dimension_numbers = #tpu.dot_dimension_numbers<[1], [0], [0], [1], [0, 0, 1, 1], [], []>} : vector<2x32xf32>, vector<32x96xf32>, vector<2x96xf32> -> vector<2x96xf32>
    %364 = vector.broadcast %23 : vector<1x96xf32> to vector<2x96xf32>
    %365 = arith.addf %363, %364 : vector<2x96xf32>
    %366 = vector.extract_strided_slice %10 {offsets = [8, 0], sizes = [2, 48], strides = [1, 1]} : vector<16x96xf32> to vector<2x48xf32>
    %367 = vector.extract_strided_slice %10 {offsets = [6, 48], sizes = [2, 48], strides = [1, 1]} : vector<16x96xf32> to vector<2x48xf32>
    %368 = vector.extract_strided_slice %362 {offsets = [0, 0], sizes = [2, 16], strides = [1, 1]} : vector<2x32xf32> to vector<2x16xf32>
    %369 = vector.extract_strided_slice %362 {offsets = [0, 16], sizes = [2, 16], strides = [1, 1]} : vector<2x32xf32> to vector<2x16xf32>
    %370 = vector.extract_strided_slice %365 {offsets = [0, 0], sizes = [2, 48], strides = [1, 1]} : vector<2x96xf32> to vector<2x48xf32>
    %371 = vector.extract_strided_slice %366 {offsets = [0, 0], sizes = [2, 16], strides = [1, 1]} : vector<2x48xf32> to vector<2x16xf32>
    %372 = vector.extract_strided_slice %370 {offsets = [0, 0], sizes = [2, 16], strides = [1, 1]} : vector<2x48xf32> to vector<2x16xf32>
    %373 = arith.addf %371, %372 : vector<2x16xf32>
    %374 = arith.negf %373 : vector<2x16xf32>
    %375 = math.exp %374 : vector<2x16xf32>
    %cst_90 = arith.constant 1.000000e+00 : f32
    %376 = vector.broadcast %cst_90 : f32 to vector<2x16xf32>
    %377 = arith.addf %376, %375 : vector<2x16xf32>
    %378 = arith.divf %376, %377 : vector<2x16xf32>
    %379 = vector.extract_strided_slice %366 {offsets = [0, 16], sizes = [2, 16], strides = [1, 1]} : vector<2x48xf32> to vector<2x16xf32>
    %380 = vector.extract_strided_slice %370 {offsets = [0, 16], sizes = [2, 16], strides = [1, 1]} : vector<2x48xf32> to vector<2x16xf32>
    %381 = arith.addf %379, %380 : vector<2x16xf32>
    %382 = arith.negf %381 : vector<2x16xf32>
    %383 = math.exp %382 : vector<2x16xf32>
    %cst_91 = arith.constant 1.000000e+00 : f32
    %384 = vector.broadcast %cst_91 : f32 to vector<2x16xf32>
    %385 = arith.addf %384, %383 : vector<2x16xf32>
    %386 = arith.divf %384, %385 : vector<2x16xf32>
    %387 = vector.extract_strided_slice %366 {offsets = [0, 32], sizes = [2, 16], strides = [1, 1]} : vector<2x48xf32> to vector<2x16xf32>
    %388 = vector.extract_strided_slice %370 {offsets = [0, 32], sizes = [2, 16], strides = [1, 1]} : vector<2x48xf32> to vector<2x16xf32>
    %389 = arith.mulf %378, %388 : vector<2x16xf32>
    %390 = arith.addf %387, %389 : vector<2x16xf32>
    %391 = math.tanh %390 : vector<2x16xf32>
    %cst_92 = arith.constant 1.000000e+00 : f32
    %392 = vector.broadcast %cst_92 : f32 to vector<2x16xf32>
    %393 = arith.subf %392, %386 : vector<2x16xf32>
    %394 = arith.mulf %393, %391 : vector<2x16xf32>
    %395 = arith.mulf %386, %368 : vector<2x16xf32>
    %396 = arith.addf %394, %395 : vector<2x16xf32>
    %397 = vector.extract_strided_slice %365 {offsets = [0, 48], sizes = [2, 48], strides = [1, 1]} : vector<2x96xf32> to vector<2x48xf32>
    %398 = vector.extract_strided_slice %367 {offsets = [0, 0], sizes = [2, 16], strides = [1, 1]} : vector<2x48xf32> to vector<2x16xf32>
    %399 = vector.extract_strided_slice %397 {offsets = [0, 0], sizes = [2, 16], strides = [1, 1]} : vector<2x48xf32> to vector<2x16xf32>
    %400 = arith.addf %398, %399 : vector<2x16xf32>
    %401 = arith.negf %400 : vector<2x16xf32>
    %402 = math.exp %401 : vector<2x16xf32>
    %cst_93 = arith.constant 1.000000e+00 : f32
    %403 = vector.broadcast %cst_93 : f32 to vector<2x16xf32>
    %404 = arith.addf %403, %402 : vector<2x16xf32>
    %405 = arith.divf %403, %404 : vector<2x16xf32>
    %406 = vector.extract_strided_slice %367 {offsets = [0, 16], sizes = [2, 16], strides = [1, 1]} : vector<2x48xf32> to vector<2x16xf32>
    %407 = vector.extract_strided_slice %397 {offsets = [0, 16], sizes = [2, 16], strides = [1, 1]} : vector<2x48xf32> to vector<2x16xf32>
    %408 = arith.addf %406, %407 : vector<2x16xf32>
    %409 = arith.negf %408 : vector<2x16xf32>
    %410 = math.exp %409 : vector<2x16xf32>
    %cst_94 = arith.constant 1.000000e+00 : f32
    %411 = vector.broadcast %cst_94 : f32 to vector<2x16xf32>
    %412 = arith.addf %411, %410 : vector<2x16xf32>
    %413 = arith.divf %411, %412 : vector<2x16xf32>
    %414 = vector.extract_strided_slice %367 {offsets = [0, 32], sizes = [2, 16], strides = [1, 1]} : vector<2x48xf32> to vector<2x16xf32>
    %415 = vector.extract_strided_slice %397 {offsets = [0, 32], sizes = [2, 16], strides = [1, 1]} : vector<2x48xf32> to vector<2x16xf32>
    %416 = arith.mulf %405, %415 : vector<2x16xf32>
    %417 = arith.addf %414, %416 : vector<2x16xf32>
    %418 = math.tanh %417 : vector<2x16xf32>
    %cst_95 = arith.constant 1.000000e+00 : f32
    %419 = vector.broadcast %cst_95 : f32 to vector<2x16xf32>
    %420 = arith.subf %419, %413 : vector<2x16xf32>
    %421 = arith.mulf %420, %418 : vector<2x16xf32>
    %422 = arith.mulf %413, %369 : vector<2x16xf32>
    %423 = arith.addf %421, %422 : vector<2x16xf32>
    %c8_96 = arith.constant 8 : index
    %c0_97 = arith.constant 0 : index
    %424 = vector.load %arg2[%c8_96, %c0_97] : memref<16x1xf32, #tpu.memory_space<vmem>>, vector<2x1xf32>
    %cst_98 = arith.constant 0.000000e+00 : f32
    %425 = vector.broadcast %cst_98 : f32 to vector<2x1xf32>
    %426 = arith.cmpf ogt, %424, %425 : vector<2x1xf32>
    %c6_99 = arith.constant 6 : index
    %c0_100 = arith.constant 0 : index
    %427 = vector.load %arg2[%c6_99, %c0_100] : memref<16x1xf32, #tpu.memory_space<vmem>>, vector<2x1xf32>
    %cst_101 = arith.constant 0.000000e+00 : f32
    %428 = vector.broadcast %cst_101 : f32 to vector<2x1xf32>
    %429 = arith.cmpf ogt, %427, %428 : vector<2x1xf32>
    %cst_102 = arith.constant 0.000000e+00 : f32
    %430 = vector.shape_cast %426 : vector<2x1xi1> to vector<2x1xi1>
    %431 = vector.broadcast %430 : vector<2x1xi1> to vector<2x16xi1>
    %432 = vector.broadcast %cst_102 : f32 to vector<2x16xf32>
    %433 = arith.select %431, %396, %432 : vector<2x16xi1>, vector<2x16xf32>
    %c8_103 = arith.constant 8 : index
    %c0_104 = arith.constant 0 : index
    %434 = vector.load %arg22[%c8_103, %c0_104] : memref<16x32xf32, #tpu.memory_space<vmem>>, vector<2x16xf32>
    tpu.vector_store %arg22[%c8_103, %c0_104], %433 {strides = array<i32>} : memref<16x32xf32, #tpu.memory_space<vmem>>, vector<2x16xf32>,
    %cst_105 = arith.constant 0.000000e+00 : f32
    %435 = vector.shape_cast %429 : vector<2x1xi1> to vector<2x1xi1>
    %436 = vector.broadcast %435 : vector<2x1xi1> to vector<2x16xi1>
    %437 = vector.broadcast %cst_105 : f32 to vector<2x16xf32>
    %438 = arith.select %436, %423, %437 : vector<2x16xi1>, vector<2x16xf32>
    %c6_106 = arith.constant 6 : index
    %c16_107 = arith.constant 16 : index
    %439 = vector.load %arg22[%c6_106, %c16_107] : memref<16x32xf32, #tpu.memory_space<vmem>>, vector<2x16xf32>
    tpu.vector_store %arg22[%c6_106, %c16_107], %438 {strides = array<i32>} : memref<16x32xf32, #tpu.memory_space<vmem>>, vector<2x16xf32>,
    %440 = vector.shape_cast %426 : vector<2x1xi1> to vector<2x1xi1>
    %441 = vector.broadcast %440 : vector<2x1xi1> to vector<2x16xi1>
    %442 = arith.select %441, %396, %368 : vector<2x16xi1>, vector<2x16xf32>
    %443 = vector.shape_cast %429 : vector<2x1xi1> to vector<2x1xi1>
    %444 = vector.broadcast %443 : vector<2x1xi1> to vector<2x16xi1>
    %445 = arith.select %444, %423, %369 : vector<2x16xi1>, vector<2x16xf32>
    %446 = tpu.concatenate %442, %445 in 1 : vector<2x16xf32>, vector<2x16xf32> -> vector<2x32xf32>
    %cst_108 = arith.constant dense<0.000000e+00> : vector<2x96xf32>
    %447 = tpu.matmul %446, %22, %cst_108 {dimension_numbers = #tpu.dot_dimension_numbers<[1], [0], [0], [1], [0, 0, 1, 1], [], []>} : vector<2x32xf32>, vector<32x96xf32>, vector<2x96xf32> -> vector<2x96xf32>
    %448 = vector.broadcast %23 : vector<1x96xf32> to vector<2x96xf32>
    %449 = arith.addf %447, %448 : vector<2x96xf32>
    %450 = vector.extract_strided_slice %10 {offsets = [10, 0], sizes = [2, 48], strides = [1, 1]} : vector<16x96xf32> to vector<2x48xf32>
    %451 = vector.extract_strided_slice %10 {offsets = [4, 48], sizes = [2, 48], strides = [1, 1]} : vector<16x96xf32> to vector<2x48xf32>
    %452 = vector.extract_strided_slice %446 {offsets = [0, 0], sizes = [2, 16], strides = [1, 1]} : vector<2x32xf32> to vector<2x16xf32>
    %453 = vector.extract_strided_slice %446 {offsets = [0, 16], sizes = [2, 16], strides = [1, 1]} : vector<2x32xf32> to vector<2x16xf32>
    %454 = vector.extract_strided_slice %449 {offsets = [0, 0], sizes = [2, 48], strides = [1, 1]} : vector<2x96xf32> to vector<2x48xf32>
    %455 = vector.extract_strided_slice %450 {offsets = [0, 0], sizes = [2, 16], strides = [1, 1]} : vector<2x48xf32> to vector<2x16xf32>
    %456 = vector.extract_strided_slice %454 {offsets = [0, 0], sizes = [2, 16], strides = [1, 1]} : vector<2x48xf32> to vector<2x16xf32>
    %457 = arith.addf %455, %456 : vector<2x16xf32>
    %458 = arith.negf %457 : vector<2x16xf32>
    %459 = math.exp %458 : vector<2x16xf32>
    %cst_109 = arith.constant 1.000000e+00 : f32
    %460 = vector.broadcast %cst_109 : f32 to vector<2x16xf32>
    %461 = arith.addf %460, %459 : vector<2x16xf32>
    %462 = arith.divf %460, %461 : vector<2x16xf32>
    %463 = vector.extract_strided_slice %450 {offsets = [0, 16], sizes = [2, 16], strides = [1, 1]} : vector<2x48xf32> to vector<2x16xf32>
    %464 = vector.extract_strided_slice %454 {offsets = [0, 16], sizes = [2, 16], strides = [1, 1]} : vector<2x48xf32> to vector<2x16xf32>
    %465 = arith.addf %463, %464 : vector<2x16xf32>
    %466 = arith.negf %465 : vector<2x16xf32>
    %467 = math.exp %466 : vector<2x16xf32>
    %cst_110 = arith.constant 1.000000e+00 : f32
    %468 = vector.broadcast %cst_110 : f32 to vector<2x16xf32>
    %469 = arith.addf %468, %467 : vector<2x16xf32>
    %470 = arith.divf %468, %469 : vector<2x16xf32>
    %471 = vector.extract_strided_slice %450 {offsets = [0, 32], sizes = [2, 16], strides = [1, 1]} : vector<2x48xf32> to vector<2x16xf32>
    %472 = vector.extract_strided_slice %454 {offsets = [0, 32], sizes = [2, 16], strides = [1, 1]} : vector<2x48xf32> to vector<2x16xf32>
    %473 = arith.mulf %462, %472 : vector<2x16xf32>
    %474 = arith.addf %471, %473 : vector<2x16xf32>
    %475 = math.tanh %474 : vector<2x16xf32>
    %cst_111 = arith.constant 1.000000e+00 : f32
    %476 = vector.broadcast %cst_111 : f32 to vector<2x16xf32>
    %477 = arith.subf %476, %470 : vector<2x16xf32>
    %478 = arith.mulf %477, %475 : vector<2x16xf32>
    %479 = arith.mulf %470, %452 : vector<2x16xf32>
    %480 = arith.addf %478, %479 : vector<2x16xf32>
    %481 = vector.extract_strided_slice %449 {offsets = [0, 48], sizes = [2, 48], strides = [1, 1]} : vector<2x96xf32> to vector<2x48xf32>
    %482 = vector.extract_strided_slice %451 {offsets = [0, 0], sizes = [2, 16], strides = [1, 1]} : vector<2x48xf32> to vector<2x16xf32>
    %483 = vector.extract_strided_slice %481 {offsets = [0, 0], sizes = [2, 16], strides = [1, 1]} : vector<2x48xf32> to vector<2x16xf32>
    %484 = arith.addf %482, %483 : vector<2x16xf32>
    %485 = arith.negf %484 : vector<2x16xf32>
    %486 = math.exp %485 : vector<2x16xf32>
    %cst_112 = arith.constant 1.000000e+00 : f32
    %487 = vector.broadcast %cst_112 : f32 to vector<2x16xf32>
    %488 = arith.addf %487, %486 : vector<2x16xf32>
    %489 = arith.divf %487, %488 : vector<2x16xf32>
    %490 = vector.extract_strided_slice %451 {offsets = [0, 16], sizes = [2, 16], strides = [1, 1]} : vector<2x48xf32> to vector<2x16xf32>
    %491 = vector.extract_strided_slice %481 {offsets = [0, 16], sizes = [2, 16], strides = [1, 1]} : vector<2x48xf32> to vector<2x16xf32>
    %492 = arith.addf %490, %491 : vector<2x16xf32>
    %493 = arith.negf %492 : vector<2x16xf32>
    %494 = math.exp %493 : vector<2x16xf32>
    %cst_113 = arith.constant 1.000000e+00 : f32
    %495 = vector.broadcast %cst_113 : f32 to vector<2x16xf32>
    %496 = arith.addf %495, %494 : vector<2x16xf32>
    %497 = arith.divf %495, %496 : vector<2x16xf32>
    %498 = vector.extract_strided_slice %451 {offsets = [0, 32], sizes = [2, 16], strides = [1, 1]} : vector<2x48xf32> to vector<2x16xf32>
    %499 = vector.extract_strided_slice %481 {offsets = [0, 32], sizes = [2, 16], strides = [1, 1]} : vector<2x48xf32> to vector<2x16xf32>
    %500 = arith.mulf %489, %499 : vector<2x16xf32>
    %501 = arith.addf %498, %500 : vector<2x16xf32>
    %502 = math.tanh %501 : vector<2x16xf32>
    %cst_114 = arith.constant 1.000000e+00 : f32
    %503 = vector.broadcast %cst_114 : f32 to vector<2x16xf32>
    %504 = arith.subf %503, %497 : vector<2x16xf32>
    %505 = arith.mulf %504, %502 : vector<2x16xf32>
    %506 = arith.mulf %497, %453 : vector<2x16xf32>
    %507 = arith.addf %505, %506 : vector<2x16xf32>
    %c10_115 = arith.constant 10 : index
    %c0_116 = arith.constant 0 : index
    %508 = vector.load %arg2[%c10_115, %c0_116] : memref<16x1xf32, #tpu.memory_space<vmem>>, vector<2x1xf32>
    %cst_117 = arith.constant 0.000000e+00 : f32
    %509 = vector.broadcast %cst_117 : f32 to vector<2x1xf32>
    %510 = arith.cmpf ogt, %508, %509 : vector<2x1xf32>
    %c4_118 = arith.constant 4 : index
    %c0_119 = arith.constant 0 : index
    %511 = vector.load %arg2[%c4_118, %c0_119] : memref<16x1xf32, #tpu.memory_space<vmem>>, vector<2x1xf32>
    %cst_120 = arith.constant 0.000000e+00 : f32
    %512 = vector.broadcast %cst_120 : f32 to vector<2x1xf32>
    %513 = arith.cmpf ogt, %511, %512 : vector<2x1xf32>
    %cst_121 = arith.constant 0.000000e+00 : f32
    %514 = vector.shape_cast %510 : vector<2x1xi1> to vector<2x1xi1>
    %515 = vector.broadcast %514 : vector<2x1xi1> to vector<2x16xi1>
    %516 = vector.broadcast %cst_121 : f32 to vector<2x16xf32>
    %517 = arith.select %515, %480, %516 : vector<2x16xi1>, vector<2x16xf32>
    %c10_122 = arith.constant 10 : index
    %c0_123 = arith.constant 0 : index
    %518 = vector.load %arg22[%c10_122, %c0_123] : memref<16x32xf32, #tpu.memory_space<vmem>>, vector<2x16xf32>
    tpu.vector_store %arg22[%c10_122, %c0_123], %517 {strides = array<i32>} : memref<16x32xf32, #tpu.memory_space<vmem>>, vector<2x16xf32>,
    %cst_124 = arith.constant 0.000000e+00 : f32
    %519 = vector.shape_cast %513 : vector<2x1xi1> to vector<2x1xi1>
    %520 = vector.broadcast %519 : vector<2x1xi1> to vector<2x16xi1>
    %521 = vector.broadcast %cst_124 : f32 to vector<2x16xf32>
    %522 = arith.select %520, %507, %521 : vector<2x16xi1>, vector<2x16xf32>
    %c4_125 = arith.constant 4 : index
    %c16_126 = arith.constant 16 : index
    %523 = vector.load %arg22[%c4_125, %c16_126] : memref<16x32xf32, #tpu.memory_space<vmem>>, vector<2x16xf32>
    tpu.vector_store %arg22[%c4_125, %c16_126], %522 {strides = array<i32>} : memref<16x32xf32, #tpu.memory_space<vmem>>, vector<2x16xf32>,
    %524 = vector.shape_cast %510 : vector<2x1xi1> to vector<2x1xi1>
    %525 = vector.broadcast %524 : vector<2x1xi1> to vector<2x16xi1>
    %526 = arith.select %525, %480, %452 : vector<2x16xi1>, vector<2x16xf32>
    %527 = vector.shape_cast %513 : vector<2x1xi1> to vector<2x1xi1>
    %528 = vector.broadcast %527 : vector<2x1xi1> to vector<2x16xi1>
    %529 = arith.select %528, %507, %453 : vector<2x16xi1>, vector<2x16xf32>
    %530 = tpu.concatenate %526, %529 in 1 : vector<2x16xf32>, vector<2x16xf32> -> vector<2x32xf32>
    %cst_127 = arith.constant dense<0.000000e+00> : vector<2x96xf32>
    %531 = tpu.matmul %530, %22, %cst_127 {dimension_numbers = #tpu.dot_dimension_numbers<[1], [0], [0], [1], [0, 0, 1, 1], [], []>} : vector<2x32xf32>, vector<32x96xf32>, vector<2x96xf32> -> vector<2x96xf32>
    %532 = vector.broadcast %23 : vector<1x96xf32> to vector<2x96xf32>
    %533 = arith.addf %531, %532 : vector<2x96xf32>
    %534 = vector.extract_strided_slice %10 {offsets = [12, 0], sizes = [2, 48], strides = [1, 1]} : vector<16x96xf32> to vector<2x48xf32>
    %535 = vector.extract_strided_slice %10 {offsets = [2, 48], sizes = [2, 48], strides = [1, 1]} : vector<16x96xf32> to vector<2x48xf32>
    %536 = vector.extract_strided_slice %530 {offsets = [0, 0], sizes = [2, 16], strides = [1, 1]} : vector<2x32xf32> to vector<2x16xf32>
    %537 = vector.extract_strided_slice %530 {offsets = [0, 16], sizes = [2, 16], strides = [1, 1]} : vector<2x32xf32> to vector<2x16xf32>
    %538 = vector.extract_strided_slice %533 {offsets = [0, 0], sizes = [2, 48], strides = [1, 1]} : vector<2x96xf32> to vector<2x48xf32>
    %539 = vector.extract_strided_slice %534 {offsets = [0, 0], sizes = [2, 16], strides = [1, 1]} : vector<2x48xf32> to vector<2x16xf32>
    %540 = vector.extract_strided_slice %538 {offsets = [0, 0], sizes = [2, 16], strides = [1, 1]} : vector<2x48xf32> to vector<2x16xf32>
    %541 = arith.addf %539, %540 : vector<2x16xf32>
    %542 = arith.negf %541 : vector<2x16xf32>
    %543 = math.exp %542 : vector<2x16xf32>
    %cst_128 = arith.constant 1.000000e+00 : f32
    %544 = vector.broadcast %cst_128 : f32 to vector<2x16xf32>
    %545 = arith.addf %544, %543 : vector<2x16xf32>
    %546 = arith.divf %544, %545 : vector<2x16xf32>
    %547 = vector.extract_strided_slice %534 {offsets = [0, 16], sizes = [2, 16], strides = [1, 1]} : vector<2x48xf32> to vector<2x16xf32>
    %548 = vector.extract_strided_slice %538 {offsets = [0, 16], sizes = [2, 16], strides = [1, 1]} : vector<2x48xf32> to vector<2x16xf32>
    %549 = arith.addf %547, %548 : vector<2x16xf32>
    %550 = arith.negf %549 : vector<2x16xf32>
    %551 = math.exp %550 : vector<2x16xf32>
    %cst_129 = arith.constant 1.000000e+00 : f32
    %552 = vector.broadcast %cst_129 : f32 to vector<2x16xf32>
    %553 = arith.addf %552, %551 : vector<2x16xf32>
    %554 = arith.divf %552, %553 : vector<2x16xf32>
    %555 = vector.extract_strided_slice %534 {offsets = [0, 32], sizes = [2, 16], strides = [1, 1]} : vector<2x48xf32> to vector<2x16xf32>
    %556 = vector.extract_strided_slice %538 {offsets = [0, 32], sizes = [2, 16], strides = [1, 1]} : vector<2x48xf32> to vector<2x16xf32>
    %557 = arith.mulf %546, %556 : vector<2x16xf32>
    %558 = arith.addf %555, %557 : vector<2x16xf32>
    %559 = math.tanh %558 : vector<2x16xf32>
    %cst_130 = arith.constant 1.000000e+00 : f32
    %560 = vector.broadcast %cst_130 : f32 to vector<2x16xf32>
    %561 = arith.subf %560, %554 : vector<2x16xf32>
    %562 = arith.mulf %561, %559 : vector<2x16xf32>
    %563 = arith.mulf %554, %536 : vector<2x16xf32>
    %564 = arith.addf %562, %563 : vector<2x16xf32>
    %565 = vector.extract_strided_slice %533 {offsets = [0, 48], sizes = [2, 48], strides = [1, 1]} : vector<2x96xf32> to vector<2x48xf32>
    %566 = vector.extract_strided_slice %535 {offsets = [0, 0], sizes = [2, 16], strides = [1, 1]} : vector<2x48xf32> to vector<2x16xf32>
    %567 = vector.extract_strided_slice %565 {offsets = [0, 0], sizes = [2, 16], strides = [1, 1]} : vector<2x48xf32> to vector<2x16xf32>
    %568 = arith.addf %566, %567 : vector<2x16xf32>
    %569 = arith.negf %568 : vector<2x16xf32>
    %570 = math.exp %569 : vector<2x16xf32>
    %cst_131 = arith.constant 1.000000e+00 : f32
    %571 = vector.broadcast %cst_131 : f32 to vector<2x16xf32>
    %572 = arith.addf %571, %570 : vector<2x16xf32>
    %573 = arith.divf %571, %572 : vector<2x16xf32>
    %574 = vector.extract_strided_slice %535 {offsets = [0, 16], sizes = [2, 16], strides = [1, 1]} : vector<2x48xf32> to vector<2x16xf32>
    %575 = vector.extract_strided_slice %565 {offsets = [0, 16], sizes = [2, 16], strides = [1, 1]} : vector<2x48xf32> to vector<2x16xf32>
    %576 = arith.addf %574, %575 : vector<2x16xf32>
    %577 = arith.negf %576 : vector<2x16xf32>
    %578 = math.exp %577 : vector<2x16xf32>
    %cst_132 = arith.constant 1.000000e+00 : f32
    %579 = vector.broadcast %cst_132 : f32 to vector<2x16xf32>
    %580 = arith.addf %579, %578 : vector<2x16xf32>
    %581 = arith.divf %579, %580 : vector<2x16xf32>
    %582 = vector.extract_strided_slice %535 {offsets = [0, 32], sizes = [2, 16], strides = [1, 1]} : vector<2x48xf32> to vector<2x16xf32>
    %583 = vector.extract_strided_slice %565 {offsets = [0, 32], sizes = [2, 16], strides = [1, 1]} : vector<2x48xf32> to vector<2x16xf32>
    %584 = arith.mulf %573, %583 : vector<2x16xf32>
    %585 = arith.addf %582, %584 : vector<2x16xf32>
    %586 = math.tanh %585 : vector<2x16xf32>
    %cst_133 = arith.constant 1.000000e+00 : f32
    %587 = vector.broadcast %cst_133 : f32 to vector<2x16xf32>
    %588 = arith.subf %587, %581 : vector<2x16xf32>
    %589 = arith.mulf %588, %586 : vector<2x16xf32>
    %590 = arith.mulf %581, %537 : vector<2x16xf32>
    %591 = arith.addf %589, %590 : vector<2x16xf32>
    %c12_134 = arith.constant 12 : index
    %c0_135 = arith.constant 0 : index
    %592 = vector.load %arg2[%c12_134, %c0_135] : memref<16x1xf32, #tpu.memory_space<vmem>>, vector<2x1xf32>
    %cst_136 = arith.constant 0.000000e+00 : f32
    %593 = vector.broadcast %cst_136 : f32 to vector<2x1xf32>
    %594 = arith.cmpf ogt, %592, %593 : vector<2x1xf32>
    %c2_137 = arith.constant 2 : index
    %c0_138 = arith.constant 0 : index
    %595 = vector.load %arg2[%c2_137, %c0_138] : memref<16x1xf32, #tpu.memory_space<vmem>>, vector<2x1xf32>
    %cst_139 = arith.constant 0.000000e+00 : f32
    %596 = vector.broadcast %cst_139 : f32 to vector<2x1xf32>
    %597 = arith.cmpf ogt, %595, %596 : vector<2x1xf32>
    %cst_140 = arith.constant 0.000000e+00 : f32
    %598 = vector.shape_cast %594 : vector<2x1xi1> to vector<2x1xi1>
    %599 = vector.broadcast %598 : vector<2x1xi1> to vector<2x16xi1>
    %600 = vector.broadcast %cst_140 : f32 to vector<2x16xf32>
    %601 = arith.select %599, %564, %600 : vector<2x16xi1>, vector<2x16xf32>
    %c12_141 = arith.constant 12 : index
    %c0_142 = arith.constant 0 : index
    %602 = vector.load %arg22[%c12_141, %c0_142] : memref<16x32xf32, #tpu.memory_space<vmem>>, vector<2x16xf32>
    tpu.vector_store %arg22[%c12_141, %c0_142], %601 {strides = array<i32>} : memref<16x32xf32, #tpu.memory_space<vmem>>, vector<2x16xf32>,
    %cst_143 = arith.constant 0.000000e+00 : f32
    %603 = vector.shape_cast %597 : vector<2x1xi1> to vector<2x1xi1>
    %604 = vector.broadcast %603 : vector<2x1xi1> to vector<2x16xi1>
    %605 = vector.broadcast %cst_143 : f32 to vector<2x16xf32>
    %606 = arith.select %604, %591, %605 : vector<2x16xi1>, vector<2x16xf32>
    %c2_144 = arith.constant 2 : index
    %c16_145 = arith.constant 16 : index
    %607 = vector.load %arg22[%c2_144, %c16_145] : memref<16x32xf32, #tpu.memory_space<vmem>>, vector<2x16xf32>
    tpu.vector_store %arg22[%c2_144, %c16_145], %606 {strides = array<i32>} : memref<16x32xf32, #tpu.memory_space<vmem>>, vector<2x16xf32>,
    %608 = vector.shape_cast %594 : vector<2x1xi1> to vector<2x1xi1>
    %609 = vector.broadcast %608 : vector<2x1xi1> to vector<2x16xi1>
    %610 = arith.select %609, %564, %536 : vector<2x16xi1>, vector<2x16xf32>
    %611 = vector.shape_cast %597 : vector<2x1xi1> to vector<2x1xi1>
    %612 = vector.broadcast %611 : vector<2x1xi1> to vector<2x16xi1>
    %613 = arith.select %612, %591, %537 : vector<2x16xi1>, vector<2x16xf32>
    %614 = tpu.concatenate %610, %613 in 1 : vector<2x16xf32>, vector<2x16xf32> -> vector<2x32xf32>
    %cst_146 = arith.constant dense<0.000000e+00> : vector<2x96xf32>
    %615 = tpu.matmul %614, %22, %cst_146 {dimension_numbers = #tpu.dot_dimension_numbers<[1], [0], [0], [1], [0, 0, 1, 1], [], []>} : vector<2x32xf32>, vector<32x96xf32>, vector<2x96xf32> -> vector<2x96xf32>
    %616 = vector.broadcast %23 : vector<1x96xf32> to vector<2x96xf32>
    %617 = arith.addf %615, %616 : vector<2x96xf32>
    %618 = vector.extract_strided_slice %10 {offsets = [14, 0], sizes = [2, 48], strides = [1, 1]} : vector<16x96xf32> to vector<2x48xf32>
    %619 = vector.extract_strided_slice %10 {offsets = [0, 48], sizes = [2, 48], strides = [1, 1]} : vector<16x96xf32> to vector<2x48xf32>
    %620 = vector.extract_strided_slice %614 {offsets = [0, 0], sizes = [2, 16], strides = [1, 1]} : vector<2x32xf32> to vector<2x16xf32>
    %621 = vector.extract_strided_slice %614 {offsets = [0, 16], sizes = [2, 16], strides = [1, 1]} : vector<2x32xf32> to vector<2x16xf32>
    %622 = vector.extract_strided_slice %617 {offsets = [0, 0], sizes = [2, 48], strides = [1, 1]} : vector<2x96xf32> to vector<2x48xf32>
    %623 = vector.extract_strided_slice %618 {offsets = [0, 0], sizes = [2, 16], strides = [1, 1]} : vector<2x48xf32> to vector<2x16xf32>
    %624 = vector.extract_strided_slice %622 {offsets = [0, 0], sizes = [2, 16], strides = [1, 1]} : vector<2x48xf32> to vector<2x16xf32>
    %625 = arith.addf %623, %624 : vector<2x16xf32>
    %626 = arith.negf %625 : vector<2x16xf32>
    %627 = math.exp %626 : vector<2x16xf32>
    %cst_147 = arith.constant 1.000000e+00 : f32
    %628 = vector.broadcast %cst_147 : f32 to vector<2x16xf32>
    %629 = arith.addf %628, %627 : vector<2x16xf32>
    %630 = arith.divf %628, %629 : vector<2x16xf32>
    %631 = vector.extract_strided_slice %618 {offsets = [0, 16], sizes = [2, 16], strides = [1, 1]} : vector<2x48xf32> to vector<2x16xf32>
    %632 = vector.extract_strided_slice %622 {offsets = [0, 16], sizes = [2, 16], strides = [1, 1]} : vector<2x48xf32> to vector<2x16xf32>
    %633 = arith.addf %631, %632 : vector<2x16xf32>
    %634 = arith.negf %633 : vector<2x16xf32>
    %635 = math.exp %634 : vector<2x16xf32>
    %cst_148 = arith.constant 1.000000e+00 : f32
    %636 = vector.broadcast %cst_148 : f32 to vector<2x16xf32>
    %637 = arith.addf %636, %635 : vector<2x16xf32>
    %638 = arith.divf %636, %637 : vector<2x16xf32>
    %639 = vector.extract_strided_slice %618 {offsets = [0, 32], sizes = [2, 16], strides = [1, 1]} : vector<2x48xf32> to vector<2x16xf32>
    %640 = vector.extract_strided_slice %622 {offsets = [0, 32], sizes = [2, 16], strides = [1, 1]} : vector<2x48xf32> to vector<2x16xf32>
    %641 = arith.mulf %630, %640 : vector<2x16xf32>
    %642 = arith.addf %639, %641 : vector<2x16xf32>
    %643 = math.tanh %642 : vector<2x16xf32>
    %cst_149 = arith.constant 1.000000e+00 : f32
    %644 = vector.broadcast %cst_149 : f32 to vector<2x16xf32>
    %645 = arith.subf %644, %638 : vector<2x16xf32>
    %646 = arith.mulf %645, %643 : vector<2x16xf32>
    %647 = arith.mulf %638, %620 : vector<2x16xf32>
    %648 = arith.addf %646, %647 : vector<2x16xf32>
    %649 = vector.extract_strided_slice %617 {offsets = [0, 48], sizes = [2, 48], strides = [1, 1]} : vector<2x96xf32> to vector<2x48xf32>
    %650 = vector.extract_strided_slice %619 {offsets = [0, 0], sizes = [2, 16], strides = [1, 1]} : vector<2x48xf32> to vector<2x16xf32>
    %651 = vector.extract_strided_slice %649 {offsets = [0, 0], sizes = [2, 16], strides = [1, 1]} : vector<2x48xf32> to vector<2x16xf32>
    %652 = arith.addf %650, %651 : vector<2x16xf32>
    %653 = arith.negf %652 : vector<2x16xf32>
    %654 = math.exp %653 : vector<2x16xf32>
    %cst_150 = arith.constant 1.000000e+00 : f32
    %655 = vector.broadcast %cst_150 : f32 to vector<2x16xf32>
    %656 = arith.addf %655, %654 : vector<2x16xf32>
    %657 = arith.divf %655, %656 : vector<2x16xf32>
    %658 = vector.extract_strided_slice %619 {offsets = [0, 16], sizes = [2, 16], strides = [1, 1]} : vector<2x48xf32> to vector<2x16xf32>
    %659 = vector.extract_strided_slice %649 {offsets = [0, 16], sizes = [2, 16], strides = [1, 1]} : vector<2x48xf32> to vector<2x16xf32>
    %660 = arith.addf %658, %659 : vector<2x16xf32>
    %661 = arith.negf %660 : vector<2x16xf32>
    %662 = math.exp %661 : vector<2x16xf32>
    %cst_151 = arith.constant 1.000000e+00 : f32
    %663 = vector.broadcast %cst_151 : f32 to vector<2x16xf32>
    %664 = arith.addf %663, %662 : vector<2x16xf32>
    %665 = arith.divf %663, %664 : vector<2x16xf32>
    %666 = vector.extract_strided_slice %619 {offsets = [0, 32], sizes = [2, 16], strides = [1, 1]} : vector<2x48xf32> to vector<2x16xf32>
    %667 = vector.extract_strided_slice %649 {offsets = [0, 32], sizes = [2, 16], strides = [1, 1]} : vector<2x48xf32> to vector<2x16xf32>
    %668 = arith.mulf %657, %667 : vector<2x16xf32>
    %669 = arith.addf %666, %668 : vector<2x16xf32>
    %670 = math.tanh %669 : vector<2x16xf32>
    %cst_152 = arith.constant 1.000000e+00 : f32
    %671 = vector.broadcast %cst_152 : f32 to vector<2x16xf32>
    %672 = arith.subf %671, %665 : vector<2x16xf32>
    %673 = arith.mulf %672, %670 : vector<2x16xf32>
    %674 = arith.mulf %665, %621 : vector<2x16xf32>
    %675 = arith.addf %673, %674 : vector<2x16xf32>
    %c14_153 = arith.constant 14 : index
    %c0_154 = arith.constant 0 : index
    %676 = vector.load %arg2[%c14_153, %c0_154] : memref<16x1xf32, #tpu.memory_space<vmem>>, vector<2x1xf32>
    %cst_155 = arith.constant 0.000000e+00 : f32
    %677 = vector.broadcast %cst_155 : f32 to vector<2x1xf32>
    %678 = arith.cmpf ogt, %676, %677 : vector<2x1xf32>
    %c0_156 = arith.constant 0 : index
    %c0_157 = arith.constant 0 : index
    %679 = vector.load %arg2[%c0_156, %c0_157] : memref<16x1xf32, #tpu.memory_space<vmem>>, vector<2x1xf32>
    %cst_158 = arith.constant 0.000000e+00 : f32
    %680 = vector.broadcast %cst_158 : f32 to vector<2x1xf32>
    %681 = arith.cmpf ogt, %679, %680 : vector<2x1xf32>
    %cst_159 = arith.constant 0.000000e+00 : f32
    %682 = vector.shape_cast %678 : vector<2x1xi1> to vector<2x1xi1>
    %683 = vector.broadcast %682 : vector<2x1xi1> to vector<2x16xi1>
    %684 = vector.broadcast %cst_159 : f32 to vector<2x16xf32>
    %685 = arith.select %683, %648, %684 : vector<2x16xi1>, vector<2x16xf32>
    %c14_160 = arith.constant 14 : index
    %c0_161 = arith.constant 0 : index
    %686 = vector.load %arg22[%c14_160, %c0_161] : memref<16x32xf32, #tpu.memory_space<vmem>>, vector<2x16xf32>
    tpu.vector_store %arg22[%c14_160, %c0_161], %685 {strides = array<i32>} : memref<16x32xf32, #tpu.memory_space<vmem>>, vector<2x16xf32>,
    %cst_162 = arith.constant 0.000000e+00 : f32
    %687 = vector.shape_cast %681 : vector<2x1xi1> to vector<2x1xi1>
    %688 = vector.broadcast %687 : vector<2x1xi1> to vector<2x16xi1>
    %689 = vector.broadcast %cst_162 : f32 to vector<2x16xf32>
    %690 = arith.select %688, %675, %689 : vector<2x16xi1>, vector<2x16xf32>
    %c0_163 = arith.constant 0 : index
    %c16_164 = arith.constant 16 : index
    %691 = vector.load %arg22[%c0_163, %c16_164] : memref<16x32xf32, #tpu.memory_space<vmem>>, vector<2x16xf32>
    tpu.vector_store %arg22[%c0_163, %c16_164], %690 {strides = array<i32>} : memref<16x32xf32, #tpu.memory_space<vmem>>, vector<2x16xf32>,
    %692 = vector.shape_cast %678 : vector<2x1xi1> to vector<2x1xi1>
    %693 = vector.broadcast %692 : vector<2x1xi1> to vector<2x16xi1>
    %694 = arith.select %693, %648, %620 : vector<2x16xi1>, vector<2x16xf32>
    %695 = vector.shape_cast %681 : vector<2x1xi1> to vector<2x1xi1>
    %696 = vector.broadcast %695 : vector<2x1xi1> to vector<2x16xi1>
    %697 = arith.select %696, %675, %621 : vector<2x16xi1>, vector<2x16xf32>
    %698 = tpu.concatenate %694, %697 in 1 : vector<2x16xf32>, vector<2x16xf32> -> vector<2x32xf32>
    %c0_165 = arith.constant 0 : index
    %c0_166 = arith.constant 0 : index
    %699 = vector.load %arg9[%c0_165, %c0_166] : memref<32x32xf32, #tpu.memory_space<vmem>>, vector<32x32xf32>
    %cst_167 = arith.constant dense<0.000000e+00> : vector<2x32xf32>
    %700 = tpu.matmul %698, %699, %cst_167 {dimension_numbers = #tpu.dot_dimension_numbers<[1], [0], [0], [1], [0, 0, 1, 1], [], []>} : vector<2x32xf32>, vector<32x32xf32>, vector<2x32xf32> -> vector<2x32xf32>
    %c0_168 = arith.constant 0 : index
    %c0_169 = arith.constant 0 : index
    %701 = vector.load %arg10[%c0_168, %c0_169] : memref<1x32xf32, #tpu.memory_space<vmem>>, vector<1x32xf32>
    %702 = vector.broadcast %701 : vector<1x32xf32> to vector<2x32xf32>
    %703 = arith.addf %700, %702 : vector<2x32xf32>
    %704 = math.tanh %703 : vector<2x32xf32>
    %cst_170 = arith.constant dense<0.000000e+00> : vector<2x96xf32>
    %705 = tpu.matmul %704, %24, %cst_170 {dimension_numbers = #tpu.dot_dimension_numbers<[1], [0], [0], [1], [0, 0, 1, 1], [], []>} : vector<2x32xf32>, vector<32x96xf32>, vector<2x96xf32> -> vector<2x96xf32>
    %706 = vector.broadcast %25 : vector<1x96xf32> to vector<2x96xf32>
    %707 = arith.addf %705, %706 : vector<2x96xf32>
    %708 = vector.extract_strided_slice %21 {offsets = [0, 0], sizes = [2, 96], strides = [1, 1]} : vector<16x96xf32> to vector<2x96xf32>
    %709 = vector.extract_strided_slice %708 {offsets = [0, 0], sizes = [2, 32], strides = [1, 1]} : vector<2x96xf32> to vector<2x32xf32>
    %710 = vector.extract_strided_slice %707 {offsets = [0, 0], sizes = [2, 32], strides = [1, 1]} : vector<2x96xf32> to vector<2x32xf32>
    %711 = arith.addf %709, %710 : vector<2x32xf32>
    %712 = arith.negf %711 : vector<2x32xf32>
    %713 = math.exp %712 : vector<2x32xf32>
    %cst_171 = arith.constant 1.000000e+00 : f32
    %714 = vector.broadcast %cst_171 : f32 to vector<2x32xf32>
    %715 = arith.addf %714, %713 : vector<2x32xf32>
    %716 = arith.divf %714, %715 : vector<2x32xf32>
    %717 = vector.extract_strided_slice %708 {offsets = [0, 32], sizes = [2, 32], strides = [1, 1]} : vector<2x96xf32> to vector<2x32xf32>
    %718 = vector.extract_strided_slice %707 {offsets = [0, 32], sizes = [2, 32], strides = [1, 1]} : vector<2x96xf32> to vector<2x32xf32>
    %719 = arith.addf %717, %718 : vector<2x32xf32>
    %720 = arith.negf %719 : vector<2x32xf32>
    %721 = math.exp %720 : vector<2x32xf32>
    %cst_172 = arith.constant 1.000000e+00 : f32
    %722 = vector.broadcast %cst_172 : f32 to vector<2x32xf32>
    %723 = arith.addf %722, %721 : vector<2x32xf32>
    %724 = arith.divf %722, %723 : vector<2x32xf32>
    %725 = vector.extract_strided_slice %708 {offsets = [0, 64], sizes = [2, 32], strides = [1, 1]} : vector<2x96xf32> to vector<2x32xf32>
    %726 = vector.extract_strided_slice %707 {offsets = [0, 64], sizes = [2, 32], strides = [1, 1]} : vector<2x96xf32> to vector<2x32xf32>
    %727 = arith.mulf %716, %726 : vector<2x32xf32>
    %728 = arith.addf %725, %727 : vector<2x32xf32>
    %729 = math.tanh %728 : vector<2x32xf32>
    %cst_173 = arith.constant 1.000000e+00 : f32
    %730 = vector.broadcast %cst_173 : f32 to vector<2x32xf32>
    %731 = arith.subf %730, %724 : vector<2x32xf32>
    %732 = arith.mulf %731, %729 : vector<2x32xf32>
    %733 = arith.mulf %724, %704 : vector<2x32xf32>
    %734 = arith.addf %732, %733 : vector<2x32xf32>
    %c0_174 = arith.constant 0 : index
    %c0_175 = arith.constant 0 : index
    %735 = vector.load %arg3[%c0_174, %c0_175] : memref<16x1xf32, #tpu.memory_space<vmem>>, vector<2x1xf32>
    %cst_176 = arith.constant 0.000000e+00 : f32
    %736 = vector.broadcast %cst_176 : f32 to vector<2x1xf32>
    %737 = arith.cmpf ogt, %735, %736 : vector<2x1xf32>
    %cst_177 = arith.constant 0.000000e+00 : f32
    %738 = vector.shape_cast %737 : vector<2x1xi1> to vector<2x1xi1>
    %739 = vector.broadcast %738 : vector<2x1xi1> to vector<2x32xi1>
    %740 = vector.broadcast %cst_177 : f32 to vector<2x32xf32>
    %741 = arith.select %739, %734, %740 : vector<2x32xi1>, vector<2x32xf32>
    %c0_178 = arith.constant 0 : index
    %c0_179 = arith.constant 0 : index
    %742 = vector.load %arg23[%c0_178, %c0_179] : memref<16x32xf32, #tpu.memory_space<vmem>>, vector<2x32xf32>
    tpu.vector_store %arg23[%c0_178, %c0_179], %741 {strides = array<i32>} : memref<16x32xf32, #tpu.memory_space<vmem>>, vector<2x32xf32>,
    %743 = vector.shape_cast %737 : vector<2x1xi1> to vector<2x1xi1>
    %744 = vector.broadcast %743 : vector<2x1xi1> to vector<2x32xi1>
    %745 = arith.select %744, %734, %704 : vector<2x32xi1>, vector<2x32xf32>
    %cst_180 = arith.constant dense<0.000000e+00> : vector<2x96xf32>
    %746 = tpu.matmul %745, %24, %cst_180 {dimension_numbers = #tpu.dot_dimension_numbers<[1], [0], [0], [1], [0, 0, 1, 1], [], []>} : vector<2x32xf32>, vector<32x96xf32>, vector<2x96xf32> -> vector<2x96xf32>
    %747 = vector.broadcast %25 : vector<1x96xf32> to vector<2x96xf32>
    %748 = arith.addf %746, %747 : vector<2x96xf32>
    %749 = vector.extract_strided_slice %21 {offsets = [2, 0], sizes = [2, 96], strides = [1, 1]} : vector<16x96xf32> to vector<2x96xf32>
    %750 = vector.extract_strided_slice %749 {offsets = [0, 0], sizes = [2, 32], strides = [1, 1]} : vector<2x96xf32> to vector<2x32xf32>
    %751 = vector.extract_strided_slice %748 {offsets = [0, 0], sizes = [2, 32], strides = [1, 1]} : vector<2x96xf32> to vector<2x32xf32>
    %752 = arith.addf %750, %751 : vector<2x32xf32>
    %753 = arith.negf %752 : vector<2x32xf32>
    %754 = math.exp %753 : vector<2x32xf32>
    %cst_181 = arith.constant 1.000000e+00 : f32
    %755 = vector.broadcast %cst_181 : f32 to vector<2x32xf32>
    %756 = arith.addf %755, %754 : vector<2x32xf32>
    %757 = arith.divf %755, %756 : vector<2x32xf32>
    %758 = vector.extract_strided_slice %749 {offsets = [0, 32], sizes = [2, 32], strides = [1, 1]} : vector<2x96xf32> to vector<2x32xf32>
    %759 = vector.extract_strided_slice %748 {offsets = [0, 32], sizes = [2, 32], strides = [1, 1]} : vector<2x96xf32> to vector<2x32xf32>
    %760 = arith.addf %758, %759 : vector<2x32xf32>
    %761 = arith.negf %760 : vector<2x32xf32>
    %762 = math.exp %761 : vector<2x32xf32>
    %cst_182 = arith.constant 1.000000e+00 : f32
    %763 = vector.broadcast %cst_182 : f32 to vector<2x32xf32>
    %764 = arith.addf %763, %762 : vector<2x32xf32>
    %765 = arith.divf %763, %764 : vector<2x32xf32>
    %766 = vector.extract_strided_slice %749 {offsets = [0, 64], sizes = [2, 32], strides = [1, 1]} : vector<2x96xf32> to vector<2x32xf32>
    %767 = vector.extract_strided_slice %748 {offsets = [0, 64], sizes = [2, 32], strides = [1, 1]} : vector<2x96xf32> to vector<2x32xf32>
    %768 = arith.mulf %757, %767 : vector<2x32xf32>
    %769 = arith.addf %766, %768 : vector<2x32xf32>
    %770 = math.tanh %769 : vector<2x32xf32>
    %cst_183 = arith.constant 1.000000e+00 : f32
    %771 = vector.broadcast %cst_183 : f32 to vector<2x32xf32>
    %772 = arith.subf %771, %765 : vector<2x32xf32>
    %773 = arith.mulf %772, %770 : vector<2x32xf32>
    %774 = arith.mulf %765, %745 : vector<2x32xf32>
    %775 = arith.addf %773, %774 : vector<2x32xf32>
    %c2_184 = arith.constant 2 : index
    %c0_185 = arith.constant 0 : index
    %776 = vector.load %arg3[%c2_184, %c0_185] : memref<16x1xf32, #tpu.memory_space<vmem>>, vector<2x1xf32>
    %cst_186 = arith.constant 0.000000e+00 : f32
    %777 = vector.broadcast %cst_186 : f32 to vector<2x1xf32>
    %778 = arith.cmpf ogt, %776, %777 : vector<2x1xf32>
    %cst_187 = arith.constant 0.000000e+00 : f32
    %779 = vector.shape_cast %778 : vector<2x1xi1> to vector<2x1xi1>
    %780 = vector.broadcast %779 : vector<2x1xi1> to vector<2x32xi1>
    %781 = vector.broadcast %cst_187 : f32 to vector<2x32xf32>
    %782 = arith.select %780, %775, %781 : vector<2x32xi1>, vector<2x32xf32>
    %c2_188 = arith.constant 2 : index
    %c0_189 = arith.constant 0 : index
    %783 = vector.load %arg23[%c2_188, %c0_189] : memref<16x32xf32, #tpu.memory_space<vmem>>, vector<2x32xf32>
    tpu.vector_store %arg23[%c2_188, %c0_189], %782 {strides = array<i32>} : memref<16x32xf32, #tpu.memory_space<vmem>>, vector<2x32xf32>,
    %784 = vector.shape_cast %778 : vector<2x1xi1> to vector<2x1xi1>
    %785 = vector.broadcast %784 : vector<2x1xi1> to vector<2x32xi1>
    %786 = arith.select %785, %775, %745 : vector<2x32xi1>, vector<2x32xf32>
    %cst_190 = arith.constant dense<0.000000e+00> : vector<2x96xf32>
    %787 = tpu.matmul %786, %24, %cst_190 {dimension_numbers = #tpu.dot_dimension_numbers<[1], [0], [0], [1], [0, 0, 1, 1], [], []>} : vector<2x32xf32>, vector<32x96xf32>, vector<2x96xf32> -> vector<2x96xf32>
    %788 = vector.broadcast %25 : vector<1x96xf32> to vector<2x96xf32>
    %789 = arith.addf %787, %788 : vector<2x96xf32>
    %790 = vector.extract_strided_slice %21 {offsets = [4, 0], sizes = [2, 96], strides = [1, 1]} : vector<16x96xf32> to vector<2x96xf32>
    %791 = vector.extract_strided_slice %790 {offsets = [0, 0], sizes = [2, 32], strides = [1, 1]} : vector<2x96xf32> to vector<2x32xf32>
    %792 = vector.extract_strided_slice %789 {offsets = [0, 0], sizes = [2, 32], strides = [1, 1]} : vector<2x96xf32> to vector<2x32xf32>
    %793 = arith.addf %791, %792 : vector<2x32xf32>
    %794 = arith.negf %793 : vector<2x32xf32>
    %795 = math.exp %794 : vector<2x32xf32>
    %cst_191 = arith.constant 1.000000e+00 : f32
    %796 = vector.broadcast %cst_191 : f32 to vector<2x32xf32>
    %797 = arith.addf %796, %795 : vector<2x32xf32>
    %798 = arith.divf %796, %797 : vector<2x32xf32>
    %799 = vector.extract_strided_slice %790 {offsets = [0, 32], sizes = [2, 32], strides = [1, 1]} : vector<2x96xf32> to vector<2x32xf32>
    %800 = vector.extract_strided_slice %789 {offsets = [0, 32], sizes = [2, 32], strides = [1, 1]} : vector<2x96xf32> to vector<2x32xf32>
    %801 = arith.addf %799, %800 : vector<2x32xf32>
    %802 = arith.negf %801 : vector<2x32xf32>
    %803 = math.exp %802 : vector<2x32xf32>
    %cst_192 = arith.constant 1.000000e+00 : f32
    %804 = vector.broadcast %cst_192 : f32 to vector<2x32xf32>
    %805 = arith.addf %804, %803 : vector<2x32xf32>
    %806 = arith.divf %804, %805 : vector<2x32xf32>
    %807 = vector.extract_strided_slice %790 {offsets = [0, 64], sizes = [2, 32], strides = [1, 1]} : vector<2x96xf32> to vector<2x32xf32>
    %808 = vector.extract_strided_slice %789 {offsets = [0, 64], sizes = [2, 32], strides = [1, 1]} : vector<2x96xf32> to vector<2x32xf32>
    %809 = arith.mulf %798, %808 : vector<2x32xf32>
    %810 = arith.addf %807, %809 : vector<2x32xf32>
    %811 = math.tanh %810 : vector<2x32xf32>
    %cst_193 = arith.constant 1.000000e+00 : f32
    %812 = vector.broadcast %cst_193 : f32 to vector<2x32xf32>
    %813 = arith.subf %812, %806 : vector<2x32xf32>
    %814 = arith.mulf %813, %811 : vector<2x32xf32>
    %815 = arith.mulf %806, %786 : vector<2x32xf32>
    %816 = arith.addf %814, %815 : vector<2x32xf32>
    %c4_194 = arith.constant 4 : index
    %c0_195 = arith.constant 0 : index
    %817 = vector.load %arg3[%c4_194, %c0_195] : memref<16x1xf32, #tpu.memory_space<vmem>>, vector<2x1xf32>
    %cst_196 = arith.constant 0.000000e+00 : f32
    %818 = vector.broadcast %cst_196 : f32 to vector<2x1xf32>
    %819 = arith.cmpf ogt, %817, %818 : vector<2x1xf32>
    %cst_197 = arith.constant 0.000000e+00 : f32
    %820 = vector.shape_cast %819 : vector<2x1xi1> to vector<2x1xi1>
    %821 = vector.broadcast %820 : vector<2x1xi1> to vector<2x32xi1>
    %822 = vector.broadcast %cst_197 : f32 to vector<2x32xf32>
    %823 = arith.select %821, %816, %822 : vector<2x32xi1>, vector<2x32xf32>
    %c4_198 = arith.constant 4 : index
    %c0_199 = arith.constant 0 : index
    %824 = vector.load %arg23[%c4_198, %c0_199] : memref<16x32xf32, #tpu.memory_space<vmem>>, vector<2x32xf32>
    tpu.vector_store %arg23[%c4_198, %c0_199], %823 {strides = array<i32>} : memref<16x32xf32, #tpu.memory_space<vmem>>, vector<2x32xf32>,
    %825 = vector.shape_cast %819 : vector<2x1xi1> to vector<2x1xi1>
    %826 = vector.broadcast %825 : vector<2x1xi1> to vector<2x32xi1>
    %827 = arith.select %826, %816, %786 : vector<2x32xi1>, vector<2x32xf32>
    %cst_200 = arith.constant dense<0.000000e+00> : vector<2x96xf32>
    %828 = tpu.matmul %827, %24, %cst_200 {dimension_numbers = #tpu.dot_dimension_numbers<[1], [0], [0], [1], [0, 0, 1, 1], [], []>} : vector<2x32xf32>, vector<32x96xf32>, vector<2x96xf32> -> vector<2x96xf32>
    %829 = vector.broadcast %25 : vector<1x96xf32> to vector<2x96xf32>
    %830 = arith.addf %828, %829 : vector<2x96xf32>
    %831 = vector.extract_strided_slice %21 {offsets = [6, 0], sizes = [2, 96], strides = [1, 1]} : vector<16x96xf32> to vector<2x96xf32>
    %832 = vector.extract_strided_slice %831 {offsets = [0, 0], sizes = [2, 32], strides = [1, 1]} : vector<2x96xf32> to vector<2x32xf32>
    %833 = vector.extract_strided_slice %830 {offsets = [0, 0], sizes = [2, 32], strides = [1, 1]} : vector<2x96xf32> to vector<2x32xf32>
    %834 = arith.addf %832, %833 : vector<2x32xf32>
    %835 = arith.negf %834 : vector<2x32xf32>
    %836 = math.exp %835 : vector<2x32xf32>
    %cst_201 = arith.constant 1.000000e+00 : f32
    %837 = vector.broadcast %cst_201 : f32 to vector<2x32xf32>
    %838 = arith.addf %837, %836 : vector<2x32xf32>
    %839 = arith.divf %837, %838 : vector<2x32xf32>
    %840 = vector.extract_strided_slice %831 {offsets = [0, 32], sizes = [2, 32], strides = [1, 1]} : vector<2x96xf32> to vector<2x32xf32>
    %841 = vector.extract_strided_slice %830 {offsets = [0, 32], sizes = [2, 32], strides = [1, 1]} : vector<2x96xf32> to vector<2x32xf32>
    %842 = arith.addf %840, %841 : vector<2x32xf32>
    %843 = arith.negf %842 : vector<2x32xf32>
    %844 = math.exp %843 : vector<2x32xf32>
    %cst_202 = arith.constant 1.000000e+00 : f32
    %845 = vector.broadcast %cst_202 : f32 to vector<2x32xf32>
    %846 = arith.addf %845, %844 : vector<2x32xf32>
    %847 = arith.divf %845, %846 : vector<2x32xf32>
    %848 = vector.extract_strided_slice %831 {offsets = [0, 64], sizes = [2, 32], strides = [1, 1]} : vector<2x96xf32> to vector<2x32xf32>
    %849 = vector.extract_strided_slice %830 {offsets = [0, 64], sizes = [2, 32], strides = [1, 1]} : vector<2x96xf32> to vector<2x32xf32>
    %850 = arith.mulf %839, %849 : vector<2x32xf32>
    %851 = arith.addf %848, %850 : vector<2x32xf32>
    %852 = math.tanh %851 : vector<2x32xf32>
    %cst_203 = arith.constant 1.000000e+00 : f32
    %853 = vector.broadcast %cst_203 : f32 to vector<2x32xf32>
    %854 = arith.subf %853, %847 : vector<2x32xf32>
    %855 = arith.mulf %854, %852 : vector<2x32xf32>
    %856 = arith.mulf %847, %827 : vector<2x32xf32>
    %857 = arith.addf %855, %856 : vector<2x32xf32>
    %c6_204 = arith.constant 6 : index
    %c0_205 = arith.constant 0 : index
    %858 = vector.load %arg3[%c6_204, %c0_205] : memref<16x1xf32, #tpu.memory_space<vmem>>, vector<2x1xf32>
    %cst_206 = arith.constant 0.000000e+00 : f32
    %859 = vector.broadcast %cst_206 : f32 to vector<2x1xf32>
    %860 = arith.cmpf ogt, %858, %859 : vector<2x1xf32>
    %cst_207 = arith.constant 0.000000e+00 : f32
    %861 = vector.shape_cast %860 : vector<2x1xi1> to vector<2x1xi1>
    %862 = vector.broadcast %861 : vector<2x1xi1> to vector<2x32xi1>
    %863 = vector.broadcast %cst_207 : f32 to vector<2x32xf32>
    %864 = arith.select %862, %857, %863 : vector<2x32xi1>, vector<2x32xf32>
    %c6_208 = arith.constant 6 : index
    %c0_209 = arith.constant 0 : index
    %865 = vector.load %arg23[%c6_208, %c0_209] : memref<16x32xf32, #tpu.memory_space<vmem>>, vector<2x32xf32>
    tpu.vector_store %arg23[%c6_208, %c0_209], %864 {strides = array<i32>} : memref<16x32xf32, #tpu.memory_space<vmem>>, vector<2x32xf32>,
    %866 = vector.shape_cast %860 : vector<2x1xi1> to vector<2x1xi1>
    %867 = vector.broadcast %866 : vector<2x1xi1> to vector<2x32xi1>
    %868 = arith.select %867, %857, %827 : vector<2x32xi1>, vector<2x32xf32>
    %cst_210 = arith.constant dense<0.000000e+00> : vector<2x96xf32>
    %869 = tpu.matmul %868, %24, %cst_210 {dimension_numbers = #tpu.dot_dimension_numbers<[1], [0], [0], [1], [0, 0, 1, 1], [], []>} : vector<2x32xf32>, vector<32x96xf32>, vector<2x96xf32> -> vector<2x96xf32>
    %870 = vector.broadcast %25 : vector<1x96xf32> to vector<2x96xf32>
    %871 = arith.addf %869, %870 : vector<2x96xf32>
    %872 = vector.extract_strided_slice %21 {offsets = [8, 0], sizes = [2, 96], strides = [1, 1]} : vector<16x96xf32> to vector<2x96xf32>
    %873 = vector.extract_strided_slice %872 {offsets = [0, 0], sizes = [2, 32], strides = [1, 1]} : vector<2x96xf32> to vector<2x32xf32>
    %874 = vector.extract_strided_slice %871 {offsets = [0, 0], sizes = [2, 32], strides = [1, 1]} : vector<2x96xf32> to vector<2x32xf32>
    %875 = arith.addf %873, %874 : vector<2x32xf32>
    %876 = arith.negf %875 : vector<2x32xf32>
    %877 = math.exp %876 : vector<2x32xf32>
    %cst_211 = arith.constant 1.000000e+00 : f32
    %878 = vector.broadcast %cst_211 : f32 to vector<2x32xf32>
    %879 = arith.addf %878, %877 : vector<2x32xf32>
    %880 = arith.divf %878, %879 : vector<2x32xf32>
    %881 = vector.extract_strided_slice %872 {offsets = [0, 32], sizes = [2, 32], strides = [1, 1]} : vector<2x96xf32> to vector<2x32xf32>
    %882 = vector.extract_strided_slice %871 {offsets = [0, 32], sizes = [2, 32], strides = [1, 1]} : vector<2x96xf32> to vector<2x32xf32>
    %883 = arith.addf %881, %882 : vector<2x32xf32>
    %884 = arith.negf %883 : vector<2x32xf32>
    %885 = math.exp %884 : vector<2x32xf32>
    %cst_212 = arith.constant 1.000000e+00 : f32
    %886 = vector.broadcast %cst_212 : f32 to vector<2x32xf32>
    %887 = arith.addf %886, %885 : vector<2x32xf32>
    %888 = arith.divf %886, %887 : vector<2x32xf32>
    %889 = vector.extract_strided_slice %872 {offsets = [0, 64], sizes = [2, 32], strides = [1, 1]} : vector<2x96xf32> to vector<2x32xf32>
    %890 = vector.extract_strided_slice %871 {offsets = [0, 64], sizes = [2, 32], strides = [1, 1]} : vector<2x96xf32> to vector<2x32xf32>
    %891 = arith.mulf %880, %890 : vector<2x32xf32>
    %892 = arith.addf %889, %891 : vector<2x32xf32>
    %893 = math.tanh %892 : vector<2x32xf32>
    %cst_213 = arith.constant 1.000000e+00 : f32
    %894 = vector.broadcast %cst_213 : f32 to vector<2x32xf32>
    %895 = arith.subf %894, %888 : vector<2x32xf32>
    %896 = arith.mulf %895, %893 : vector<2x32xf32>
    %897 = arith.mulf %888, %868 : vector<2x32xf32>
    %898 = arith.addf %896, %897 : vector<2x32xf32>
    %c8_214 = arith.constant 8 : index
    %c0_215 = arith.constant 0 : index
    %899 = vector.load %arg3[%c8_214, %c0_215] : memref<16x1xf32, #tpu.memory_space<vmem>>, vector<2x1xf32>
    %cst_216 = arith.constant 0.000000e+00 : f32
    %900 = vector.broadcast %cst_216 : f32 to vector<2x1xf32>
    %901 = arith.cmpf ogt, %899, %900 : vector<2x1xf32>
    %cst_217 = arith.constant 0.000000e+00 : f32
    %902 = vector.shape_cast %901 : vector<2x1xi1> to vector<2x1xi1>
    %903 = vector.broadcast %902 : vector<2x1xi1> to vector<2x32xi1>
    %904 = vector.broadcast %cst_217 : f32 to vector<2x32xf32>
    %905 = arith.select %903, %898, %904 : vector<2x32xi1>, vector<2x32xf32>
    %c8_218 = arith.constant 8 : index
    %c0_219 = arith.constant 0 : index
    %906 = vector.load %arg23[%c8_218, %c0_219] : memref<16x32xf32, #tpu.memory_space<vmem>>, vector<2x32xf32>
    tpu.vector_store %arg23[%c8_218, %c0_219], %905 {strides = array<i32>} : memref<16x32xf32, #tpu.memory_space<vmem>>, vector<2x32xf32>,
    %907 = vector.shape_cast %901 : vector<2x1xi1> to vector<2x1xi1>
    %908 = vector.broadcast %907 : vector<2x1xi1> to vector<2x32xi1>
    %909 = arith.select %908, %898, %868 : vector<2x32xi1>, vector<2x32xf32>
    %cst_220 = arith.constant dense<0.000000e+00> : vector<2x96xf32>
    %910 = tpu.matmul %909, %24, %cst_220 {dimension_numbers = #tpu.dot_dimension_numbers<[1], [0], [0], [1], [0, 0, 1, 1], [], []>} : vector<2x32xf32>, vector<32x96xf32>, vector<2x96xf32> -> vector<2x96xf32>
    %911 = vector.broadcast %25 : vector<1x96xf32> to vector<2x96xf32>
    %912 = arith.addf %910, %911 : vector<2x96xf32>
    %913 = vector.extract_strided_slice %21 {offsets = [10, 0], sizes = [2, 96], strides = [1, 1]} : vector<16x96xf32> to vector<2x96xf32>
    %914 = vector.extract_strided_slice %913 {offsets = [0, 0], sizes = [2, 32], strides = [1, 1]} : vector<2x96xf32> to vector<2x32xf32>
    %915 = vector.extract_strided_slice %912 {offsets = [0, 0], sizes = [2, 32], strides = [1, 1]} : vector<2x96xf32> to vector<2x32xf32>
    %916 = arith.addf %914, %915 : vector<2x32xf32>
    %917 = arith.negf %916 : vector<2x32xf32>
    %918 = math.exp %917 : vector<2x32xf32>
    %cst_221 = arith.constant 1.000000e+00 : f32
    %919 = vector.broadcast %cst_221 : f32 to vector<2x32xf32>
    %920 = arith.addf %919, %918 : vector<2x32xf32>
    %921 = arith.divf %919, %920 : vector<2x32xf32>
    %922 = vector.extract_strided_slice %913 {offsets = [0, 32], sizes = [2, 32], strides = [1, 1]} : vector<2x96xf32> to vector<2x32xf32>
    %923 = vector.extract_strided_slice %912 {offsets = [0, 32], sizes = [2, 32], strides = [1, 1]} : vector<2x96xf32> to vector<2x32xf32>
    %924 = arith.addf %922, %923 : vector<2x32xf32>
    %925 = arith.negf %924 : vector<2x32xf32>
    %926 = math.exp %925 : vector<2x32xf32>
    %cst_222 = arith.constant 1.000000e+00 : f32
    %927 = vector.broadcast %cst_222 : f32 to vector<2x32xf32>
    %928 = arith.addf %927, %926 : vector<2x32xf32>
    %929 = arith.divf %927, %928 : vector<2x32xf32>
    %930 = vector.extract_strided_slice %913 {offsets = [0, 64], sizes = [2, 32], strides = [1, 1]} : vector<2x96xf32> to vector<2x32xf32>
    %931 = vector.extract_strided_slice %912 {offsets = [0, 64], sizes = [2, 32], strides = [1, 1]} : vector<2x96xf32> to vector<2x32xf32>
    %932 = arith.mulf %921, %931 : vector<2x32xf32>
    %933 = arith.addf %930, %932 : vector<2x32xf32>
    %934 = math.tanh %933 : vector<2x32xf32>
    %cst_223 = arith.constant 1.000000e+00 : f32
    %935 = vector.broadcast %cst_223 : f32 to vector<2x32xf32>
    %936 = arith.subf %935, %929 : vector<2x32xf32>
    %937 = arith.mulf %936, %934 : vector<2x32xf32>
    %938 = arith.mulf %929, %909 : vector<2x32xf32>
    %939 = arith.addf %937, %938 : vector<2x32xf32>
    %c10_224 = arith.constant 10 : index
    %c0_225 = arith.constant 0 : index
    %940 = vector.load %arg3[%c10_224, %c0_225] : memref<16x1xf32, #tpu.memory_space<vmem>>, vector<2x1xf32>
    %cst_226 = arith.constant 0.000000e+00 : f32
    %941 = vector.broadcast %cst_226 : f32 to vector<2x1xf32>
    %942 = arith.cmpf ogt, %940, %941 : vector<2x1xf32>
    %cst_227 = arith.constant 0.000000e+00 : f32
    %943 = vector.shape_cast %942 : vector<2x1xi1> to vector<2x1xi1>
    %944 = vector.broadcast %943 : vector<2x1xi1> to vector<2x32xi1>
    %945 = vector.broadcast %cst_227 : f32 to vector<2x32xf32>
    %946 = arith.select %944, %939, %945 : vector<2x32xi1>, vector<2x32xf32>
    %c10_228 = arith.constant 10 : index
    %c0_229 = arith.constant 0 : index
    %947 = vector.load %arg23[%c10_228, %c0_229] : memref<16x32xf32, #tpu.memory_space<vmem>>, vector<2x32xf32>
    tpu.vector_store %arg23[%c10_228, %c0_229], %946 {strides = array<i32>} : memref<16x32xf32, #tpu.memory_space<vmem>>, vector<2x32xf32>,
    %948 = vector.shape_cast %942 : vector<2x1xi1> to vector<2x1xi1>
    %949 = vector.broadcast %948 : vector<2x1xi1> to vector<2x32xi1>
    %950 = arith.select %949, %939, %909 : vector<2x32xi1>, vector<2x32xf32>
    %cst_230 = arith.constant dense<0.000000e+00> : vector<2x96xf32>
    %951 = tpu.matmul %950, %24, %cst_230 {dimension_numbers = #tpu.dot_dimension_numbers<[1], [0], [0], [1], [0, 0, 1, 1], [], []>} : vector<2x32xf32>, vector<32x96xf32>, vector<2x96xf32> -> vector<2x96xf32>
    %952 = vector.broadcast %25 : vector<1x96xf32> to vector<2x96xf32>
    %953 = arith.addf %951, %952 : vector<2x96xf32>
    %954 = vector.extract_strided_slice %21 {offsets = [12, 0], sizes = [2, 96], strides = [1, 1]} : vector<16x96xf32> to vector<2x96xf32>
    %955 = vector.extract_strided_slice %954 {offsets = [0, 0], sizes = [2, 32], strides = [1, 1]} : vector<2x96xf32> to vector<2x32xf32>
    %956 = vector.extract_strided_slice %953 {offsets = [0, 0], sizes = [2, 32], strides = [1, 1]} : vector<2x96xf32> to vector<2x32xf32>
    %957 = arith.addf %955, %956 : vector<2x32xf32>
    %958 = arith.negf %957 : vector<2x32xf32>
    %959 = math.exp %958 : vector<2x32xf32>
    %cst_231 = arith.constant 1.000000e+00 : f32
    %960 = vector.broadcast %cst_231 : f32 to vector<2x32xf32>
    %961 = arith.addf %960, %959 : vector<2x32xf32>
    %962 = arith.divf %960, %961 : vector<2x32xf32>
    %963 = vector.extract_strided_slice %954 {offsets = [0, 32], sizes = [2, 32], strides = [1, 1]} : vector<2x96xf32> to vector<2x32xf32>
    %964 = vector.extract_strided_slice %953 {offsets = [0, 32], sizes = [2, 32], strides = [1, 1]} : vector<2x96xf32> to vector<2x32xf32>
    %965 = arith.addf %963, %964 : vector<2x32xf32>
    %966 = arith.negf %965 : vector<2x32xf32>
    %967 = math.exp %966 : vector<2x32xf32>
    %cst_232 = arith.constant 1.000000e+00 : f32
    %968 = vector.broadcast %cst_232 : f32 to vector<2x32xf32>
    %969 = arith.addf %968, %967 : vector<2x32xf32>
    %970 = arith.divf %968, %969 : vector<2x32xf32>
    %971 = vector.extract_strided_slice %954 {offsets = [0, 64], sizes = [2, 32], strides = [1, 1]} : vector<2x96xf32> to vector<2x32xf32>
    %972 = vector.extract_strided_slice %953 {offsets = [0, 64], sizes = [2, 32], strides = [1, 1]} : vector<2x96xf32> to vector<2x32xf32>
    %973 = arith.mulf %962, %972 : vector<2x32xf32>
    %974 = arith.addf %971, %973 : vector<2x32xf32>
    %975 = math.tanh %974 : vector<2x32xf32>
    %cst_233 = arith.constant 1.000000e+00 : f32
    %976 = vector.broadcast %cst_233 : f32 to vector<2x32xf32>
    %977 = arith.subf %976, %970 : vector<2x32xf32>
    %978 = arith.mulf %977, %975 : vector<2x32xf32>
    %979 = arith.mulf %970, %950 : vector<2x32xf32>
    %980 = arith.addf %978, %979 : vector<2x32xf32>
    %c12_234 = arith.constant 12 : index
    %c0_235 = arith.constant 0 : index
    %981 = vector.load %arg3[%c12_234, %c0_235] : memref<16x1xf32, #tpu.memory_space<vmem>>, vector<2x1xf32>
    %cst_236 = arith.constant 0.000000e+00 : f32
    %982 = vector.broadcast %cst_236 : f32 to vector<2x1xf32>
    %983 = arith.cmpf ogt, %981, %982 : vector<2x1xf32>
    %cst_237 = arith.constant 0.000000e+00 : f32
    %984 = vector.shape_cast %983 : vector<2x1xi1> to vector<2x1xi1>
    %985 = vector.broadcast %984 : vector<2x1xi1> to vector<2x32xi1>
    %986 = vector.broadcast %cst_237 : f32 to vector<2x32xf32>
    %987 = arith.select %985, %980, %986 : vector<2x32xi1>, vector<2x32xf32>
    %c12_238 = arith.constant 12 : index
    %c0_239 = arith.constant 0 : index
    %988 = vector.load %arg23[%c12_238, %c0_239] : memref<16x32xf32, #tpu.memory_space<vmem>>, vector<2x32xf32>
    tpu.vector_store %arg23[%c12_238, %c0_239], %987 {strides = array<i32>} : memref<16x32xf32, #tpu.memory_space<vmem>>, vector<2x32xf32>,
    %989 = vector.shape_cast %983 : vector<2x1xi1> to vector<2x1xi1>
    %990 = vector.broadcast %989 : vector<2x1xi1> to vector<2x32xi1>
    %991 = arith.select %990, %980, %950 : vector<2x32xi1>, vector<2x32xf32>
    %cst_240 = arith.constant dense<0.000000e+00> : vector<2x96xf32>
    %992 = tpu.matmul %991, %24, %cst_240 {dimension_numbers = #tpu.dot_dimension_numbers<[1], [0], [0], [1], [0, 0, 1, 1], [], []>} : vector<2x32xf32>, vector<32x96xf32>, vector<2x96xf32> -> vector<2x96xf32>
    %993 = vector.broadcast %25 : vector<1x96xf32> to vector<2x96xf32>
    %994 = arith.addf %992, %993 : vector<2x96xf32>
    %995 = vector.extract_strided_slice %21 {offsets = [14, 0], sizes = [2, 96], strides = [1, 1]} : vector<16x96xf32> to vector<2x96xf32>
    %996 = vector.extract_strided_slice %995 {offsets = [0, 0], sizes = [2, 32], strides = [1, 1]} : vector<2x96xf32> to vector<2x32xf32>
    %997 = vector.extract_strided_slice %994 {offsets = [0, 0], sizes = [2, 32], strides = [1, 1]} : vector<2x96xf32> to vector<2x32xf32>
    %998 = arith.addf %996, %997 : vector<2x32xf32>
    %999 = arith.negf %998 : vector<2x32xf32>
    %1000 = math.exp %999 : vector<2x32xf32>
    %cst_241 = arith.constant 1.000000e+00 : f32
    %1001 = vector.broadcast %cst_241 : f32 to vector<2x32xf32>
    %1002 = arith.addf %1001, %1000 : vector<2x32xf32>
    %1003 = arith.divf %1001, %1002 : vector<2x32xf32>
    %1004 = vector.extract_strided_slice %995 {offsets = [0, 32], sizes = [2, 32], strides = [1, 1]} : vector<2x96xf32> to vector<2x32xf32>
    %1005 = vector.extract_strided_slice %994 {offsets = [0, 32], sizes = [2, 32], strides = [1, 1]} : vector<2x96xf32> to vector<2x32xf32>
    %1006 = arith.addf %1004, %1005 : vector<2x32xf32>
    %1007 = arith.negf %1006 : vector<2x32xf32>
    %1008 = math.exp %1007 : vector<2x32xf32>
    %cst_242 = arith.constant 1.000000e+00 : f32
    %1009 = vector.broadcast %cst_242 : f32 to vector<2x32xf32>
    %1010 = arith.addf %1009, %1008 : vector<2x32xf32>
    %1011 = arith.divf %1009, %1010 : vector<2x32xf32>
    %1012 = vector.extract_strided_slice %995 {offsets = [0, 64], sizes = [2, 32], strides = [1, 1]} : vector<2x96xf32> to vector<2x32xf32>
    %1013 = vector.extract_strided_slice %994 {offsets = [0, 64], sizes = [2, 32], strides = [1, 1]} : vector<2x96xf32> to vector<2x32xf32>
    %1014 = arith.mulf %1003, %1013 : vector<2x32xf32>
    %1015 = arith.addf %1012, %1014 : vector<2x32xf32>
    %1016 = math.tanh %1015 : vector<2x32xf32>
    %cst_243 = arith.constant 1.000000e+00 : f32
    %1017 = vector.broadcast %cst_243 : f32 to vector<2x32xf32>
    %1018 = arith.subf %1017, %1011 : vector<2x32xf32>
    %1019 = arith.mulf %1018, %1016 : vector<2x32xf32>
    %1020 = arith.mulf %1011, %991 : vector<2x32xf32>
    %1021 = arith.addf %1019, %1020 : vector<2x32xf32>
    %c14_244 = arith.constant 14 : index
    %c0_245 = arith.constant 0 : index
    %1022 = vector.load %arg3[%c14_244, %c0_245] : memref<16x1xf32, #tpu.memory_space<vmem>>, vector<2x1xf32>
    %cst_246 = arith.constant 0.000000e+00 : f32
    %1023 = vector.broadcast %cst_246 : f32 to vector<2x1xf32>
    %1024 = arith.cmpf ogt, %1022, %1023 : vector<2x1xf32>
    %cst_247 = arith.constant 0.000000e+00 : f32
    %1025 = vector.shape_cast %1024 : vector<2x1xi1> to vector<2x1xi1>
    %1026 = vector.broadcast %1025 : vector<2x1xi1> to vector<2x32xi1>
    %1027 = vector.broadcast %cst_247 : f32 to vector<2x32xf32>
    %1028 = arith.select %1026, %1021, %1027 : vector<2x32xi1>, vector<2x32xf32>
    %c14_248 = arith.constant 14 : index
    %c0_249 = arith.constant 0 : index
    %1029 = vector.load %arg23[%c14_248, %c0_249] : memref<16x32xf32, #tpu.memory_space<vmem>>, vector<2x32xf32>
    tpu.vector_store %arg23[%c14_248, %c0_249], %1028 {strides = array<i32>} : memref<16x32xf32, #tpu.memory_space<vmem>>, vector<2x32xf32>,
    %c0_250 = arith.constant 0 : index
    %c0_251 = arith.constant 0 : index
    %1030 = vector.load %arg22[%c0_250, %c0_251] : memref<16x32xf32, #tpu.memory_space<vmem>>, vector<16x32xf32>
    %c0_252 = arith.constant 0 : index
    %c0_253 = arith.constant 0 : index
    %1031 = vector.load %arg23[%c0_252, %c0_253] : memref<16x32xf32, #tpu.memory_space<vmem>>, vector<16x32xf32>
    %c0_254 = arith.constant 0 : index
    %c0_255 = arith.constant 0 : index
    %1032 = vector.load %arg4[%c0_254, %c0_255] : memref<16x16xf32, #tpu.memory_space<vmem>>, vector<16x16xf32>
    %c0_256 = arith.constant 0 : index
    %c0_257 = arith.constant 0 : index
    %1033 = vector.load %arg15[%c0_256, %c0_257] : memref<32x32xf32, #tpu.memory_space<vmem>>, vector<32x32xf32>
    %cst_258 = arith.constant dense<0.000000e+00> : vector<16x32xf32>
    %1034 = tpu.matmul %1030, %1033, %cst_258 {dimension_numbers = #tpu.dot_dimension_numbers<[1], [0], [0], [1], [0, 0, 1, 1], [], []>} : vector<16x32xf32>, vector<32x32xf32>, vector<16x32xf32> -> vector<16x32xf32>
    %cst_259 = arith.constant dense<0.000000e+00> : vector<16x16xf32>
    %1035 = tpu.matmul %1031, %1034, %cst_259 {dimension_numbers = #tpu.dot_dimension_numbers<[1], [1], [0], [0], [0, 0, 1, 0], [], []>} : vector<16x32xf32>, vector<16x32xf32>, vector<16x16xf32> -> vector<16x16xf32>
    %cst_260 = arith.constant 0.000000e+00 : f32
    %1036 = vector.broadcast %cst_260 : f32 to vector<16x16xf32>
    %1037 = arith.cmpf oeq, %1032, %1036 : vector<16x16xf32>
    %1038 = arith.select %1037, %1035, %1032 : vector<16x16xi1>, vector<16x16xf32>
    %cst_261 = arith.constant dense<0xFF800000> : vector<16xf32>
    %1039 = vector.multi_reduction <maximumf>, %1038, %cst_261 [1] : vector<16x16xf32> to vector<16xf32>
    %1040 = vector.shape_cast %1039 : vector<16xf32> to vector<16x1xf32>
    %1041 = vector.broadcast %1040 : vector<16x1xf32> to vector<16x16xf32>
    %1042 = arith.subf %1038, %1041 : vector<16x16xf32>
    %1043 = math.exp %1042 : vector<16x16xf32>
    %cst_262 = arith.constant dense<0.000000e+00> : vector<16xf32>
    %1044 = vector.multi_reduction <add>, %1043, %cst_262 [1] : vector<16x16xf32> to vector<16xf32>
    %1045 = vector.shape_cast %1044 : vector<16xf32> to vector<16x1xf32>
    %1046 = vector.broadcast %1045 : vector<16x1xf32> to vector<16x16xf32>
    %1047 = arith.divf %1043, %1046 : vector<16x16xf32>
    %cst_263 = arith.constant dense<0.000000e+00> : vector<16x32xf32>
    %1048 = tpu.matmul %1047, %1030, %cst_263 {dimension_numbers = #tpu.dot_dimension_numbers<[1], [0], [0], [1], [0, 0, 1, 1], [], []>} : vector<16x16xf32>, vector<16x32xf32>, vector<16x32xf32> -> vector<16x32xf32>
    %1049 = tpu.concatenate %1048, %1031 in 1 : vector<16x32xf32>, vector<16x32xf32> -> vector<16x64xf32>
    %c0_264 = arith.constant 0 : index
    %c0_265 = arith.constant 0 : index
    %1050 = vector.load %arg16[%c0_264, %c0_265] : memref<64x32xf32, #tpu.memory_space<vmem>>, vector<64x32xf32>
    %cst_266 = arith.constant dense<0.000000e+00> : vector<16x32xf32>
    %1051 = tpu.matmul %1049, %1050, %cst_266 {dimension_numbers = #tpu.dot_dimension_numbers<[1], [0], [0], [1], [0, 0, 1, 1], [], []>} : vector<16x64xf32>, vector<64x32xf32>, vector<16x32xf32> -> vector<16x32xf32>
    %c0_267 = arith.constant 0 : index
    %c0_268 = arith.constant 0 : index
    %1052 = vector.load %arg17[%c0_267, %c0_268] : memref<1x32xf32, #tpu.memory_space<vmem>>, vector<1x32xf32>
    %1053 = vector.broadcast %1052 : vector<1x32xf32> to vector<16x32xf32>
    %1054 = arith.addf %1051, %1053 : vector<16x32xf32>
    %1055 = math.tanh %1054 : vector<16x32xf32>
    %c0_269 = arith.constant 0 : index
    %c0_270 = arith.constant 0 : index
    %1056 = vector.load %arg18[%c0_269, %c0_270] : memref<32x32xf32, #tpu.memory_space<vmem>>, vector<32x32xf32>
    %cst_271 = arith.constant dense<0.000000e+00> : vector<16x32xf32>
    %1057 = tpu.matmul %1055, %1056, %cst_271 {dimension_numbers = #tpu.dot_dimension_numbers<[1], [0], [0], [1], [0, 0, 1, 1], [], []>} : vector<16x32xf32>, vector<32x32xf32>, vector<16x32xf32> -> vector<16x32xf32>
    %c0_272 = arith.constant 0 : index
    %c0_273 = arith.constant 0 : index
    %1058 = vector.load %arg19[%c0_272, %c0_273] : memref<1x32xf32, #tpu.memory_space<vmem>>, vector<1x32xf32>
    %1059 = vector.broadcast %1058 : vector<1x32xf32> to vector<16x32xf32>
    %1060 = arith.addf %1057, %1059 : vector<16x32xf32>
    %cst_274 = arith.constant dense<0xFF800000> : vector<16xf32>
    %1061 = vector.multi_reduction <maximumf>, %1060, %cst_274 [1] : vector<16x32xf32> to vector<16xf32>
    %1062 = vector.shape_cast %1061 : vector<16xf32> to vector<16x1xf32>
    %1063 = vector.broadcast %1062 : vector<16x1xf32> to vector<16x32xf32>
    %1064 = arith.subf %1060, %1063 : vector<16x32xf32>
    %1065 = math.exp %1064 : vector<16x32xf32>
    %cst_275 = arith.constant dense<0.000000e+00> : vector<16xf32>
    %1066 = vector.multi_reduction <add>, %1065, %cst_275 [1] : vector<16x32xf32> to vector<16xf32>
    %1067 = vector.shape_cast %1066 : vector<16xf32> to vector<16x1xf32>
    %1068 = math.log %1067 : vector<16x1xf32>
    %1069 = arith.addf %1062, %1068 : vector<16x1xf32>
    %1070 = vector.broadcast %1069 : vector<16x1xf32> to vector<16x32xf32>
    %1071 = arith.subf %1060, %1070 : vector<16x32xf32>
    %c0_276 = arith.constant 0 : index
    %c0_277 = arith.constant 0 : index
    %1072 = vector.load %arg20[%c0_276, %c0_277] : memref<16x32xf32, #tpu.memory_space<vmem>>, vector<16x32xf32>
    tpu.vector_store %arg20[%c0_276, %c0_277], %1071 {strides = array<i32>} : memref<16x32xf32, #tpu.memory_space<vmem>>, vector<16x32xf32>,
    %c0_278 = arith.constant 0 : index
    %c0_279 = arith.constant 0 : index
    %1073 = vector.load %arg21[%c0_278, %c0_279] : memref<16x16xf32, #tpu.memory_space<vmem>>, vector<16x16xf32>
    tpu.vector_store %arg21[%c0_278, %c0_279], %1047 {strides = array<i32>} : memref<16x16xf32, #tpu.memory_space<vmem>>, vector<16x16xf32>,
    return
  }
}

</mosaic_0001>

<llo_original>
// kernel: seq2seq_forward.1
$region0: #{seq2seq_forward.1}
  #allocation0 [shape = 'u32[]', space=smem, size = 0x4, offset = 0x4, fixed_abs, tag = 'smem constant byte address 0x4 - core index']
  #allocation1 [shape = 'u32[144,128]{1,0:T(1,128)}', space=vmem, size = 0x12000, scoped, tag = 'internal scratch']
  #allocation2 [shape = 'f32[16,32]{1,0:T(8,128)}', space=vmem, size = 0x2000, scoped, tag = 'scratch operand']
  #allocation3 [shape = 'f32[16,32]{1,0:T(8,128)}', space=vmem, size = 0x2000, scoped, tag = 'scratch operand']
  %s0 = inlined_call_operand.vmem [shape: s32[16,1], index: 0, kind: input, shape index: {}]
  %s1 = inlined_call_operand.vmem [shape: s32[16,1], index: 1, kind: input, shape index: {}]
  %s2 = inlined_call_operand.vmem [shape: f32[16,1], index: 2, kind: input, shape index: {}]
  %s3 = inlined_call_operand.vmem [shape: f32[16,1], index: 3, kind: input, shape index: {}]
  %s4 = inlined_call_operand.vmem [shape: f32[16,16], index: 4, kind: input, shape index: {}]
  %s5 = inlined_call_operand.vmem [shape: f32[24,96], index: 5, kind: input, shape index: {}]
  %s6 = inlined_call_operand.vmem [shape: f32[1,96], index: 6, kind: input, shape index: {}]
  %s7 = inlined_call_operand.vmem [shape: f32[32,96], index: 7, kind: input, shape index: {}]
  %s8 = inlined_call_operand.vmem [shape: f32[1,96], index: 8, kind: input, shape index: {}]
  %s9 = inlined_call_operand.vmem [shape: f32[32,32], index: 9, kind: input, shape index: {}]
  %s10 = inlined_call_operand.hbm [shape: f32[1,32], index: 10, kind: input, shape index: {}]
  %s11 = inlined_call_operand.vmem [shape: f32[32,96], index: 11, kind: input, shape index: {}]
  %s12 = inlined_call_operand.hbm [shape: f32[1,96], index: 12, kind: input, shape index: {}]
  %s13 = inlined_call_operand.vmem [shape: f32[32,96], index: 13, kind: input, shape index: {}]
  %s14 = inlined_call_operand.hbm [shape: f32[1,96], index: 14, kind: input, shape index: {}]
  %s15 = inlined_call_operand.hbm [shape: f32[32,32], index: 15, kind: input, shape index: {}]
  %s16 = inlined_call_operand.vmem [shape: f32[64,32], index: 16, kind: input, shape index: {}]
  %s17 = inlined_call_operand.hbm [shape: f32[1,32], index: 17, kind: input, shape index: {}]
  %s18 = inlined_call_operand.hbm [shape: f32[32,32], index: 18, kind: input, shape index: {}]
  %s19 = inlined_call_operand.hbm [shape: f32[1,32], index: 19, kind: input, shape index: {}]
  %s20 = inlined_call_operand.vmem [shape: f32[16,32], index: 20, kind: output, shape index: {0}]
  %s21 = inlined_call_operand.vmem [shape: f32[16,16], index: 21, kind: output, shape index: {1}]
  %22 = xla_tuple %s20, %s21
  %s23 = sld [smem:[#allocation0]]
  $region126: #{seq2seq_forward.1} parent=0
    _
  %s25 = ssub.s32 1, %s23
  %s26 = scalar_select 0, %s25, %s23
  $region1: #{seq2seq_forward.1} parent=0
    #allocation4 [shape = 'u8[512]{0}', space=vmem, size = 0x400, scoped, tag = 'input window, operand 10, single buffered']
    #allocation5 [shape = 's32[1]{0}', space=sflag, size = 0x4, scoped, tag = 'scoped memory for seq2seq_forward.1']
    #allocation6 [shape = 'u8[512]{0}', space=vmem, size = 0x400, scoped, tag = 'input window, operand 12, single buffered']
    #allocation7 [shape = 's32[1]{0}', space=sflag, size = 0x4, scoped, tag = 'scoped memory for seq2seq_forward.1']
    #allocation8 [shape = 'u8[512]{0}', space=vmem, size = 0x400, scoped, tag = 'input window, operand 14, single buffered']
    #allocation9 [shape = 'u8[16384]{0}', space=vmem, size = 0x4000, scoped, tag = 'input window, operand 15, single buffered']
    #allocation10 [shape = 's32[1]{0}', space=sflag, size = 0x4, scoped, tag = 'scoped memory for seq2seq_forward.1']
    #allocation11 [shape = 'u8[512]{0}', space=vmem, size = 0x400, scoped, tag = 'input window, operand 17, single buffered']
    #allocation12 [shape = 'u8[16384]{0}', space=vmem, size = 0x4000, scoped, tag = 'input window, operand 18, single buffered']
    #allocation13 [shape = 's32[1]{0}', space=sflag, size = 0x4, scoped, tag = 'scoped memory for seq2seq_forward.1']
    #allocation14 [shape = 'u8[512]{0}', space=vmem, size = 0x400, scoped, tag = 'input window, operand 19, single buffered']
    %27 = vsyncpa [#allocation5], 0
    %28 = vsyncpa [#allocation7], 0
    %29 = vsyncpa [#allocation10], 0
    %30 = vsyncpa [#allocation13], 0
    // Predicated region
    $region2: #{seq2seq_forward.1} parent=1 // pred_check
      _
    $region3: #{seq2seq_forward.1} parent=1 // pred_check_branch
      %32 = sbr.rel (0) target = $region5
    $region4: #{seq2seq_forward.1} parent=1 // pred_region
      _
    $region5: #{seq2seq_forward.1} parent=1 // pred_fallthru
      _
    // Predicated region
    $region6: #{seq2seq_forward.1} parent=1 // pred_check
      _
    $region7: #{seq2seq_forward.1} parent=1 // pred_check_branch
      %34 = sbr.rel (0) target = $region9
    $region8: #{seq2seq_forward.1} parent=1 // pred_region
      _
    $region9: #{seq2seq_forward.1} parent=1 // pred_fallthru
      _
    // Predicated region
    $region10: #{seq2seq_forward.1} parent=1 // pred_check
      _
    $region11: #{seq2seq_forward.1} parent=1 // pred_check_branch
      %36 = sbr.rel (0) target = $region13
    $region12: #{seq2seq_forward.1} parent=1 // pred_region
      _
    $region13: #{seq2seq_forward.1} parent=1 // pred_fallthru
      _
    // Predicated region
    $region14: #{seq2seq_forward.1} parent=1 // pred_check
      _
    $region15: #{seq2seq_forward.1} parent=1 // pred_check_branch
      %38 = sbr.rel (0) target = $region17
    $region16: #{seq2seq_forward.1} parent=1 // pred_region
      _
    $region17: #{seq2seq_forward.1} parent=1 // pred_fallthru
      _
    // Predicated region
    $region18: #{seq2seq_forward.1} parent=1 // pred_check
      _
    $region19: #{seq2seq_forward.1} parent=1 // pred_check_branch
      %40 = sbr.rel (0) target = $region21
    $region20: #{seq2seq_forward.1} parent=1 // pred_region
      _
    $region21: #{seq2seq_forward.1} parent=1 // pred_fallthru
      _
    // Predicated region
    $region22: #{seq2seq_forward.1} parent=1 // pred_check
      _
    $region23: #{seq2seq_forward.1} parent=1 // pred_check_branch
      %42 = sbr.rel (0) target = $region25
    $region24: #{seq2seq_forward.1} parent=1 // pred_region
      _
    $region25: #{seq2seq_forward.1} parent=1 // pred_fallthru
      _
    // Predicated region
    $region26: #{seq2seq_forward.1} parent=1 // pred_check
      _
    $region27: #{seq2seq_forward.1} parent=1 // pred_check_branch
      %44 = sbr.rel (0) target = $region29
    $region28: #{seq2seq_forward.1} parent=1 // pred_region
      _
    $region29: #{seq2seq_forward.1} parent=1 // pred_fallthru
      _
    // Predicated region
    $region30: #{seq2seq_forward.1} parent=1 // pred_check
      _
    $region31: #{seq2seq_forward.1} parent=1 // pred_check_branch
      %46 = sbr.rel (0) target = $region33
    $region32: #{seq2seq_forward.1} parent=1 // pred_region
      _
    $region33: #{seq2seq_forward.1} parent=1 // pred_fallthru
      _
    // Predicated region
    $region34: #{seq2seq_forward.1} parent=1 // pred_check
      _
    $region35: #{seq2seq_forward.1} parent=1 // pred_check_branch
      %48 = sbr.rel (0) target = $region37
    $region36: #{seq2seq_forward.1} parent=1 // pred_region
      _
    $region37: #{seq2seq_forward.1} parent=1 // pred_fallthru
      _
    // Predicated region
    $region38: #{seq2seq_forward.1} parent=1 // pred_check
      _
    $region39: #{seq2seq_forward.1} parent=1 // pred_check_branch
      %50 = sbr.rel (0) target = $region41
    $region40: #{seq2seq_forward.1} parent=1 // pred_region
      _
    $region41: #{seq2seq_forward.1} parent=1 // pred_fallthru
      _
    // Predicated region
    $region42: #{seq2seq_forward.1} parent=1 // pred_check
      _
    $region43: #{seq2seq_forward.1} parent=1 // pred_check_branch
      %52 = sbr.rel (0) target = $region45
    $region44: #{seq2seq_forward.1} parent=1 // pred_region
      %s54 = ssub.s32 16, 16
      %55 = vsyncadd [#allocation5], %s54
      %s57 = sshll.u32 [#allocation4], 4
      %s58 = int_to_ptr.vmem [resolvable:$true] %s57
      %60 = dma.hbm_to_vmem [thread:$0]  %s10, 16, %s58, [#allocation5]
    $region45: #{seq2seq_forward.1} parent=1 // pred_fallthru
      _
    // Predicated region
    $region46: #{seq2seq_forward.1} parent=1 // pred_check
      _
    $region47: #{seq2seq_forward.1} parent=1 // pred_check_branch
      %62 = sbr.rel (0) target = $region49
    $region48: #{seq2seq_forward.1} parent=1 // pred_region
      _
    $region49: #{seq2seq_forward.1} parent=1 // pred_fallthru
      _
    // Predicated region
    $region50: #{seq2seq_forward.1} parent=1 // pred_check
      _
    $region51: #{seq2seq_forward.1} parent=1 // pred_check_branch
      %64 = sbr.rel (0) target = $region53
    $region52: #{seq2seq_forward.1} parent=1 // pred_region
      %s66 = ssub.s32 16, 16
      %67 = vsyncadd [#allocation7], %s66
      %s69 = sshll.u32 [#allocation6], 4
      %s70 = int_to_ptr.vmem [resolvable:$true] %s69
      %72 = dma.hbm_to_vmem [thread:$0]  %s12, 16, %s70, [#allocation7]
    $region53: #{seq2seq_forward.1} parent=1 // pred_fallthru
      _
    // Predicated region
    $region54: #{seq2seq_forward.1} parent=1 // pred_check
      _
    $region55: #{seq2seq_forward.1} parent=1 // pred_check_branch
      %74 = sbr.rel (0) target = $region57
    $region56: #{seq2seq_forward.1} parent=1 // pred_region
      _
    $region57: #{seq2seq_forward.1} parent=1 // pred_fallthru
      _
    // Predicated region
    $region58: #{seq2seq_forward.1} parent=1 // pred_check
      _
    $region59: #{seq2seq_forward.1} parent=1 // pred_check_branch
      %76 = sbr.rel (0) target = $region61
    $region60: #{seq2seq_forward.1} parent=1 // pred_region
      %s78 = ssub.s32 16, 16
      %79 = vsyncadd [#allocation7], %s78
      %s81 = sshll.u32 [#allocation8], 4
      %s82 = int_to_ptr.vmem [resolvable:$true] %s81
      %84 = dma.hbm_to_vmem [thread:$0]  %s14, 16, %s82, [#allocation7]
    $region61: #{seq2seq_forward.1} parent=1 // pred_fallthru
      _
    // Predicated region
    $region62: #{seq2seq_forward.1} parent=1 // pred_check
      _
    $region63: #{seq2seq_forward.1} parent=1 // pred_check_branch
      %86 = sbr.rel (0) target = $region65
    $region64: #{seq2seq_forward.1} parent=1 // pred_region
      %s88 = ssub.s32 512, 512
      %89 = vsyncadd [#allocation10], %s88
      %s90 = sshll.u32 [#allocation9], 4
      %s91 = int_to_ptr.vmem [resolvable:$true] %s90
      %96 = dma.hbm_to_vmem [thread:$0]  %s15, 512, %s91, [#allocation10], 128, 128, 8
    $region65: #{seq2seq_forward.1} parent=1 // pred_fallthru
      _
    // Predicated region
    $region66: #{seq2seq_forward.1} parent=1 // pred_check
      _
    $region67: #{seq2seq_forward.1} parent=1 // pred_check_branch
      %98 = sbr.rel (0) target = $region69
    $region68: #{seq2seq_forward.1} parent=1 // pred_region
      _
    $region69: #{seq2seq_forward.1} parent=1 // pred_fallthru
      _
    // Predicated region
    $region70: #{seq2seq_forward.1} parent=1 // pred_check
      _
    $region71: #{seq2seq_forward.1} parent=1 // pred_check_branch
      %100 = sbr.rel (0) target = $region73
    $region72: #{seq2seq_forward.1} parent=1 // pred_region
      %s102 = ssub.s32 16, 16
      %103 = vsyncadd [#allocation10], %s102
      %s105 = sshll.u32 [#allocation11], 4
      %s106 = int_to_ptr.vmem [resolvable:$true] %s105
      %108 = dma.hbm_to_vmem [thread:$0]  %s17, 16, %s106, [#allocation10]
    $region73: #{seq2seq_forward.1} parent=1 // pred_fallthru
      _
    // Predicated region
    $region74: #{seq2seq_forward.1} parent=1 // pred_check
      _
    $region75: #{seq2seq_forward.1} parent=1 // pred_check_branch
      %110 = sbr.rel (0) target = $region77
    $region76: #{seq2seq_forward.1} parent=1 // pred_region
      %s112 = ssub.s32 512, 512
      %113 = vsyncadd [#allocation13], %s112
      %s114 = sshll.u32 [#allocation12], 4
      %s115 = int_to_ptr.vmem [resolvable:$true] %s114
      %120 = dma.hbm_to_vmem [thread:$0]  %s18, 512, %s115, [#allocation13], 128, 128, 8
    $region77: #{seq2seq_forward.1} parent=1 // pred_fallthru
      _
    // Predicated region
    $region78: #{seq2seq_forward.1} parent=1 // pred_check
      _
    $region79: #{seq2seq_forward.1} parent=1 // pred_check_branch
      %122 = sbr.rel (0) target = $region81
    $region80: #{seq2seq_forward.1} parent=1 // pred_region
      %s124 = ssub.s32 16, 16
      %125 = vsyncadd [#allocation13], %s124
      %s127 = sshll.u32 [#allocation14], 4
      %s128 = int_to_ptr.vmem [resolvable:$true] %s127
      %130 = dma.hbm_to_vmem [thread:$0]  %s19, 16, %s128, [#allocation13]
    $region81: #{seq2seq_forward.1} parent=1 // pred_fallthru
      _
    // Predicated region
    $region82: #{seq2seq_forward.1} parent=1 // pred_check
      _
    $region83: #{seq2seq_forward.1} parent=1 // pred_check_branch
      %132 = sbr.rel (0) target = $region85
    $region84: #{seq2seq_forward.1} parent=1 // pred_region
      %133 = dma.done [#allocation5], 16
    $region85: #{seq2seq_forward.1} parent=1 // pred_fallthru
      _
    // Predicated region
    $region86: #{seq2seq_forward.1} parent=1 // pred_check
      _
    $region87: #{seq2seq_forward.1} parent=1 // pred_check_branch
      %135 = sbr.rel (0) target = $region89
    $region88: #{seq2seq_forward.1} parent=1 // pred_region
      %136 = dma.done [#allocation7], 16
    $region89: #{seq2seq_forward.1} parent=1 // pred_fallthru
      _
    // Predicated region
    $region90: #{seq2seq_forward.1} parent=1 // pred_check
      _
    $region91: #{seq2seq_forward.1} parent=1 // pred_check_branch
      %138 = sbr.rel (0) target = $region93
    $region92: #{seq2seq_forward.1} parent=1 // pred_region
      %139 = dma.done [#allocation7], 16
    $region93: #{seq2seq_forward.1} parent=1 // pred_fallthru
      _
    // Predicated region
    $region94: #{seq2seq_forward.1} parent=1 // pred_check
      _
    $region95: #{seq2seq_forward.1} parent=1 // pred_check_branch
      %141 = sbr.rel (0) target = $region97
    $region96: #{seq2seq_forward.1} parent=1 // pred_region
      %142 = dma.done [#allocation10], 512
    $region97: #{seq2seq_forward.1} parent=1 // pred_fallthru
      _
    // Predicated region
    $region98: #{seq2seq_forward.1} parent=1 // pred_check
      _
    $region99: #{seq2seq_forward.1} parent=1 // pred_check_branch
      %144 = sbr.rel (0) target = $region101
    $region100: #{seq2seq_forward.1} parent=1 // pred_region
      %145 = dma.done [#allocation10], 16
    $region101: #{seq2seq_forward.1} parent=1 // pred_fallthru
      _
    // Predicated region
    $region102: #{seq2seq_forward.1} parent=1 // pred_check
      _
    $region103: #{seq2seq_forward.1} parent=1 // pred_check_branch
      %147 = sbr.rel (0) target = $region105
    $region104: #{seq2seq_forward.1} parent=1 // pred_region
      %148 = dma.done [#allocation13], 512
    $region105: #{seq2seq_forward.1} parent=1 // pred_fallthru
      _
    // Predicated region
    $region106: #{seq2seq_forward.1} parent=1 // pred_check
      _
    $region107: #{seq2seq_forward.1} parent=1 // pred_check_branch
      %150 = sbr.rel (0) target = $region109
    $region108: #{seq2seq_forward.1} parent=1 // pred_region
      %151 = dma.done [#allocation13], 16
    $region109: #{seq2seq_forward.1} parent=1 // pred_fallthru
      _
    %v152 = vlaneseq
    %v153 = vand.u32 %v152, 127
    %v154 = vld [vmem:[%s0] sm:$0xff]
    %v155 = vld [vmem:[%s0 + $0x8] sm:$0xff]
    %156 = vset.pattern.permute.xlu0 0
    %157 = vperm.xlu0 %156, %v154
    %v158 = vpop.permute.xlu0 %157
    %159 = vset.pattern.permute.xlu0 0
    %160 = vperm.xlu0 %159, %v155
    %v161 = vpop.permute.xlu0 %160
    %vm162 = vcmp.eq.s32.totalorder %v153, %v158
    %vm163 = vcmp.eq.s32.totalorder %v153, %v161
    %v164 = vsel %vm162, 1, 0
    %v165 = vsel %vm163, 1, 0
    %v166 = vcvt.s32.f32 %v164
    %v167 = vcvt.s32.f32 %v165
    %v168 = vld [vmem:[%s5] sm:$0xff]
    %v169 = vld [vmem:[%s5 + $0x8] sm:$0xff]
    %v170 = vld [vmem:[%s5 + $0x10] sm:$0xff]
    %v171 = vld [vmem:[%s6] sm:$0x1]
    %v173 = vlaneseq
    %v174 = vshrl.u32 %v173, 7
    %v175 = vsub.s32 0, %v174
    %v176 = vrot.slane %v171, %v175
    %vm178 = vcmask 195584
    %v180 = vsel %vm178, %v166, 0
    %v183 = vsel %vm178, %v167, 0
    %185 = vmatprep.subr.mxu0 0.0
    %186 = vmatpush1.msra.mxu0 0.0
    %187 = vmatprep.subr.mxu0 0.0
    %188 = vmatpush1.msra.mxu0 0.0
    %189 = vmatprep.subr.mxu0 0.0
    %190 = vmatpush1.msra.mxu0 0.0
    %191 = vmatprep.subr.mxu0 0.0
    %192 = vmatpush1.msra.mxu0 0.0
    %193 = vmatprep.subr.mxu0 0.0
    %194 = vmatpush1.msra.mxu0 0.0
    %195 = vmatprep.subr.mxu0 0.0
    %196 = vmatpush1.msra.mxu0 0.0
    %197 = vmatprep.subr.mxu0 0.0
    %198 = vmatpush1.msra.mxu0 0.0
    %199 = vmatprep.subr.mxu0 0.0
    %200 = vmatpush1.msra.mxu0 0.0
    %201 = vmatprep.subr.mxu0 0.0
    %202 = vmatpush1.msra.mxu0 0.0
    %203 = vmatprep.subr.mxu0 0.0
    %204 = vmatpush1.msra.mxu0 0.0
    %205 = vmatprep.subr.mxu0 0.0
    %206 = vmatpush1.msra.mxu0 0.0
    %207 = vmatprep.subr.mxu0 0.0
    %208 = vmatpush1.msra.mxu0 0.0
    %209 = vmatprep.subr.mxu0 0.0
    %210 = vmatpush1.msra.mxu0 0.0
    %211 = vmatprep.subr.mxu0 0.0
    %212 = vmatpush1.msra.mxu0 %v170
    %213 = vmatprep.subr.mxu0 0.0
    %214 = vmatpush1.msra.mxu0 %v169
    %215 = vmatprep.subr.mxu0 0.0
    %216 = vmatpush1.msra.mxu0 %v168
    %217 = vmatprep.subr.mxu0 0.0
    %218 = vmatpush2.msra.mxu0 0.0
    %219 = vmatprep.subr.mxu0 0.0
    %220 = vmatpush2.msra.mxu0 0.0
    %221 = vmatprep.subr.mxu0 0.0
    %222 = vmatpush2.msra.mxu0 0.0
    %223 = vmatprep.subr.mxu0 0.0
    %224 = vmatpush2.msra.mxu0 0.0
    %225 = vmatprep.subr.mxu0 0.0
    %226 = vmatpush2.msra.mxu0 0.0
    %227 = vmatprep.subr.mxu0 0.0
    %228 = vmatpush2.msra.mxu0 0.0
    %229 = vmatprep.subr.mxu0 0.0
    %230 = vmatpush2.msra.mxu0 0.0
    %231 = vmatprep.subr.mxu0 0.0
    %232 = vmatpush2.msra.mxu0 0.0
    %233 = vmatprep.subr.mxu0 0.0
    %234 = vmatpush2.msra.mxu0 0.0
    %235 = vmatprep.subr.mxu0 0.0
    %236 = vmatpush2.msra.mxu0 0.0
    %237 = vmatprep.subr.mxu0 0.0
    %238 = vmatpush2.msra.mxu0 0.0
    %239 = vmatprep.subr.mxu0 0.0
    %240 = vmatpush2.msra.mxu0 0.0
    %241 = vmatprep.subr.mxu0 0.0
    %242 = vmatpush2.msra.mxu0 0.0
    %243 = vmatprep.subr.mxu0 0.0
    %244 = vmatpush2.msra.mxu0 0.0
    %245 = vmatprep.subr.mxu0 0.0
    %246 = vmatpush2.msra.mxu0 0.0
    %247 = vmatprep.subr.mxu0 0.0
    %248 = vmatpush2.msra.mxu0 0.0
    %249 = vmatprep.mubr.f32.mxu0 0.0
    %250 = vmatmul.mubr.f32.gmra.mxu0 %v180
    %v251 = vpop.f32.mrf.mxu0
    %v252 = vadd.f32 %v176, %v251
    %v253 = vpop.f32.mrf.mxu0
    %254 = vmatprep.mubr.f32.mxu0 0.0
    %255 = vmatmul.mubr.f32.gmra.mxu0 %v183
    %v256 = vpop.f32.mrf.mxu0
    %v257 = vadd.f32 %v176, %v256
    %v258 = vpop.f32.mrf.mxu0
    %259 = vdwg.mxu0
    %v260 = vld [vmem:[%s1] sm:$0xff]
    %v261 = vld [vmem:[%s1 + $0x8] sm:$0xff]
    %262 = vset.pattern.permute.xlu0 0
    %263 = vperm.xlu0 %262, %v260
    %v264 = vpop.permute.xlu0 %263
    %265 = vset.pattern.permute.xlu0 0
    %266 = vperm.xlu0 %265, %v261
    %v267 = vpop.permute.xlu0 %266
    %vm268 = vcmp.eq.s32.totalorder %v153, %v264
    %vm269 = vcmp.eq.s32.totalorder %v153, %v267
    %v270 = vsel %vm268, 1, 0
    %v271 = vsel %vm269, 1, 0
    %v272 = vcvt.s32.f32 %v270
    %v273 = vcvt.s32.f32 %v271
    %v274 = vld [vmem:[%s11] sm:$0xff]
    %v275 = vld [vmem:[%s11 + $0x8] sm:$0xff]
    %v276 = vld [vmem:[%s11 + $0x10] sm:$0xff]
    %v277 = vld [vmem:[%s11 + $0x18] sm:$0xff]
    %v278 = vld [vmem:[#allocation6] sm:$0x1]
    %v280 = vlaneseq
    %v281 = vshrl.u32 %v280, 7
    %v282 = vsub.s32 0, %v281
    %v283 = vrot.slane %v278, %v282
    %vm285 = vcmask 261120
    %v287 = vsel %vm285, %v272, 0
    %v290 = vsel %vm285, %v273, 0
    %292 = vmatprep.subr.mxu0 0.0
    %293 = vmatpush1.msra.mxu0 0.0
    %294 = vmatprep.subr.mxu0 0.0
    %295 = vmatpush1.msra.mxu0 0.0
    %296 = vmatprep.subr.mxu0 0.0
    %297 = vmatpush1.msra.mxu0 0.0
    %298 = vmatprep.subr.mxu0 0.0
    %299 = vmatpush1.msra.mxu0 0.0
    %300 = vmatprep.subr.mxu0 0.0
    %301 = vmatpush1.msra.mxu0 0.0
    %302 = vmatprep.subr.mxu0 0.0
    %303 = vmatpush1.msra.mxu0 0.0
    %304 = vmatprep.subr.mxu0 0.0
    %305 = vmatpush1.msra.mxu0 0.0
    %306 = vmatprep.subr.mxu0 0.0
    %307 = vmatpush1.msra.mxu0 0.0
    %308 = vmatprep.subr.mxu0 0.0
    %309 = vmatpush1.msra.mxu0 0.0
    %310 = vmatprep.subr.mxu0 0.0
    %311 = vmatpush1.msra.mxu0 0.0
    %312 = vmatprep.subr.mxu0 0.0
    %313 = vmatpush1.msra.mxu0 0.0
    %314 = vmatprep.subr.mxu0 0.0
    %315 = vmatpush1.msra.mxu0 0.0
    %316 = vmatprep.subr.mxu0 0.0
    %317 = vmatpush1.msra.mxu0 %v277
    %318 = vmatprep.subr.mxu0 0.0
    %319 = vmatpush1.msra.mxu0 %v276
    %320 = vmatprep.subr.mxu0 0.0
    %321 = vmatpush1.msra.mxu0 %v275
    %322 = vmatprep.subr.mxu0 0.0
    %323 = vmatpush1.msra.mxu0 %v274
    %324 = vmatprep.subr.mxu0 0.0
    %325 = vmatpush2.msra.mxu0 0.0
    %326 = vmatprep.subr.mxu0 0.0
    %327 = vmatpush2.msra.mxu0 0.0
    %328 = vmatprep.subr.mxu0 0.0
    %329 = vmatpush2.msra.mxu0 0.0
    %330 = vmatprep.subr.mxu0 0.0
    %331 = vmatpush2.msra.mxu0 0.0
    %332 = vmatprep.subr.mxu0 0.0
    %333 = vmatpush2.msra.mxu0 0.0
    %334 = vmatprep.subr.mxu0 0.0
    %335 = vmatpush2.msra.mxu0 0.0
    %336 = vmatprep.subr.mxu0 0.0
    %337 = vmatpush2.msra.mxu0 0.0
    %338 = vmatprep.subr.mxu0 0.0
    %339 = vmatpush2.msra.mxu0 0.0
    %340 = vmatprep.subr.mxu0 0.0
    %341 = vmatpush2.msra.mxu0 0.0
    %342 = vmatprep.subr.mxu0 0.0
    %343 = vmatpush2.msra.mxu0 0.0
    %344 = vmatprep.subr.mxu0 0.0
    %345 = vmatpush2.msra.mxu0 0.0
    %346 = vmatprep.subr.mxu0 0.0
    %347 = vmatpush2.msra.mxu0 0.0
    %348 = vmatprep.subr.mxu0 0.0
    %349 = vmatpush2.msra.mxu0 0.0
    %350 = vmatprep.subr.mxu0 0.0
    %351 = vmatpush2.msra.mxu0 0.0
    %352 = vmatprep.subr.mxu0 0.0
    %353 = vmatpush2.msra.mxu0 0.0
    %354 = vmatprep.subr.mxu0 0.0
    %355 = vmatpush2.msra.mxu0 0.0
    %356 = vmatprep.mubr.f32.mxu0 0.0
    %357 = vmatmul.mubr.f32.gmra.mxu0 %v287
    %v358 = vpop.f32.mrf.mxu0
    %v359 = vadd.f32 %v283, %v358
    %v360 = vpop.f32.mrf.mxu0
    %361 = vmatprep.mubr.f32.mxu0 0.0
    %362 = vmatmul.mubr.f32.gmra.mxu0 %v290
    %v363 = vpop.f32.mrf.mxu0
    %v364 = vadd.f32 %v283, %v363
    %v365 = vpop.f32.mrf.mxu0
    %366 = vdwg.mxu0
    %v367 = vld [vmem:[%s7] sm:$0xff]
    %v368 = vld [vmem:[%s7 + $0x8] sm:$0xff]
    %v369 = vld [vmem:[%s7 + $0x10] sm:$0xff]
    %v370 = vld [vmem:[%s7 + $0x18] sm:$0xff]
    %v371 = vld [vmem:[%s8] sm:$0x1]
    %v372 = vld [vmem:[%s13] sm:$0xff]
    %v373 = vld [vmem:[%s13 + $0x8] sm:$0xff]
    %v374 = vld [vmem:[%s13 + $0x10] sm:$0xff]
    %v375 = vld [vmem:[%s13 + $0x18] sm:$0xff]
    %v376 = vld [vmem:[#allocation8] sm:$0x1]
    %v378 = vlaneseq
    %v379 = vshrl.u32 %v378, 7
    %v380 = vsub.s32 0, %v379
    %v381 = vrot.slane %v371, %v380
    %v384 = vsel %vm285, 0.0, 0
    %386 = vmatprep.subr.mxu0 0.0
    %387 = vmatpush1.msra.mxu0 0.0
    %388 = vmatprep.subr.mxu0 0.0
    %389 = vmatpush1.msra.mxu0 0.0
    %390 = vmatprep.subr.mxu0 0.0
    %391 = vmatpush1.msra.mxu0 0.0
    %392 = vmatprep.subr.mxu0 0.0
    %393 = vmatpush1.msra.mxu0 0.0
    %394 = vmatprep.subr.mxu0 0.0
    %395 = vmatpush1.msra.mxu0 0.0
    %396 = vmatprep.subr.mxu0 0.0
    %397 = vmatpush1.msra.mxu0 0.0
    %398 = vmatprep.subr.mxu0 0.0
    %399 = vmatpush1.msra.mxu0 0.0
    %400 = vmatprep.subr.mxu0 0.0
    %401 = vmatpush1.msra.mxu0 0.0
    %402 = vmatprep.subr.mxu0 0.0
    %403 = vmatpush1.msra.mxu0 0.0
    %404 = vmatprep.subr.mxu0 0.0
    %405 = vmatpush1.msra.mxu0 0.0
    %406 = vmatprep.subr.mxu0 0.0
    %407 = vmatpush1.msra.mxu0 0.0
    %408 = vmatprep.subr.mxu0 0.0
    %409 = vmatpush1.msra.mxu0 0.0
    %410 = vmatprep.subr.mxu0 0.0
    %411 = vmatpush1.msra.mxu0 %v370
    %412 = vmatprep.subr.mxu0 0.0
    %413 = vmatpush1.msra.mxu0 %v369
    %414 = vmatprep.subr.mxu0 0.0
    %415 = vmatpush1.msra.mxu0 %v368
    %416 = vmatprep.subr.mxu0 0.0
    %417 = vmatpush1.msra.mxu0 %v367
    %418 = vmatprep.subr.mxu0 0.0
    %419 = vmatpush2.msra.mxu0 0.0
    %420 = vmatprep.subr.mxu0 0.0
    %421 = vmatpush2.msra.mxu0 0.0
    %422 = vmatprep.subr.mxu0 0.0
    %423 = vmatpush2.msra.mxu0 0.0
    %424 = vmatprep.subr.mxu0 0.0
    %425 = vmatpush2.msra.mxu0 0.0
    %426 = vmatprep.subr.mxu0 0.0
    %427 = vmatpush2.msra.mxu0 0.0
    %428 = vmatprep.subr.mxu0 0.0
    %429 = vmatpush2.msra.mxu0 0.0
    %430 = vmatprep.subr.mxu0 0.0
    %431 = vmatpush2.msra.mxu0 0.0
    %432 = vmatprep.subr.mxu0 0.0
    %433 = vmatpush2.msra.mxu0 0.0
    %434 = vmatprep.subr.mxu0 0.0
    %435 = vmatpush2.msra.mxu0 0.0
    %436 = vmatprep.subr.mxu0 0.0
    %437 = vmatpush2.msra.mxu0 0.0
    %438 = vmatprep.subr.mxu0 0.0
    %439 = vmatpush2.msra.mxu0 0.0
    %440 = vmatprep.subr.mxu0 0.0
    %441 = vmatpush2.msra.mxu0 0.0
    %442 = vmatprep.subr.mxu0 0.0
    %443 = vmatpush2.msra.mxu0 0.0
    %444 = vmatprep.subr.mxu0 0.0
    %445 = vmatpush2.msra.mxu0 0.0
    %446 = vmatprep.subr.mxu0 0.0
    %447 = vmatpush2.msra.mxu0 0.0
    %448 = vmatprep.subr.mxu0 0.0
    %449 = vmatpush2.msra.mxu0 0.0
    %450 = vmatprep.mubr.f32.mxu0 0.0
    %451 = vmatmul.mubr.f32.gmra.mxu0 %v384
    %v452 = vpop.f32.mrf.mxu0
    %v453 = vadd.f32 %v381, %v452
    %v454 = vpop.f32.mrf.mxu0
    %455 = vdwg.mxu0
    %v456 = vadd.f32 %v252, %v453
    %v457 = vxor.u32 %v456, 2147483648
    %v458 = vmul.f32 %v457, 1.442695
    %v459 = vpow.pop %v458
    %v460 = vadd.f32 %v459, 1.0
    %v461 = vrcp.pop %v460
    %v462 = vmul.f32 1.0, %v461
    %464 = vrot.lane.b32.xlu0 %v453, 96
    %v465 = vpop.permute.xlu0 %464
    %v467 = vmul.f32 %v462, %v465
    %469 = vrot.lane.b32.xlu0 %v467, 32
    %v470 = vpop.permute.xlu0 %469
    %v472 = vadd.f32 %v252, %v470
    %v473 = vtanh.pop %v472
    %v474 = vsub.f32 1.0, %v462
    %476 = vrot.lane.b32.xlu0 %v473, 112
    %v477 = vpop.permute.xlu0 %476
    %v479 = vmul.f32 %v474, %v477
    %v480 = vmul.f32 %v462, 0.0
    %v481 = vadd.f32 %v479, %v480
    %v482 = vrot.slane %v453, 2
    %v484 = vadd.f32 %v257, %v482
    %v485 = vxor.u32 %v484, 2147483648
    %v486 = vmul.f32 %v485, 1.442695
    %v487 = vpow.pop %v486
    %v488 = vadd.f32 %v487, 1.0
    %v489 = vrcp.pop %v488
    %v490 = vmul.f32 1.0, %v489
    %491 = vrot.lane.b32.xlu0 %v482, 96
    %v492 = vpop.permute.xlu0 %491
    %v494 = vmul.f32 %v490, %v492
    %496 = vrot.lane.b32.xlu0 %v494, 32
    %v497 = vpop.permute.xlu0 %496
    %v499 = vadd.f32 %v257, %v497
    %v500 = vtanh.pop %v499
    %v501 = vsub.f32 1.0, %v490
    %503 = vrot.lane.b32.xlu0 %v500, 112
    %v504 = vpop.permute.xlu0 %503
    %v506 = vmul.f32 %v501, %v504
    %v507 = vmul.f32 %v490, 0.0
    %v508 = vadd.f32 %v506, %v507
    %v509 = vld [vmem:[%s2] sm:$0x3]
    %vm510 = vcmp.gt.f32.partialorder %v509, 0.0
    %v511 = vld [vmem:[%s2 + $0xe] sm:$0x3]
    %vm512 = vcmp.gt.f32.partialorder %v511, 0.0
    %v513 = vsel %vm510, 1, 0
    %514 = vset.pattern.permute.xlu0 0
    %515 = vperm.xlu0 %514, %v513
    %v516 = vpop.permute.xlu0 %515
    %vm517 = vcmp.eq.s32.totalorder %v516, 1
    %v518 = vsel %vm517, %v481, 0.0
    %520 = vrot.lane.b32.xlu0 %v518, 112
    %v521 = vpop.permute.xlu0 %520
    %vm523 = vcmask 123904
    %524 = vst.msk [vmem:[#allocation2] sm:$0x3] %vm523, %v521
    %v525 = vsel %vm512, 1, 0
    %526 = vset.pattern.permute.xlu0 0
    %527 = vperm.xlu0 %526, %v525
    %v528 = vpop.permute.xlu0 %527
    %vm529 = vcmp.eq.s32.totalorder %v528, 1
    %v531 = vrot.slane %v508, 6
    %532 = vrot.lane.b32.xlu0 %v531, 64
    %v533 = vpop.permute.xlu0 %532
    %v535 = vsel %vm529, %v533, 0.0
    %537 = vrot.lane.b32.xlu0 %v535, 16
    %v538 = vpop.permute.xlu0 %537
    %vm540 = vcmask 255104
    %541 = vst.msk [vmem:[#allocation2 + $0xe] sm:$0x3] %vm540, %v538
    %vm542 = vcmask 130048
    %v543 = vsel %vm542, %v521, %v538
    %v545 = vsel %vm285, %v543, 0
    %547 = vmatprep.subr.mxu0 0.0
    %548 = vmatpush1.msra.mxu0 0.0
    %549 = vmatprep.subr.mxu0 0.0
    %550 = vmatpush1.msra.mxu0 0.0
    %551 = vmatprep.subr.mxu0 0.0
    %552 = vmatpush1.msra.mxu0 0.0
    %553 = vmatprep.subr.mxu0 0.0
    %554 = vmatpush1.msra.mxu0 0.0
    %555 = vmatprep.subr.mxu0 0.0
    %556 = vmatpush1.msra.mxu0 0.0
    %557 = vmatprep.subr.mxu0 0.0
    %558 = vmatpush1.msra.mxu0 0.0
    %559 = vmatprep.subr.mxu0 0.0
    %560 = vmatpush1.msra.mxu0 0.0
    %561 = vmatprep.subr.mxu0 0.0
    %562 = vmatpush1.msra.mxu0 0.0
    %563 = vmatprep.subr.mxu0 0.0
    %564 = vmatpush1.msra.mxu0 0.0
    %565 = vmatprep.subr.mxu0 0.0
    %566 = vmatpush1.msra.mxu0 0.0
    %567 = vmatprep.subr.mxu0 0.0
    %568 = vmatpush1.msra.mxu0 0.0
    %569 = vmatprep.subr.mxu0 0.0
    %570 = vmatpush1.msra.mxu0 0.0
    %571 = vmatprep.subr.mxu0 0.0
    %572 = vmatpush1.msra.mxu0 %v370
    %573 = vmatprep.subr.mxu0 0.0
    %574 = vmatpush1.msra.mxu0 %v369
    %575 = vmatprep.subr.mxu0 0.0
    %576 = vmatpush1.msra.mxu0 %v368
    %577 = vmatprep.subr.mxu0 0.0
    %578 = vmatpush1.msra.mxu0 %v367
    %579 = vmatprep.subr.mxu0 0.0
    %580 = vmatpush2.msra.mxu0 0.0
    %581 = vmatprep.subr.mxu0 0.0
    %582 = vmatpush2.msra.mxu0 0.0
    %583 = vmatprep.subr.mxu0 0.0
    %584 = vmatpush2.msra.mxu0 0.0
    %585 = vmatprep.subr.mxu0 0.0
    %586 = vmatpush2.msra.mxu0 0.0
    %587 = vmatprep.subr.mxu0 0.0
    %588 = vmatpush2.msra.mxu0 0.0
    %589 = vmatprep.subr.mxu0 0.0
    %590 = vmatpush2.msra.mxu0 0.0
    %591 = vmatprep.subr.mxu0 0.0
    %592 = vmatpush2.msra.mxu0 0.0
    %593 = vmatprep.subr.mxu0 0.0
    %594 = vmatpush2.msra.mxu0 0.0
    %595 = vmatprep.subr.mxu0 0.0
    %596 = vmatpush2.msra.mxu0 0.0
    %597 = vmatprep.subr.mxu0 0.0
    %598 = vmatpush2.msra.mxu0 0.0
    %599 = vmatprep.subr.mxu0 0.0
    %600 = vmatpush2.msra.mxu0 0.0
    %601 = vmatprep.subr.mxu0 0.0
    %602 = vmatpush2.msra.mxu0 0.0
    %603 = vmatprep.subr.mxu0 0.0
    %604 = vmatpush2.msra.mxu0 0.0
    %605 = vmatprep.subr.mxu0 0.0
    %606 = vmatpush2.msra.mxu0 0.0
    %607 = vmatprep.subr.mxu0 0.0
    %608 = vmatpush2.msra.mxu0 0.0
    %609 = vmatprep.subr.mxu0 0.0
    %610 = vmatpush2.msra.mxu0 0.0
    %611 = vmatprep.mubr.f32.mxu0 0.0
    %612 = vmatmul.mubr.f32.gmra.mxu0 %v545
    %v613 = vpop.f32.mrf.mxu0
    %v614 = vadd.f32 %v381, %v613
    %v615 = vpop.f32.mrf.mxu0
    %616 = vdwg.mxu0
    %v618 = vrot.slane %v614, 6
    %v620 = vadd.f32 %v252, %v618
    %v621 = vxor.u32 %v620, 2147483648
    %v622 = vmul.f32 %v621, 1.442695
    %v623 = vpow.pop %v622
    %v624 = vadd.f32 %v623, 1.0
    %v625 = vrcp.pop %v624
    %v626 = vmul.f32 1.0, %v625
    %627 = vrot.lane.b32.xlu0 %v618, 96
    %v628 = vpop.permute.xlu0 %627
    %v630 = vmul.f32 %v626, %v628
    %632 = vrot.lane.b32.xlu0 %v630, 32
    %v633 = vpop.permute.xlu0 %632
    %v635 = vadd.f32 %v252, %v633
    %v636 = vtanh.pop %v635
    %v637 = vsub.f32 1.0, %v626
    %639 = vrot.lane.b32.xlu0 %v636, 112
    %v640 = vpop.permute.xlu0 %639
    %v642 = vmul.f32 %v637, %v640
    %v643 = vrot.slane %v543, 6
    %644 = vrot.lane.b32.xlu0 %v643, 16
    %v645 = vpop.permute.xlu0 %644
    %v647 = vmul.f32 %v626, %v645
    %v648 = vadd.f32 %v642, %v647
    %v649 = vrot.slane %v614, 4
    %v651 = vadd.f32 %v257, %v649
    %v652 = vxor.u32 %v651, 2147483648
    %v653 = vmul.f32 %v652, 1.442695
    %v654 = vpow.pop %v653
    %v655 = vadd.f32 %v654, 1.0
    %v656 = vrcp.pop %v655
    %v657 = vmul.f32 1.0, %v656
    %658 = vrot.lane.b32.xlu0 %v649, 96
    %v659 = vpop.permute.xlu0 %658
    %v661 = vmul.f32 %v657, %v659
    %663 = vrot.lane.b32.xlu0 %v661, 32
    %v664 = vpop.permute.xlu0 %663
    %v666 = vadd.f32 %v257, %v664
    %v667 = vtanh.pop %v666
    %v668 = vsub.f32 1.0, %v657
    %670 = vrot.lane.b32.xlu0 %v667, 112
    %v671 = vpop.permute.xlu0 %670
    %v673 = vmul.f32 %v668, %v671
    %v674 = vrot.slane %v543, 4
    %675 = vrot.lane.b32.xlu0 %v674, 48
    %v676 = vpop.permute.xlu0 %675
    %v678 = vmul.f32 %v657, %v676
    %v679 = vadd.f32 %v673, %v678
    %v680 = vld [vmem:[%s2 + $0x2] sm:$0x3]
    %vm681 = vcmp.gt.f32.partialorder %v680, 0.0
    %v682 = vld [vmem:[%s2 + $0xc] sm:$0x3]
    %vm683 = vcmp.gt.f32.partialorder %v682, 0.0
    %v684 = vsel %vm681, 1, 0
    %685 = vset.pattern.permute.xlu0 0
    %686 = vperm.xlu0 %685, %v684
    %v687 = vpop.permute.xlu0 %686
    %vm688 = vcmp.eq.s32.totalorder %v687, 1
    %v690 = vrot.slane %v648, 2
    %691 = vrot.lane.b32.xlu0 %v690, 112
    %v692 = vpop.permute.xlu0 %691
    %v694 = vsel %vm688, %v692, 0.0
    %695 = vst.msk [vmem:[#allocation2 + $0x2] sm:$0x3] %vm523, %v694
    %v696 = vsel %vm683, 1, 0
    %697 = vset.pattern.permute.xlu0 0
    %698 = vperm.xlu0 %697, %v696
    %v699 = vpop.permute.xlu0 %698
    %vm700 = vcmp.eq.s32.totalorder %v699, 1
    %v702 = vrot.slane %v679, 4
    %703 = vrot.lane.b32.xlu0 %v702, 64
    %v704 = vpop.permute.xlu0 %703
    %v706 = vsel %vm700, %v704, 0.0
    %708 = vrot.lane.b32.xlu0 %v706, 16
    %v709 = vpop.permute.xlu0 %708
    %711 = vst.msk [vmem:[#allocation2 + $0xc] sm:$0x3] %vm540, %v709
    %v712 = vsel %vm688, %v692, %v543
    %713 = vrot.lane.b32.xlu0 %v543, 112
    %v714 = vpop.permute.xlu0 %713
    %v716 = vsel %vm700, %v704, %v714
    %718 = vrot.lane.b32.xlu0 %v716, 16
    %v719 = vpop.permute.xlu0 %718
    %v721 = vsel %vm542, %v712, %v719
    %v723 = vsel %vm285, %v721, 0
    %725 = vmatprep.subr.mxu0 0.0
    %726 = vmatpush1.msra.mxu0 0.0
    %727 = vmatprep.subr.mxu0 0.0
    %728 = vmatpush1.msra.mxu0 0.0
    %729 = vmatprep.subr.mxu0 0.0
    %730 = vmatpush1.msra.mxu0 0.0
    %731 = vmatprep.subr.mxu0 0.0
    %732 = vmatpush1.msra.mxu0 0.0
    %733 = vmatprep.subr.mxu0 0.0
    %734 = vmatpush1.msra.mxu0 0.0
    %735 = vmatprep.subr.mxu0 0.0
    %736 = vmatpush1.msra.mxu0 0.0
    %737 = vmatprep.subr.mxu0 0.0
    %738 = vmatpush1.msra.mxu0 0.0
    %739 = vmatprep.subr.mxu0 0.0
    %740 = vmatpush1.msra.mxu0 0.0
    %741 = vmatprep.subr.mxu0 0.0
    %742 = vmatpush1.msra.mxu0 0.0
    %743 = vmatprep.subr.mxu0 0.0
    %744 = vmatpush1.msra.mxu0 0.0
    %745 = vmatprep.subr.mxu0 0.0
    %746 = vmatpush1.msra.mxu0 0.0
    %747 = vmatprep.subr.mxu0 0.0
    %748 = vmatpush1.msra.mxu0 0.0
    %749 = vmatprep.subr.mxu0 0.0
    %750 = vmatpush1.msra.mxu0 %v370
    %751 = vmatprep.subr.mxu0 0.0
    %752 = vmatpush1.msra.mxu0 %v369
    %753 = vmatprep.subr.mxu0 0.0
    %754 = vmatpush1.msra.mxu0 %v368
    %755 = vmatprep.subr.mxu0 0.0
    %756 = vmatpush1.msra.mxu0 %v367
    %757 = vmatprep.subr.mxu0 0.0
    %758 = vmatpush2.msra.mxu0 0.0
    %759 = vmatprep.subr.mxu0 0.0
    %760 = vmatpush2.msra.mxu0 0.0
    %761 = vmatprep.subr.mxu0 0.0
    %762 = vmatpush2.msra.mxu0 0.0
    %763 = vmatprep.subr.mxu0 0.0
    %764 = vmatpush2.msra.mxu0 0.0
    %765 = vmatprep.subr.mxu0 0.0
    %766 = vmatpush2.msra.mxu0 0.0
    %767 = vmatprep.subr.mxu0 0.0
    %768 = vmatpush2.msra.mxu0 0.0
    %769 = vmatprep.subr.mxu0 0.0
    %770 = vmatpush2.msra.mxu0 0.0
    %771 = vmatprep.subr.mxu0 0.0
    %772 = vmatpush2.msra.mxu0 0.0
    %773 = vmatprep.subr.mxu0 0.0
    %774 = vmatpush2.msra.mxu0 0.0
    %775 = vmatprep.subr.mxu0 0.0
    %776 = vmatpush2.msra.mxu0 0.0
    %777 = vmatprep.subr.mxu0 0.0
    %778 = vmatpush2.msra.mxu0 0.0
    %779 = vmatprep.subr.mxu0 0.0
    %780 = vmatpush2.msra.mxu0 0.0
    %781 = vmatprep.subr.mxu0 0.0
    %782 = vmatpush2.msra.mxu0 0.0
    %783 = vmatprep.subr.mxu0 0.0
    %784 = vmatpush2.msra.mxu0 0.0
    %785 = vmatprep.subr.mxu0 0.0
    %786 = vmatpush2.msra.mxu0 0.0
    %787 = vmatprep.subr.mxu0 0.0
    %788 = vmatpush2.msra.mxu0 0.0
    %789 = vmatprep.mubr.f32.mxu0 0.0
    %790 = vmatmul.mubr.f32.gmra.mxu0 %v723
    %v791 = vpop.f32.mrf.mxu0
    %v792 = vadd.f32 %v381, %v791
    %v793 = vpop.f32.mrf.mxu0
    %794 = vdwg.mxu0
    %v796 = vrot.slane %v792, 4
    %v798 = vadd.f32 %v252, %v796
    %v799 = vxor.u32 %v798, 2147483648
    %v800 = vmul.f32 %v799, 1.442695
    %v801 = vpow.pop %v800
    %v802 = vadd.f32 %v801, 1.0
    %v803 = vrcp.pop %v802
    %v804 = vmul.f32 1.0, %v803
    %805 = vrot.lane.b32.xlu0 %v796, 96
    %v806 = vpop.permute.xlu0 %805
    %v808 = vmul.f32 %v804, %v806
    %810 = vrot.lane.b32.xlu0 %v808, 32
    %v811 = vpop.permute.xlu0 %810
    %v813 = vadd.f32 %v252, %v811
    %v814 = vtanh.pop %v813
    %v815 = vsub.f32 1.0, %v804
    %817 = vrot.lane.b32.xlu0 %v814, 112
    %v818 = vpop.permute.xlu0 %817
    %v820 = vmul.f32 %v815, %v818
    %v821 = vrot.slane %v721, 4
    %822 = vrot.lane.b32.xlu0 %v821, 16
    %v823 = vpop.permute.xlu0 %822
    %v825 = vmul.f32 %v804, %v823
    %v826 = vadd.f32 %v820, %v825
    %v827 = vrot.slane %v792, 6
    %v829 = vadd.f32 %v257, %v827
    %v830 = vxor.u32 %v829, 2147483648
    %v831 = vmul.f32 %v830, 1.442695
    %v832 = vpow.pop %v831
    %v833 = vadd.f32 %v832, 1.0
    %v834 = vrcp.pop %v833
    %v835 = vmul.f32 1.0, %v834
    %836 = vrot.lane.b32.xlu0 %v827, 96
    %v837 = vpop.permute.xlu0 %836
    %v839 = vmul.f32 %v835, %v837
    %841 = vrot.lane.b32.xlu0 %v839, 32
    %v842 = vpop.permute.xlu0 %841
    %v844 = vadd.f32 %v257, %v842
    %v845 = vtanh.pop %v844
    %v846 = vsub.f32 1.0, %v835
    %848 = vrot.lane.b32.xlu0 %v845, 112
    %v849 = vpop.permute.xlu0 %848
    %v851 = vmul.f32 %v846, %v849
    %v852 = vrot.slane %v721, 6
    %853 = vrot.lane.b32.xlu0 %v852, 48
    %v854 = vpop.permute.xlu0 %853
    %v856 = vmul.f32 %v835, %v854
    %v857 = vadd.f32 %v851, %v856
    %v858 = vld [vmem:[%s2 + $0x4] sm:$0x3]
    %vm859 = vcmp.gt.f32.partialorder %v858, 0.0
    %v860 = vld [vmem:[%s2 + $0xa] sm:$0x3]
    %vm861 = vcmp.gt.f32.partialorder %v860, 0.0
    %v862 = vsel %vm859, 1, 0
    %863 = vset.pattern.permute.xlu0 0
    %864 = vperm.xlu0 %863, %v862
    %v865 = vpop.permute.xlu0 %864
    %vm866 = vcmp.eq.s32.totalorder %v865, 1
    %v868 = vrot.slane %v826, 4
    %869 = vrot.lane.b32.xlu0 %v868, 112
    %v870 = vpop.permute.xlu0 %869
    %v872 = vsel %vm866, %v870, 0.0
    %873 = vst.msk [vmem:[#allocation2 + $0x4] sm:$0x3] %vm523, %v872
    %v874 = vsel %vm861, 1, 0
    %875 = vset.pattern.permute.xlu0 0
    %876 = vperm.xlu0 %875, %v874
    %v877 = vpop.permute.xlu0 %876
    %vm878 = vcmp.eq.s32.totalorder %v877, 1
    %v880 = vrot.slane %v857, 2
    %881 = vrot.lane.b32.xlu0 %v880, 64
    %v882 = vpop.permute.xlu0 %881
    %v884 = vsel %vm878, %v882, 0.0
    %886 = vrot.lane.b32.xlu0 %v884, 16
    %v887 = vpop.permute.xlu0 %886
    %889 = vst.msk [vmem:[#allocation2 + $0xa] sm:$0x3] %vm540, %v887
    %v890 = vsel %vm866, %v870, %v721
    %891 = vrot.lane.b32.xlu0 %v721, 112
    %v892 = vpop.permute.xlu0 %891
    %v894 = vsel %vm878, %v882, %v892
    %896 = vrot.lane.b32.xlu0 %v894, 16
    %v897 = vpop.permute.xlu0 %896
    %v899 = vsel %vm542, %v890, %v897
    %v901 = vsel %vm285, %v899, 0
    %903 = vmatprep.subr.mxu0 0.0
    %904 = vmatpush1.msra.mxu0 0.0
    %905 = vmatprep.subr.mxu0 0.0
    %906 = vmatpush1.msra.mxu0 0.0
    %907 = vmatprep.subr.mxu0 0.0
    %908 = vmatpush1.msra.mxu0 0.0
    %909 = vmatprep.subr.mxu0 0.0
    %910 = vmatpush1.msra.mxu0 0.0
    %911 = vmatprep.subr.mxu0 0.0
    %912 = vmatpush1.msra.mxu0 0.0
    %913 = vmatprep.subr.mxu0 0.0
    %914 = vmatpush1.msra.mxu0 0.0
    %915 = vmatprep.subr.mxu0 0.0
    %916 = vmatpush1.msra.mxu0 0.0
    %917 = vmatprep.subr.mxu0 0.0
    %918 = vmatpush1.msra.mxu0 0.0
    %919 = vmatprep.subr.mxu0 0.0
    %920 = vmatpush1.msra.mxu0 0.0
    %921 = vmatprep.subr.mxu0 0.0
    %922 = vmatpush1.msra.mxu0 0.0
    %923 = vmatprep.subr.mxu0 0.0
    %924 = vmatpush1.msra.mxu0 0.0
    %925 = vmatprep.subr.mxu0 0.0
    %926 = vmatpush1.msra.mxu0 0.0
    %927 = vmatprep.subr.mxu0 0.0
    %928 = vmatpush1.msra.mxu0 %v370
    %929 = vmatprep.subr.mxu0 0.0
    %930 = vmatpush1.msra.mxu0 %v369
    %931 = vmatprep.subr.mxu0 0.0
    %932 = vmatpush1.msra.mxu0 %v368
    %933 = vmatprep.subr.mxu0 0.0
    %934 = vmatpush1.msra.mxu0 %v367
    %935 = vmatprep.subr.mxu0 0.0
    %936 = vmatpush2.msra.mxu0 0.0
    %937 = vmatprep.subr.mxu0 0.0
    %938 = vmatpush2.msra.mxu0 0.0
    %939 = vmatprep.subr.mxu0 0.0
    %940 = vmatpush2.msra.mxu0 0.0
    %941 = vmatprep.subr.mxu0 0.0
    %942 = vmatpush2.msra.mxu0 0.0
    %943 = vmatprep.subr.mxu0 0.0
    %944 = vmatpush2.msra.mxu0 0.0
    %945 = vmatprep.subr.mxu0 0.0
    %946 = vmatpush2.msra.mxu0 0.0
    %947 = vmatprep.subr.mxu0 0.0
    %948 = vmatpush2.msra.mxu0 0.0
    %949 = vmatprep.subr.mxu0 0.0
    %950 = vmatpush2.msra.mxu0 0.0
    %951 = vmatprep.subr.mxu0 0.0
    %952 = vmatpush2.msra.mxu0 0.0
    %953 = vmatprep.subr.mxu0 0.0
    %954 = vmatpush2.msra.mxu0 0.0
    %955 = vmatprep.subr.mxu0 0.0
    %956 = vmatpush2.msra.mxu0 0.0
    %957 = vmatprep.subr.mxu0 0.0
    %958 = vmatpush2.msra.mxu0 0.0
    %959 = vmatprep.subr.mxu0 0.0
    %960 = vmatpush2.msra.mxu0 0.0
    %961 = vmatprep.subr.mxu0 0.0
    %962 = vmatpush2.msra.mxu0 0.0
    %963 = vmatprep.subr.mxu0 0.0
    %964 = vmatpush2.msra.mxu0 0.0
    %965 = vmatprep.subr.mxu0 0.0
    %966 = vmatpush2.msra.mxu0 0.0
    %967 = vmatprep.mubr.f32.mxu0 0.0
    %968 = vmatmul.mubr.f32.gmra.mxu0 %v901
    %v969 = vpop.f32.mrf.mxu0
    %v970 = vadd.f32 %v381, %v969
    %v971 = vpop.f32.mrf.mxu0
    %972 = vdwg.mxu0
    %v974 = vrot.slane %v970, 2
    %v976 = vadd.f32 %v252, %v974
    %v977 = vxor.u32 %v976, 2147483648
    %v978 = vmul.f32 %v977, 1.442695
    %v979 = vpow.pop %v978
    %v980 = vadd.f32 %v979, 1.0
    %v981 = vrcp.pop %v980
    %v982 = vmul.f32 1.0, %v981
    %983 = vrot.lane.b32.xlu0 %v974, 96
    %v984 = vpop.permute.xlu0 %983
    %v986 = vmul.f32 %v982, %v984
    %988 = vrot.lane.b32.xlu0 %v986, 32
    %v989 = vpop.permute.xlu0 %988
    %v991 = vadd.f32 %v252, %v989
    %v992 = vtanh.pop %v991
    %v993 = vsub.f32 1.0, %v982
    %995 = vrot.lane.b32.xlu0 %v992, 112
    %v996 = vpop.permute.xlu0 %995
    %v998 = vmul.f32 %v993, %v996
    %v999 = vrot.slane %v899, 2
    %1000 = vrot.lane.b32.xlu0 %v999, 16
    %v1001 = vpop.permute.xlu0 %1000
    %v1003 = vmul.f32 %v982, %v1001
    %v1004 = vadd.f32 %v998, %v1003
    %v1005 = vadd.f32 %v257, %v970
    %v1006 = vxor.u32 %v1005, 2147483648
    %v1007 = vmul.f32 %v1006, 1.442695
    %v1008 = vpow.pop %v1007
    %v1009 = vadd.f32 %v1008, 1.0
    %v1010 = vrcp.pop %v1009
    %v1011 = vmul.f32 1.0, %v1010
    %1012 = vrot.lane.b32.xlu0 %v970, 96
    %v1013 = vpop.permute.xlu0 %1012
    %v1015 = vmul.f32 %v1011, %v1013
    %1017 = vrot.lane.b32.xlu0 %v1015, 32
    %v1018 = vpop.permute.xlu0 %1017
    %v1020 = vadd.f32 %v257, %v1018
    %v1021 = vtanh.pop %v1020
    %v1022 = vsub.f32 1.0, %v1011
    %1024 = vrot.lane.b32.xlu0 %v1021, 112
    %v1025 = vpop.permute.xlu0 %1024
    %v1027 = vmul.f32 %v1022, %v1025
    %1028 = vrot.lane.b32.xlu0 %v899, 48
    %v1029 = vpop.permute.xlu0 %1028
    %v1031 = vmul.f32 %v1011, %v1029
    %v1032 = vadd.f32 %v1027, %v1031
    %v1033 = vld [vmem:[%s2 + $0x6] sm:$0x3]
    %vm1034 = vcmp.gt.f32.partialorder %v1033, 0.0
    %v1035 = vld [vmem:[%s2 + $0x8] sm:$0x3]
    %vm1036 = vcmp.gt.f32.partialorder %v1035, 0.0
    %v1037 = vsel %vm1034, 1, 0
    %1038 = vset.pattern.permute.xlu0 0
    %1039 = vperm.xlu0 %1038, %v1037
    %v1040 = vpop.permute.xlu0 %1039
    %vm1041 = vcmp.eq.s32.totalorder %v1040, 1
    %v1043 = vrot.slane %v1004, 6
    %1044 = vrot.lane.b32.xlu0 %v1043, 112
    %v1045 = vpop.permute.xlu0 %1044
    %v1047 = vsel %vm1041, %v1045, 0.0
    %1048 = vst.msk [vmem:[#allocation2 + $0x6] sm:$0x3] %vm523, %v1047
    %v1049 = vsel %vm1036, 1, 0
    %1050 = vset.pattern.permute.xlu0 0
    %1051 = vperm.xlu0 %1050, %v1049
    %v1052 = vpop.permute.xlu0 %1051
    %vm1053 = vcmp.eq.s32.totalorder %v1052, 1
    %v1054 = vsel %vm1053, %v1032, 0.0
    %1056 = vrot.lane.b32.xlu0 %v1054, 80
    %v1057 = vpop.permute.xlu0 %1056
    %1059 = vst.msk [vmem:[#allocation2 + $0x8] sm:$0x3] %vm540, %v1057
    %v1060 = vsel %vm1041, %v1045, %v899
    %v1061 = vsel %vm1053, %v1032, %v1029
    %1063 = vrot.lane.b32.xlu0 %v1061, 80
    %v1064 = vpop.permute.xlu0 %1063
    %v1066 = vsel %vm542, %v1060, %v1064
    %v1068 = vsel %vm285, %v1066, 0
    %1070 = vmatprep.subr.mxu0 0.0
    %1071 = vmatpush1.msra.mxu0 0.0
    %1072 = vmatprep.subr.mxu0 0.0
    %1073 = vmatpush1.msra.mxu0 0.0
    %1074 = vmatprep.subr.mxu0 0.0
    %1075 = vmatpush1.msra.mxu0 0.0
    %1076 = vmatprep.subr.mxu0 0.0
    %1077 = vmatpush1.msra.mxu0 0.0
    %1078 = vmatprep.subr.mxu0 0.0
    %1079 = vmatpush1.msra.mxu0 0.0
    %1080 = vmatprep.subr.mxu0 0.0
    %1081 = vmatpush1.msra.mxu0 0.0
    %1082 = vmatprep.subr.mxu0 0.0
    %1083 = vmatpush1.msra.mxu0 0.0
    %1084 = vmatprep.subr.mxu0 0.0
    %1085 = vmatpush1.msra.mxu0 0.0
    %1086 = vmatprep.subr.mxu0 0.0
    %1087 = vmatpush1.msra.mxu0 0.0
    %1088 = vmatprep.subr.mxu0 0.0
    %1089 = vmatpush1.msra.mxu0 0.0
    %1090 = vmatprep.subr.mxu0 0.0
    %1091 = vmatpush1.msra.mxu0 0.0
    %1092 = vmatprep.subr.mxu0 0.0
    %1093 = vmatpush1.msra.mxu0 0.0
    %1094 = vmatprep.subr.mxu0 0.0
    %1095 = vmatpush1.msra.mxu0 %v370
    %1096 = vmatprep.subr.mxu0 0.0
    %1097 = vmatpush1.msra.mxu0 %v369
    %1098 = vmatprep.subr.mxu0 0.0
    %1099 = vmatpush1.msra.mxu0 %v368
    %1100 = vmatprep.subr.mxu0 0.0
    %1101 = vmatpush1.msra.mxu0 %v367
    %1102 = vmatprep.subr.mxu0 0.0
    %1103 = vmatpush2.msra.mxu0 0.0
    %1104 = vmatprep.subr.mxu0 0.0
    %1105 = vmatpush2.msra.mxu0 0.0
    %1106 = vmatprep.subr.mxu0 0.0
    %1107 = vmatpush2.msra.mxu0 0.0
    %1108 = vmatprep.subr.mxu0 0.0
    %1109 = vmatpush2.msra.mxu0 0.0
    %1110 = vmatprep.subr.mxu0 0.0
    %1111 = vmatpush2.msra.mxu0 0.0
    %1112 = vmatprep.subr.mxu0 0.0
    %1113 = vmatpush2.msra.mxu0 0.0
    %1114 = vmatprep.subr.mxu0 0.0
    %1115 = vmatpush2.msra.mxu0 0.0
    %1116 = vmatprep.subr.mxu0 0.0
    %1117 = vmatpush2.msra.mxu0 0.0
    %1118 = vmatprep.subr.mxu0 0.0
    %1119 = vmatpush2.msra.mxu0 0.0
    %1120 = vmatprep.subr.mxu0 0.0
    %1121 = vmatpush2.msra.mxu0 0.0
    %1122 = vmatprep.subr.mxu0 0.0
    %1123 = vmatpush2.msra.mxu0 0.0
    %1124 = vmatprep.subr.mxu0 0.0
    %1125 = vmatpush2.msra.mxu0 0.0
    %1126 = vmatprep.subr.mxu0 0.0
    %1127 = vmatpush2.msra.mxu0 0.0
    %1128 = vmatprep.subr.mxu0 0.0
    %1129 = vmatpush2.msra.mxu0 0.0
    %1130 = vmatprep.subr.mxu0 0.0
    %1131 = vmatpush2.msra.mxu0 0.0
    %1132 = vmatprep.subr.mxu0 0.0
    %1133 = vmatpush2.msra.mxu0 0.0
    %1134 = vmatprep.mubr.f32.mxu0 0.0
    %1135 = vmatmul.mubr.f32.gmra.mxu0 %v1068
    %v1136 = vpop.f32.mrf.mxu0
    %v1137 = vadd.f32 %v381, %v1136
    %v1138 = vpop.f32.mrf.mxu0
    %1139 = vdwg.mxu0
    %v1140 = vadd.f32 %v257, %v1137
    %v1141 = vxor.u32 %v1140, 2147483648
    %v1142 = vmul.f32 %v1141, 1.442695
    %v1143 = vpow.pop %v1142
    %v1144 = vadd.f32 %v1143, 1.0
    %v1145 = vrcp.pop %v1144
    %v1146 = vmul.f32 1.0, %v1145
    %1148 = vrot.lane.b32.xlu0 %v1137, 96
    %v1149 = vpop.permute.xlu0 %1148
    %v1151 = vmul.f32 %v1146, %v1149
    %1153 = vrot.lane.b32.xlu0 %v1151, 32
    %v1154 = vpop.permute.xlu0 %1153
    %v1156 = vadd.f32 %v257, %v1154
    %v1157 = vtanh.pop %v1156
    %v1158 = vsub.f32 1.0, %v1146
    %1160 = vrot.lane.b32.xlu0 %v1157, 112
    %v1161 = vpop.permute.xlu0 %1160
    %v1163 = vmul.f32 %v1158, %v1161
    %1164 = vrot.lane.b32.xlu0 %v1066, 16
    %v1165 = vpop.permute.xlu0 %1164
    %v1167 = vmul.f32 %v1146, %v1165
    %v1168 = vadd.f32 %v1163, %v1167
    %v1169 = vrot.slane %v1137, 2
    %v1171 = vadd.f32 %v252, %v1169
    %v1172 = vxor.u32 %v1171, 2147483648
    %v1173 = vmul.f32 %v1172, 1.442695
    %v1174 = vpow.pop %v1173
    %v1175 = vadd.f32 %v1174, 1.0
    %v1176 = vrcp.pop %v1175
    %v1177 = vmul.f32 1.0, %v1176
    %1178 = vrot.lane.b32.xlu0 %v1169, 96
    %v1179 = vpop.permute.xlu0 %1178
    %v1181 = vmul.f32 %v1177, %v1179
    %1183 = vrot.lane.b32.xlu0 %v1181, 32
    %v1184 = vpop.permute.xlu0 %1183
    %v1186 = vadd.f32 %v252, %v1184
    %v1187 = vtanh.pop %v1186
    %v1188 = vsub.f32 1.0, %v1177
    %1190 = vrot.lane.b32.xlu0 %v1187, 112
    %v1191 = vpop.permute.xlu0 %1190
    %v1193 = vmul.f32 %v1188, %v1191
    %v1194 = vrot.slane %v1066, 2
    %1195 = vrot.lane.b32.xlu0 %v1194, 48
    %v1196 = vpop.permute.xlu0 %1195
    %v1198 = vmul.f32 %v1177, %v1196
    %v1199 = vadd.f32 %v1193, %v1198
    %v1200 = vld [vmem:[%s2 + $0x8] sm:$0x3]
    %vm1201 = vcmp.gt.f32.partialorder %v1200, 0.0
    %v1202 = vld [vmem:[%s2 + $0x6] sm:$0x3]
    %vm1203 = vcmp.gt.f32.partialorder %v1202, 0.0
    %v1204 = vsel %vm1201, 1, 0
    %1205 = vset.pattern.permute.xlu0 0
    %1206 = vperm.xlu0 %1205, %v1204
    %v1207 = vpop.permute.xlu0 %1206
    %vm1208 = vcmp.eq.s32.totalorder %v1207, 1
    %v1209 = vsel %vm1208, %v1168, 0.0
    %1211 = vrot.lane.b32.xlu0 %v1209, 112
    %v1212 = vpop.permute.xlu0 %1211
    %1214 = vst.msk [vmem:[#allocation2 + $0x8] sm:$0x3] %vm523, %v1212
    %v1215 = vsel %vm1203, 1, 0
    %1216 = vset.pattern.permute.xlu0 0
    %1217 = vperm.xlu0 %1216, %v1215
    %v1218 = vpop.permute.xlu0 %1217
    %vm1219 = vcmp.eq.s32.totalorder %v1218, 1
    %v1221 = vrot.slane %v1199, 6
    %1222 = vrot.lane.b32.xlu0 %v1221, 64
    %v1223 = vpop.permute.xlu0 %1222
    %v1225 = vsel %vm1219, %v1223, 0.0
    %1227 = vrot.lane.b32.xlu0 %v1225, 16
    %v1228 = vpop.permute.xlu0 %1227
    %1230 = vst.msk [vmem:[#allocation2 + $0x6] sm:$0x3] %vm540, %v1228
    %v1231 = vsel %vm1208, %v1168, %v1165
    %1232 = vrot.lane.b32.xlu0 %v1066, 112
    %v1233 = vpop.permute.xlu0 %1232
    %v1235 = vsel %vm1219, %v1223, %v1233
    %1237 = vrot.lane.b32.xlu0 %v1231, 112
    %v1238 = vpop.permute.xlu0 %1237
    %1241 = vrot.lane.b32.xlu0 %v1235, 16
    %v1242 = vpop.permute.xlu0 %1241
    %v1244 = vsel %vm542, %v1238, %v1242
    %v1246 = vsel %vm285, %v1244, 0
    %1248 = vmatprep.subr.mxu0 0.0
    %1249 = vmatpush1.msra.mxu0 0.0
    %1250 = vmatprep.subr.mxu0 0.0
    %1251 = vmatpush1.msra.mxu0 0.0
    %1252 = vmatprep.subr.mxu0 0.0
    %1253 = vmatpush1.msra.mxu0 0.0
    %1254 = vmatprep.subr.mxu0 0.0
    %1255 = vmatpush1.msra.mxu0 0.0
    %1256 = vmatprep.subr.mxu0 0.0
    %1257 = vmatpush1.msra.mxu0 0.0
    %1258 = vmatprep.subr.mxu0 0.0
    %1259 = vmatpush1.msra.mxu0 0.0
    %1260 = vmatprep.subr.mxu0 0.0
    %1261 = vmatpush1.msra.mxu0 0.0
    %1262 = vmatprep.subr.mxu0 0.0
    %1263 = vmatpush1.msra.mxu0 0.0
    %1264 = vmatprep.subr.mxu0 0.0
    %1265 = vmatpush1.msra.mxu0 0.0
    %1266 = vmatprep.subr.mxu0 0.0
    %1267 = vmatpush1.msra.mxu0 0.0
    %1268 = vmatprep.subr.mxu0 0.0
    %1269 = vmatpush1.msra.mxu0 0.0
    %1270 = vmatprep.subr.mxu0 0.0
    %1271 = vmatpush1.msra.mxu0 0.0
    %1272 = vmatprep.subr.mxu0 0.0
    %1273 = vmatpush1.msra.mxu0 %v370
    %1274 = vmatprep.subr.mxu0 0.0
    %1275 = vmatpush1.msra.mxu0 %v369
    %1276 = vmatprep.subr.mxu0 0.0
    %1277 = vmatpush1.msra.mxu0 %v368
    %1278 = vmatprep.subr.mxu0 0.0
    %1279 = vmatpush1.msra.mxu0 %v367
    %1280 = vmatprep.subr.mxu0 0.0
    %1281 = vmatpush2.msra.mxu0 0.0
    %1282 = vmatprep.subr.mxu0 0.0
    %1283 = vmatpush2.msra.mxu0 0.0
    %1284 = vmatprep.subr.mxu0 0.0
    %1285 = vmatpush2.msra.mxu0 0.0
    %1286 = vmatprep.subr.mxu0 0.0
    %1287 = vmatpush2.msra.mxu0 0.0
    %1288 = vmatprep.subr.mxu0 0.0
    %1289 = vmatpush2.msra.mxu0 0.0
    %1290 = vmatprep.subr.mxu0 0.0
    %1291 = vmatpush2.msra.mxu0 0.0
    %1292 = vmatprep.subr.mxu0 0.0
    %1293 = vmatpush2.msra.mxu0 0.0
    %1294 = vmatprep.subr.mxu0 0.0
    %1295 = vmatpush2.msra.mxu0 0.0
    %1296 = vmatprep.subr.mxu0 0.0
    %1297 = vmatpush2.msra.mxu0 0.0
    %1298 = vmatprep.subr.mxu0 0.0
    %1299 = vmatpush2.msra.mxu0 0.0
    %1300 = vmatprep.subr.mxu0 0.0
    %1301 = vmatpush2.msra.mxu0 0.0
    %1302 = vmatprep.subr.mxu0 0.0
    %1303 = vmatpush2.msra.mxu0 0.0
    %1304 = vmatprep.subr.mxu0 0.0
    %1305 = vmatpush2.msra.mxu0 0.0
    %1306 = vmatprep.subr.mxu0 0.0
    %1307 = vmatpush2.msra.mxu0 0.0
    %1308 = vmatprep.subr.mxu0 0.0
    %1309 = vmatpush2.msra.mxu0 0.0
    %1310 = vmatprep.subr.mxu0 0.0
    %1311 = vmatpush2.msra.mxu0 0.0
    %1312 = vmatprep.mubr.f32.mxu0 0.0
    %1313 = vmatmul.mubr.f32.gmra.mxu0 %v1246
    %v1314 = vpop.f32.mrf.mxu0
    %v1315 = vadd.f32 %v381, %v1314
    %v1316 = vpop.f32.mrf.mxu0
    %1317 = vdwg.mxu0
    %v1319 = vrot.slane %v1315, 6
    %v1321 = vadd.f32 %v257, %v1319
    %v1322 = vxor.u32 %v1321, 2147483648
    %v1323 = vmul.f32 %v1322, 1.442695
    %v1324 = vpow.pop %v1323
    %v1325 = vadd.f32 %v1324, 1.0
    %v1326 = vrcp.pop %v1325
    %v1327 = vmul.f32 1.0, %v1326
    %1328 = vrot.lane.b32.xlu0 %v1319, 96
    %v1329 = vpop.permute.xlu0 %1328
    %v1331 = vmul.f32 %v1327, %v1329
    %1333 = vrot.lane.b32.xlu0 %v1331, 32
    %v1334 = vpop.permute.xlu0 %1333
    %v1336 = vadd.f32 %v257, %v1334
    %v1337 = vtanh.pop %v1336
    %v1338 = vsub.f32 1.0, %v1327
    %1340 = vrot.lane.b32.xlu0 %v1337, 112
    %v1341 = vpop.permute.xlu0 %1340
    %v1343 = vmul.f32 %v1338, %v1341
    %v1344 = vrot.slane %v1244, 6
    %1345 = vrot.lane.b32.xlu0 %v1344, 16
    %v1346 = vpop.permute.xlu0 %1345
    %v1348 = vmul.f32 %v1327, %v1346
    %v1349 = vadd.f32 %v1343, %v1348
    %v1350 = vrot.slane %v1315, 4
    %v1352 = vadd.f32 %v252, %v1350
    %v1353 = vxor.u32 %v1352, 2147483648
    %v1354 = vmul.f32 %v1353, 1.442695
    %v1355 = vpow.pop %v1354
    %v1356 = vadd.f32 %v1355, 1.0
    %v1357 = vrcp.pop %v1356
    %v1358 = vmul.f32 1.0, %v1357
    %1359 = vrot.lane.b32.xlu0 %v1350, 96
    %v1360 = vpop.permute.xlu0 %1359
    %v1362 = vmul.f32 %v1358, %v1360
    %1364 = vrot.lane.b32.xlu0 %v1362, 32
    %v1365 = vpop.permute.xlu0 %1364
    %v1367 = vadd.f32 %v252, %v1365
    %v1368 = vtanh.pop %v1367
    %v1369 = vsub.f32 1.0, %v1358
    %1371 = vrot.lane.b32.xlu0 %v1368, 112
    %v1372 = vpop.permute.xlu0 %1371
    %v1374 = vmul.f32 %v1369, %v1372
    %v1375 = vrot.slane %v1244, 4
    %1376 = vrot.lane.b32.xlu0 %v1375, 48
    %v1377 = vpop.permute.xlu0 %1376
    %v1379 = vmul.f32 %v1358, %v1377
    %v1380 = vadd.f32 %v1374, %v1379
    %v1381 = vld [vmem:[%s2 + $0xa] sm:$0x3]
    %vm1382 = vcmp.gt.f32.partialorder %v1381, 0.0
    %v1383 = vld [vmem:[%s2 + $0x4] sm:$0x3]
    %vm1384 = vcmp.gt.f32.partialorder %v1383, 0.0
    %v1385 = vsel %vm1382, 1, 0
    %1386 = vset.pattern.permute.xlu0 0
    %1387 = vperm.xlu0 %1386, %v1385
    %v1388 = vpop.permute.xlu0 %1387
    %vm1389 = vcmp.eq.s32.totalorder %v1388, 1
    %v1391 = vrot.slane %v1349, 2
    %1392 = vrot.lane.b32.xlu0 %v1391, 112
    %v1393 = vpop.permute.xlu0 %1392
    %v1395 = vsel %vm1389, %v1393, 0.0
    %1396 = vst.msk [vmem:[#allocation2 + $0xa] sm:$0x3] %vm523, %v1395
    %v1397 = vsel %vm1384, 1, 0
    %1398 = vset.pattern.permute.xlu0 0
    %1399 = vperm.xlu0 %1398, %v1397
    %v1400 = vpop.permute.xlu0 %1399
    %vm1401 = vcmp.eq.s32.totalorder %v1400, 1
    %v1403 = vrot.slane %v1380, 4
    %1404 = vrot.lane.b32.xlu0 %v1403, 64
    %v1405 = vpop.permute.xlu0 %1404
    %v1407 = vsel %vm1401, %v1405, 0.0
    %1409 = vrot.lane.b32.xlu0 %v1407, 16
    %v1410 = vpop.permute.xlu0 %1409
    %1412 = vst.msk [vmem:[#allocation2 + $0x4] sm:$0x3] %vm540, %v1410
    %v1413 = vsel %vm1389, %v1393, %v1244
    %1414 = vrot.lane.b32.xlu0 %v1244, 112
    %v1415 = vpop.permute.xlu0 %1414
    %v1417 = vsel %vm1401, %v1405, %v1415
    %1419 = vrot.lane.b32.xlu0 %v1417, 16
    %v1420 = vpop.permute.xlu0 %1419
    %v1422 = vsel %vm542, %v1413, %v1420
    %v1424 = vsel %vm285, %v1422, 0
    %1426 = vmatprep.subr.mxu0 0.0
    %1427 = vmatpush1.msra.mxu0 0.0
    %1428 = vmatprep.subr.mxu0 0.0
    %1429 = vmatpush1.msra.mxu0 0.0
    %1430 = vmatprep.subr.mxu0 0.0
    %1431 = vmatpush1.msra.mxu0 0.0
    %1432 = vmatprep.subr.mxu0 0.0
    %1433 = vmatpush1.msra.mxu0 0.0
    %1434 = vmatprep.subr.mxu0 0.0
    %1435 = vmatpush1.msra.mxu0 0.0
    %1436 = vmatprep.subr.mxu0 0.0
    %1437 = vmatpush1.msra.mxu0 0.0
    %1438 = vmatprep.subr.mxu0 0.0
    %1439 = vmatpush1.msra.mxu0 0.0
    %1440 = vmatprep.subr.mxu0 0.0
    %1441 = vmatpush1.msra.mxu0 0.0
    %1442 = vmatprep.subr.mxu0 0.0
    %1443 = vmatpush1.msra.mxu0 0.0
    %1444 = vmatprep.subr.mxu0 0.0
    %1445 = vmatpush1.msra.mxu0 0.0
    %1446 = vmatprep.subr.mxu0 0.0
    %1447 = vmatpush1.msra.mxu0 0.0
    %1448 = vmatprep.subr.mxu0 0.0
    %1449 = vmatpush1.msra.mxu0 0.0
    %1450 = vmatprep.subr.mxu0 0.0
    %1451 = vmatpush1.msra.mxu0 %v370
    %1452 = vmatprep.subr.mxu0 0.0
    %1453 = vmatpush1.msra.mxu0 %v369
    %1454 = vmatprep.subr.mxu0 0.0
    %1455 = vmatpush1.msra.mxu0 %v368
    %1456 = vmatprep.subr.mxu0 0.0
    %1457 = vmatpush1.msra.mxu0 %v367
    %1458 = vmatprep.subr.mxu0 0.0
    %1459 = vmatpush2.msra.mxu0 0.0
    %1460 = vmatprep.subr.mxu0 0.0
    %1461 = vmatpush2.msra.mxu0 0.0
    %1462 = vmatprep.subr.mxu0 0.0
    %1463 = vmatpush2.msra.mxu0 0.0
    %1464 = vmatprep.subr.mxu0 0.0
    %1465 = vmatpush2.msra.mxu0 0.0
    %1466 = vmatprep.subr.mxu0 0.0
    %1467 = vmatpush2.msra.mxu0 0.0
    %1468 = vmatprep.subr.mxu0 0.0
    %1469 = vmatpush2.msra.mxu0 0.0
    %1470 = vmatprep.subr.mxu0 0.0
    %1471 = vmatpush2.msra.mxu0 0.0
    %1472 = vmatprep.subr.mxu0 0.0
    %1473 = vmatpush2.msra.mxu0 0.0
    %1474 = vmatprep.subr.mxu0 0.0
    %1475 = vmatpush2.msra.mxu0 0.0
    %1476 = vmatprep.subr.mxu0 0.0
    %1477 = vmatpush2.msra.mxu0 0.0
    %1478 = vmatprep.subr.mxu0 0.0
    %1479 = vmatpush2.msra.mxu0 0.0
    %1480 = vmatprep.subr.mxu0 0.0
    %1481 = vmatpush2.msra.mxu0 0.0
    %1482 = vmatprep.subr.mxu0 0.0
    %1483 = vmatpush2.msra.mxu0 0.0
    %1484 = vmatprep.subr.mxu0 0.0
    %1485 = vmatpush2.msra.mxu0 0.0
    %1486 = vmatprep.subr.mxu0 0.0
    %1487 = vmatpush2.msra.mxu0 0.0
    %1488 = vmatprep.subr.mxu0 0.0
    %1489 = vmatpush2.msra.mxu0 0.0
    %1490 = vmatprep.mubr.f32.mxu0 0.0
    %1491 = vmatmul.mubr.f32.gmra.mxu0 %v1424
    %v1492 = vpop.f32.mrf.mxu0
    %v1493 = vadd.f32 %v381, %v1492
    %v1494 = vpop.f32.mrf.mxu0
    %1495 = vdwg.mxu0
    %v1497 = vrot.slane %v1493, 4
    %v1499 = vadd.f32 %v257, %v1497
    %v1500 = vxor.u32 %v1499, 2147483648
    %v1501 = vmul.f32 %v1500, 1.442695
    %v1502 = vpow.pop %v1501
    %v1503 = vadd.f32 %v1502, 1.0
    %v1504 = vrcp.pop %v1503
    %v1505 = vmul.f32 1.0, %v1504
    %1506 = vrot.lane.b32.xlu0 %v1497, 96
    %v1507 = vpop.permute.xlu0 %1506
    %v1509 = vmul.f32 %v1505, %v1507
    %1511 = vrot.lane.b32.xlu0 %v1509, 32
    %v1512 = vpop.permute.xlu0 %1511
    %v1514 = vadd.f32 %v257, %v1512
    %v1515 = vtanh.pop %v1514
    %v1516 = vsub.f32 1.0, %v1505
    %1518 = vrot.lane.b32.xlu0 %v1515, 112
    %v1519 = vpop.permute.xlu0 %1518
    %v1521 = vmul.f32 %v1516, %v1519
    %v1522 = vrot.slane %v1422, 4
    %1523 = vrot.lane.b32.xlu0 %v1522, 16
    %v1524 = vpop.permute.xlu0 %1523
    %v1526 = vmul.f32 %v1505, %v1524
    %v1527 = vadd.f32 %v1521, %v1526
    %v1528 = vrot.slane %v1493, 6
    %v1530 = vadd.f32 %v252, %v1528
    %v1531 = vxor.u32 %v1530, 2147483648
    %v1532 = vmul.f32 %v1531, 1.442695
    %v1533 = vpow.pop %v1532
    %v1534 = vadd.f32 %v1533, 1.0
    %v1535 = vrcp.pop %v1534
    %v1536 = vmul.f32 1.0, %v1535
    %1537 = vrot.lane.b32.xlu0 %v1528, 96
    %v1538 = vpop.permute.xlu0 %1537
    %v1540 = vmul.f32 %v1536, %v1538
    %1542 = vrot.lane.b32.xlu0 %v1540, 32
    %v1543 = vpop.permute.xlu0 %1542
    %v1545 = vadd.f32 %v252, %v1543
    %v1546 = vtanh.pop %v1545
    %v1547 = vsub.f32 1.0, %v1536
    %1549 = vrot.lane.b32.xlu0 %v1546, 112
    %v1550 = vpop.permute.xlu0 %1549
    %v1552 = vmul.f32 %v1547, %v1550
    %v1553 = vrot.slane %v1422, 6
    %1554 = vrot.lane.b32.xlu0 %v1553, 48
    %v1555 = vpop.permute.xlu0 %1554
    %v1557 = vmul.f32 %v1536, %v1555
    %v1558 = vadd.f32 %v1552, %v1557
    %v1559 = vld [vmem:[%s2 + $0xc] sm:$0x3]
    %vm1560 = vcmp.gt.f32.partialorder %v1559, 0.0
    %v1561 = vld [vmem:[%s2 + $0x2] sm:$0x3]
    %vm1562 = vcmp.gt.f32.partialorder %v1561, 0.0
    %v1563 = vsel %vm1560, 1, 0
    %1564 = vset.pattern.permute.xlu0 0
    %1565 = vperm.xlu0 %1564, %v1563
    %v1566 = vpop.permute.xlu0 %1565
    %vm1567 = vcmp.eq.s32.totalorder %v1566, 1
    %v1569 = vrot.slane %v1527, 4
    %1570 = vrot.lane.b32.xlu0 %v1569, 112
    %v1571 = vpop.permute.xlu0 %1570
    %v1573 = vsel %vm1567, %v1571, 0.0
    %1574 = vst.msk [vmem:[#allocation2 + $0xc] sm:$0x3] %vm523, %v1573
    %v1575 = vsel %vm1562, 1, 0
    %1576 = vset.pattern.permute.xlu0 0
    %1577 = vperm.xlu0 %1576, %v1575
    %v1578 = vpop.permute.xlu0 %1577
    %vm1579 = vcmp.eq.s32.totalorder %v1578, 1
    %v1581 = vrot.slane %v1558, 2
    %1582 = vrot.lane.b32.xlu0 %v1581, 64
    %v1583 = vpop.permute.xlu0 %1582
    %v1585 = vsel %vm1579, %v1583, 0.0
    %1587 = vrot.lane.b32.xlu0 %v1585, 16
    %v1588 = vpop.permute.xlu0 %1587
    %1590 = vst.msk [vmem:[#allocation2 + $0x2] sm:$0x3] %vm540, %v1588
    %v1591 = vsel %vm1567, %v1571, %v1422
    %1592 = vrot.lane.b32.xlu0 %v1422, 112
    %v1593 = vpop.permute.xlu0 %1592
    %v1595 = vsel %vm1579, %v1583, %v1593
    %1597 = vrot.lane.b32.xlu0 %v1595, 16
    %v1598 = vpop.permute.xlu0 %1597
    %v1600 = vsel %vm542, %v1591, %v1598
    %v1602 = vsel %vm285, %v1600, 0
    %1604 = vmatprep.subr.mxu0 0.0
    %1605 = vmatpush1.msra.mxu0 0.0
    %1606 = vmatprep.subr.mxu0 0.0
    %1607 = vmatpush1.msra.mxu0 0.0
    %1608 = vmatprep.subr.mxu0 0.0
    %1609 = vmatpush1.msra.mxu0 0.0
    %1610 = vmatprep.subr.mxu0 0.0
    %1611 = vmatpush1.msra.mxu0 0.0
    %1612 = vmatprep.subr.mxu0 0.0
    %1613 = vmatpush1.msra.mxu0 0.0
    %1614 = vmatprep.subr.mxu0 0.0
    %1615 = vmatpush1.msra.mxu0 0.0
    %1616 = vmatprep.subr.mxu0 0.0
    %1617 = vmatpush1.msra.mxu0 0.0
    %1618 = vmatprep.subr.mxu0 0.0
    %1619 = vmatpush1.msra.mxu0 0.0
    %1620 = vmatprep.subr.mxu0 0.0
    %1621 = vmatpush1.msra.mxu0 0.0
    %1622 = vmatprep.subr.mxu0 0.0
    %1623 = vmatpush1.msra.mxu0 0.0
    %1624 = vmatprep.subr.mxu0 0.0
    %1625 = vmatpush1.msra.mxu0 0.0
    %1626 = vmatprep.subr.mxu0 0.0
    %1627 = vmatpush1.msra.mxu0 0.0
    %1628 = vmatprep.subr.mxu0 0.0
    %1629 = vmatpush1.msra.mxu0 %v370
    %1630 = vmatprep.subr.mxu0 0.0
    %1631 = vmatpush1.msra.mxu0 %v369
    %1632 = vmatprep.subr.mxu0 0.0
    %1633 = vmatpush1.msra.mxu0 %v368
    %1634 = vmatprep.subr.mxu0 0.0
    %1635 = vmatpush1.msra.mxu0 %v367
    %1636 = vmatprep.subr.mxu0 0.0
    %1637 = vmatpush2.msra.mxu0 0.0
    %1638 = vmatprep.subr.mxu0 0.0
    %1639 = vmatpush2.msra.mxu0 0.0
    %1640 = vmatprep.subr.mxu0 0.0
    %1641 = vmatpush2.msra.mxu0 0.0
    %1642 = vmatprep.subr.mxu0 0.0
    %1643 = vmatpush2.msra.mxu0 0.0
    %1644 = vmatprep.subr.mxu0 0.0
    %1645 = vmatpush2.msra.mxu0 0.0
    %1646 = vmatprep.subr.mxu0 0.0
    %1647 = vmatpush2.msra.mxu0 0.0
    %1648 = vmatprep.subr.mxu0 0.0
    %1649 = vmatpush2.msra.mxu0 0.0
    %1650 = vmatprep.subr.mxu0 0.0
    %1651 = vmatpush2.msra.mxu0 0.0
    %1652 = vmatprep.subr.mxu0 0.0
    %1653 = vmatpush2.msra.mxu0 0.0
    %1654 = vmatprep.subr.mxu0 0.0
    %1655 = vmatpush2.msra.mxu0 0.0
    %1656 = vmatprep.subr.mxu0 0.0
    %1657 = vmatpush2.msra.mxu0 0.0
    %1658 = vmatprep.subr.mxu0 0.0
    %1659 = vmatpush2.msra.mxu0 0.0
    %1660 = vmatprep.subr.mxu0 0.0
    %1661 = vmatpush2.msra.mxu0 0.0
    %1662 = vmatprep.subr.mxu0 0.0
    %1663 = vmatpush2.msra.mxu0 0.0
    %1664 = vmatprep.subr.mxu0 0.0
    %1665 = vmatpush2.msra.mxu0 0.0
    %1666 = vmatprep.subr.mxu0 0.0
    %1667 = vmatpush2.msra.mxu0 0.0
    %1668 = vmatprep.mubr.f32.mxu0 0.0
    %1669 = vmatmul.mubr.f32.gmra.mxu0 %v1602
    %v1670 = vpop.f32.mrf.mxu0
    %v1671 = vadd.f32 %v381, %v1670
    %v1672 = vpop.f32.mrf.mxu0
    %1673 = vdwg.mxu0
    %v1675 = vrot.slane %v1671, 2
    %v1677 = vadd.f32 %v257, %v1675
    %v1678 = vxor.u32 %v1677, 2147483648
    %v1679 = vmul.f32 %v1678, 1.442695
    %v1680 = vpow.pop %v1679
    %v1681 = vadd.f32 %v1680, 1.0
    %v1682 = vrcp.pop %v1681
    %v1683 = vmul.f32 1.0, %v1682
    %1684 = vrot.lane.b32.xlu0 %v1675, 96
    %v1685 = vpop.permute.xlu0 %1684
    %v1687 = vmul.f32 %v1683, %v1685
    %1689 = vrot.lane.b32.xlu0 %v1687, 32
    %v1690 = vpop.permute.xlu0 %1689
    %v1692 = vadd.f32 %v257, %v1690
    %v1693 = vtanh.pop %v1692
    %v1694 = vsub.f32 1.0, %v1683
    %1696 = vrot.lane.b32.xlu0 %v1693, 112
    %v1697 = vpop.permute.xlu0 %1696
    %v1699 = vmul.f32 %v1694, %v1697
    %v1700 = vrot.slane %v1600, 2
    %1701 = vrot.lane.b32.xlu0 %v1700, 16
    %v1702 = vpop.permute.xlu0 %1701
    %v1704 = vmul.f32 %v1683, %v1702
    %v1705 = vadd.f32 %v1699, %v1704
    %v1706 = vadd.f32 %v252, %v1671
    %v1707 = vxor.u32 %v1706, 2147483648
    %v1708 = vmul.f32 %v1707, 1.442695
    %v1709 = vpow.pop %v1708
    %v1710 = vadd.f32 %v1709, 1.0
    %v1711 = vrcp.pop %v1710
    %v1712 = vmul.f32 1.0, %v1711
    %1713 = vrot.lane.b32.xlu0 %v1671, 96
    %v1714 = vpop.permute.xlu0 %1713
    %v1716 = vmul.f32 %v1712, %v1714
    %1718 = vrot.lane.b32.xlu0 %v1716, 32
    %v1719 = vpop.permute.xlu0 %1718
    %v1721 = vadd.f32 %v252, %v1719
    %v1722 = vtanh.pop %v1721
    %v1723 = vsub.f32 1.0, %v1712
    %1725 = vrot.lane.b32.xlu0 %v1722, 112
    %v1726 = vpop.permute.xlu0 %1725
    %v1728 = vmul.f32 %v1723, %v1726
    %1729 = vrot.lane.b32.xlu0 %v1600, 48
    %v1730 = vpop.permute.xlu0 %1729
    %v1732 = vmul.f32 %v1712, %v1730
    %v1733 = vadd.f32 %v1728, %v1732
    %v1734 = vld [vmem:[%s2 + $0xe] sm:$0x3]
    %vm1735 = vcmp.gt.f32.partialorder %v1734, 0.0
    %v1736 = vld [vmem:[%s2] sm:$0x3]
    %vm1737 = vcmp.gt.f32.partialorder %v1736, 0.0
    %v1738 = vsel %vm1735, 1, 0
    %1739 = vset.pattern.permute.xlu0 0
    %1740 = vperm.xlu0 %1739, %v1738
    %v1741 = vpop.permute.xlu0 %1740
    %vm1742 = vcmp.eq.s32.totalorder %v1741, 1
    %v1744 = vrot.slane %v1705, 6
    %1745 = vrot.lane.b32.xlu0 %v1744, 112
    %v1746 = vpop.permute.xlu0 %1745
    %v1748 = vsel %vm1742, %v1746, 0.0
    %1749 = vst.msk [vmem:[#allocation2 + $0xe] sm:$0x3] %vm523, %v1748
    %v1750 = vsel %vm1737, 1, 0
    %1751 = vset.pattern.permute.xlu0 0
    %1752 = vperm.xlu0 %1751, %v1750
    %v1753 = vpop.permute.xlu0 %1752
    %vm1754 = vcmp.eq.s32.totalorder %v1753, 1
    %v1755 = vsel %vm1754, %v1733, 0.0
    %1757 = vrot.lane.b32.xlu0 %v1755, 80
    %v1758 = vpop.permute.xlu0 %1757
    %1760 = vst.msk [vmem:[#allocation2] sm:$0x3] %vm540, %v1758
    %v1761 = vsel %vm1742, %v1746, %v1600
    %v1762 = vsel %vm1754, %v1733, %v1730
    %1764 = vrot.lane.b32.xlu0 %v1762, 80
    %v1765 = vpop.permute.xlu0 %1764
    %v1767 = vsel %vm542, %v1761, %v1765
    %v1768 = vld [vmem:[%s9] sm:$0xff]
    %v1769 = vld [vmem:[%s9 + $0x8] sm:$0xff]
    %v1770 = vld [vmem:[%s9 + $0x10] sm:$0xff]
    %v1771 = vld [vmem:[%s9 + $0x18] sm:$0xff]
    %v1772 = vld [vmem:[#allocation4] sm:$0x1]
    %v1774 = vlaneseq
    %v1775 = vshrl.u32 %v1774, 7
    %v1776 = vsub.s32 0, %v1775
    %v1777 = vrot.slane %v1772, %v1776
    %v1780 = vsel %vm285, %v1767, 0
    %1782 = vmatprep.subr.mxu0 0.0
    %1783 = vmatpush1.msra.mxu0 0.0
    %1784 = vmatprep.subr.mxu0 0.0
    %1785 = vmatpush1.msra.mxu0 0.0
    %1786 = vmatprep.subr.mxu0 0.0
    %1787 = vmatpush1.msra.mxu0 0.0
    %1788 = vmatprep.subr.mxu0 0.0
    %1789 = vmatpush1.msra.mxu0 0.0
    %1790 = vmatprep.subr.mxu0 0.0
    %1791 = vmatpush1.msra.mxu0 0.0
    %1792 = vmatprep.subr.mxu0 0.0
    %1793 = vmatpush1.msra.mxu0 0.0
    %1794 = vmatprep.subr.mxu0 0.0
    %1795 = vmatpush1.msra.mxu0 0.0
    %1796 = vmatprep.subr.mxu0 0.0
    %1797 = vmatpush1.msra.mxu0 0.0
    %1798 = vmatprep.subr.mxu0 0.0
    %1799 = vmatpush1.msra.mxu0 0.0
    %1800 = vmatprep.subr.mxu0 0.0
    %1801 = vmatpush1.msra.mxu0 0.0
    %1802 = vmatprep.subr.mxu0 0.0
    %1803 = vmatpush1.msra.mxu0 0.0
    %1804 = vmatprep.subr.mxu0 0.0
    %1805 = vmatpush1.msra.mxu0 0.0
    %1806 = vmatprep.subr.mxu0 0.0
    %1807 = vmatpush1.msra.mxu0 %v1771
    %1808 = vmatprep.subr.mxu0 0.0
    %1809 = vmatpush1.msra.mxu0 %v1770
    %1810 = vmatprep.subr.mxu0 0.0
    %1811 = vmatpush1.msra.mxu0 %v1769
    %1812 = vmatprep.subr.mxu0 0.0
    %1813 = vmatpush1.msra.mxu0 %v1768
    %1814 = vmatprep.subr.mxu0 0.0
    %1815 = vmatpush2.msra.mxu0 0.0
    %1816 = vmatprep.subr.mxu0 0.0
    %1817 = vmatpush2.msra.mxu0 0.0
    %1818 = vmatprep.subr.mxu0 0.0
    %1819 = vmatpush2.msra.mxu0 0.0
    %1820 = vmatprep.subr.mxu0 0.0
    %1821 = vmatpush2.msra.mxu0 0.0
    %1822 = vmatprep.subr.mxu0 0.0
    %1823 = vmatpush2.msra.mxu0 0.0
    %1824 = vmatprep.subr.mxu0 0.0
    %1825 = vmatpush2.msra.mxu0 0.0
    %1826 = vmatprep.subr.mxu0 0.0
    %1827 = vmatpush2.msra.mxu0 0.0
    %1828 = vmatprep.subr.mxu0 0.0
    %1829 = vmatpush2.msra.mxu0 0.0
    %1830 = vmatprep.subr.mxu0 0.0
    %1831 = vmatpush2.msra.mxu0 0.0
    %1832 = vmatprep.subr.mxu0 0.0
    %1833 = vmatpush2.msra.mxu0 0.0
    %1834 = vmatprep.subr.mxu0 0.0
    %1835 = vmatpush2.msra.mxu0 0.0
    %1836 = vmatprep.subr.mxu0 0.0
    %1837 = vmatpush2.msra.mxu0 0.0
    %1838 = vmatprep.subr.mxu0 0.0
    %1839 = vmatpush2.msra.mxu0 0.0
    %1840 = vmatprep.subr.mxu0 0.0
    %1841 = vmatpush2.msra.mxu0 0.0
    %1842 = vmatprep.subr.mxu0 0.0
    %1843 = vmatpush2.msra.mxu0 0.0
    %1844 = vmatprep.subr.mxu0 0.0
    %1845 = vmatpush2.msra.mxu0 0.0
    %1846 = vmatprep.mubr.f32.mxu0 0.0
    %1847 = vmatmul.mubr.f32.gmra.mxu0 %v1780
    %v1848 = vpop.f32.mrf.mxu0
    %v1849 = vadd.f32 %v1777, %v1848
    %v1850 = vpop.f32.mrf.mxu0
    %1851 = vdwg.mxu0
    %v1852 = vtanh.pop %v1849
    %v1854 = vlaneseq
    %v1855 = vshrl.u32 %v1854, 7
    %v1856 = vsub.s32 0, %v1855
    %v1857 = vrot.slane %v376, %v1856
    %v1860 = vsel %vm285, %v1852, 0
    %1862 = vmatprep.subr.mxu0 0.0
    %1863 = vmatpush1.msra.mxu0 0.0
    %1864 = vmatprep.subr.mxu0 0.0
    %1865 = vmatpush1.msra.mxu0 0.0
    %1866 = vmatprep.subr.mxu0 0.0
    %1867 = vmatpush1.msra.mxu0 0.0
    %1868 = vmatprep.subr.mxu0 0.0
    %1869 = vmatpush1.msra.mxu0 0.0
    %1870 = vmatprep.subr.mxu0 0.0
    %1871 = vmatpush1.msra.mxu0 0.0
    %1872 = vmatprep.subr.mxu0 0.0
    %1873 = vmatpush1.msra.mxu0 0.0
    %1874 = vmatprep.subr.mxu0 0.0
    %1875 = vmatpush1.msra.mxu0 0.0
    %1876 = vmatprep.subr.mxu0 0.0
    %1877 = vmatpush1.msra.mxu0 0.0
    %1878 = vmatprep.subr.mxu0 0.0
    %1879 = vmatpush1.msra.mxu0 0.0
    %1880 = vmatprep.subr.mxu0 0.0
    %1881 = vmatpush1.msra.mxu0 0.0
    %1882 = vmatprep.subr.mxu0 0.0
    %1883 = vmatpush1.msra.mxu0 0.0
    %1884 = vmatprep.subr.mxu0 0.0
    %1885 = vmatpush1.msra.mxu0 0.0
    %1886 = vmatprep.subr.mxu0 0.0
    %1887 = vmatpush1.msra.mxu0 %v375
    %1888 = vmatprep.subr.mxu0 0.0
    %1889 = vmatpush1.msra.mxu0 %v374
    %1890 = vmatprep.subr.mxu0 0.0
    %1891 = vmatpush1.msra.mxu0 %v373
    %1892 = vmatprep.subr.mxu0 0.0
    %1893 = vmatpush1.msra.mxu0 %v372
    %1894 = vmatprep.subr.mxu0 0.0
    %1895 = vmatpush2.msra.mxu0 0.0
    %1896 = vmatprep.subr.mxu0 0.0
    %1897 = vmatpush2.msra.mxu0 0.0
    %1898 = vmatprep.subr.mxu0 0.0
    %1899 = vmatpush2.msra.mxu0 0.0
    %1900 = vmatprep.subr.mxu0 0.0
    %1901 = vmatpush2.msra.mxu0 0.0
    %1902 = vmatprep.subr.mxu0 0.0
    %1903 = vmatpush2.msra.mxu0 0.0
    %1904 = vmatprep.subr.mxu0 0.0
    %1905 = vmatpush2.msra.mxu0 0.0
    %1906 = vmatprep.subr.mxu0 0.0
    %1907 = vmatpush2.msra.mxu0 0.0
    %1908 = vmatprep.subr.mxu0 0.0
    %1909 = vmatpush2.msra.mxu0 0.0
    %1910 = vmatprep.subr.mxu0 0.0
    %1911 = vmatpush2.msra.mxu0 0.0
    %1912 = vmatprep.subr.mxu0 0.0
    %1913 = vmatpush2.msra.mxu0 0.0
    %1914 = vmatprep.subr.mxu0 0.0
    %1915 = vmatpush2.msra.mxu0 0.0
    %1916 = vmatprep.subr.mxu0 0.0
    %1917 = vmatpush2.msra.mxu0 0.0
    %1918 = vmatprep.subr.mxu0 0.0
    %1919 = vmatpush2.msra.mxu0 0.0
    %1920 = vmatprep.subr.mxu0 0.0
    %1921 = vmatpush2.msra.mxu0 0.0
    %1922 = vmatprep.subr.mxu0 0.0
    %1923 = vmatpush2.msra.mxu0 0.0
    %1924 = vmatprep.subr.mxu0 0.0
    %1925 = vmatpush2.msra.mxu0 0.0
    %1926 = vmatprep.mubr.f32.mxu0 0.0
    %1927 = vmatmul.mubr.f32.gmra.mxu0 %v1860
    %v1928 = vpop.f32.mrf.mxu0
    %v1929 = vadd.f32 %v1857, %v1928
    %v1930 = vpop.f32.mrf.mxu0
    %1931 = vdwg.mxu0
    %v1932 = vadd.f32 %v359, %v1929
    %v1933 = vxor.u32 %v1932, 2147483648
    %v1934 = vmul.f32 %v1933, 1.442695
    %v1935 = vpow.pop %v1934
    %v1936 = vadd.f32 %v1935, 1.0
    %v1937 = vrcp.pop %v1936
    %v1938 = vmul.f32 1.0, %v1937
    %1940 = vrot.lane.b32.xlu0 %v1929, 64
    %v1941 = vpop.permute.xlu0 %1940
    %v1943 = vmul.f32 %v1938, %v1941
    %1945 = vrot.lane.b32.xlu0 %v1943, 64
    %v1946 = vpop.permute.xlu0 %1945
    %v1948 = vadd.f32 %v359, %v1946
    %v1949 = vtanh.pop %v1948
    %v1950 = vsub.f32 1.0, %v1938
    %1952 = vrot.lane.b32.xlu0 %v1949, 96
    %v1953 = vpop.permute.xlu0 %1952
    %v1955 = vmul.f32 %v1950, %v1953
    %1956 = vrot.lane.b32.xlu0 %v1852, 32
    %v1957 = vpop.permute.xlu0 %1956
    %v1959 = vmul.f32 %v1938, %v1957
    %v1960 = vadd.f32 %v1955, %v1959
    %v1961 = vld [vmem:[%s3] sm:$0x3]
    %vm1962 = vcmp.gt.f32.partialorder %v1961, 0.0
    %v1963 = vsel %vm1962, 1, 0
    %1964 = vset.pattern.permute.xlu0 0
    %1965 = vperm.xlu0 %1964, %v1963
    %v1966 = vpop.permute.xlu0 %1965
    %vm1967 = vcmp.eq.s32.totalorder %v1966, 1
    %v1968 = vsel %vm1967, %v1960, 0.0
    %1970 = vrot.lane.b32.xlu0 %v1968, 96
    %v1971 = vpop.permute.xlu0 %1970
    %vm1973 = vcmask 254976
    %1974 = vst.msk [vmem:[#allocation3] sm:$0x3] %vm1973, %v1971
    %v1975 = vsel %vm1967, %v1960, %v1957
    %1977 = vrot.lane.b32.xlu0 %v1975, 96
    %v1978 = vpop.permute.xlu0 %1977
    %v1979 = vsel %vm285, %v1978, 0
    %1981 = vmatprep.subr.mxu0 0.0
    %1982 = vmatpush1.msra.mxu0 0.0
    %1983 = vmatprep.subr.mxu0 0.0
    %1984 = vmatpush1.msra.mxu0 0.0
    %1985 = vmatprep.subr.mxu0 0.0
    %1986 = vmatpush1.msra.mxu0 0.0
    %1987 = vmatprep.subr.mxu0 0.0
    %1988 = vmatpush1.msra.mxu0 0.0
    %1989 = vmatprep.subr.mxu0 0.0
    %1990 = vmatpush1.msra.mxu0 0.0
    %1991 = vmatprep.subr.mxu0 0.0
    %1992 = vmatpush1.msra.mxu0 0.0
    %1993 = vmatprep.subr.mxu0 0.0
    %1994 = vmatpush1.msra.mxu0 0.0
    %1995 = vmatprep.subr.mxu0 0.0
    %1996 = vmatpush1.msra.mxu0 0.0
    %1997 = vmatprep.subr.mxu0 0.0
    %1998 = vmatpush1.msra.mxu0 0.0
    %1999 = vmatprep.subr.mxu0 0.0
    %2000 = vmatpush1.msra.mxu0 0.0
    %2001 = vmatprep.subr.mxu0 0.0
    %2002 = vmatpush1.msra.mxu0 0.0
    %2003 = vmatprep.subr.mxu0 0.0
    %2004 = vmatpush1.msra.mxu0 0.0
    %2005 = vmatprep.subr.mxu0 0.0
    %2006 = vmatpush1.msra.mxu0 %v375
    %2007 = vmatprep.subr.mxu0 0.0
    %2008 = vmatpush1.msra.mxu0 %v374
    %2009 = vmatprep.subr.mxu0 0.0
    %2010 = vmatpush1.msra.mxu0 %v373
    %2011 = vmatprep.subr.mxu0 0.0
    %2012 = vmatpush1.msra.mxu0 %v372
    %2013 = vmatprep.subr.mxu0 0.0
    %2014 = vmatpush2.msra.mxu0 0.0
    %2015 = vmatprep.subr.mxu0 0.0
    %2016 = vmatpush2.msra.mxu0 0.0
    %2017 = vmatprep.subr.mxu0 0.0
    %2018 = vmatpush2.msra.mxu0 0.0
    %2019 = vmatprep.subr.mxu0 0.0
    %2020 = vmatpush2.msra.mxu0 0.0
    %2021 = vmatprep.subr.mxu0 0.0
    %2022 = vmatpush2.msra.mxu0 0.0
    %2023 = vmatprep.subr.mxu0 0.0
    %2024 = vmatpush2.msra.mxu0 0.0
    %2025 = vmatprep.subr.mxu0 0.0
    %2026 = vmatpush2.msra.mxu0 0.0
    %2027 = vmatprep.subr.mxu0 0.0
    %2028 = vmatpush2.msra.mxu0 0.0
    %2029 = vmatprep.subr.mxu0 0.0
    %2030 = vmatpush2.msra.mxu0 0.0
    %2031 = vmatprep.subr.mxu0 0.0
    %2032 = vmatpush2.msra.mxu0 0.0
    %2033 = vmatprep.subr.mxu0 0.0
    %2034 = vmatpush2.msra.mxu0 0.0
    %2035 = vmatprep.subr.mxu0 0.0
    %2036 = vmatpush2.msra.mxu0 0.0
    %2037 = vmatprep.subr.mxu0 0.0
    %2038 = vmatpush2.msra.mxu0 0.0
    %2039 = vmatprep.subr.mxu0 0.0
    %2040 = vmatpush2.msra.mxu0 0.0
    %2041 = vmatprep.subr.mxu0 0.0
    %2042 = vmatpush2.msra.mxu0 0.0
    %2043 = vmatprep.subr.mxu0 0.0
    %2044 = vmatpush2.msra.mxu0 0.0
    %2045 = vmatprep.mubr.f32.mxu0 0.0
    %2046 = vmatmul.mubr.f32.gmra.mxu0 %v1979
    %v2047 = vpop.f32.mrf.mxu0
    %v2048 = vadd.f32 %v1857, %v2047
    %v2049 = vpop.f32.mrf.mxu0
    %2050 = vdwg.mxu0
    %v2052 = vrot.slane %v2048, 6
    %v2054 = vadd.f32 %v359, %v2052
    %v2055 = vxor.u32 %v2054, 2147483648
    %v2056 = vmul.f32 %v2055, 1.442695
    %v2057 = vpow.pop %v2056
    %v2058 = vadd.f32 %v2057, 1.0
    %v2059 = vrcp.pop %v2058
    %v2060 = vmul.f32 1.0, %v2059
    %2061 = vrot.lane.b32.xlu0 %v2052, 64
    %v2062 = vpop.permute.xlu0 %2061
    %v2064 = vmul.f32 %v2060, %v2062
    %2066 = vrot.lane.b32.xlu0 %v2064, 64
    %v2067 = vpop.permute.xlu0 %2066
    %v2069 = vadd.f32 %v359, %v2067
    %v2070 = vtanh.pop %v2069
    %v2071 = vsub.f32 1.0, %v2060
    %2073 = vrot.lane.b32.xlu0 %v2070, 96
    %v2074 = vpop.permute.xlu0 %2073
    %v2076 = vmul.f32 %v2071, %v2074
    %v2077 = vrot.slane %v1975, 6
    %v2079 = vmul.f32 %v2060, %v2077
    %v2080 = vadd.f32 %v2076, %v2079
    %v2081 = vld [vmem:[%s3 + $0x2] sm:$0x3]
    %vm2082 = vcmp.gt.f32.partialorder %v2081, 0.0
    %v2083 = vsel %vm2082, 1, 0
    %2084 = vset.pattern.permute.xlu0 0
    %2085 = vperm.xlu0 %2084, %v2083
    %v2086 = vpop.permute.xlu0 %2085
    %vm2087 = vcmp.eq.s32.totalorder %v2086, 1
    %v2089 = vrot.slane %v2080, 2
    %2090 = vrot.lane.b32.xlu0 %v2089, 96
    %v2091 = vpop.permute.xlu0 %2090
    %v2093 = vsel %vm2087, %v2091, 0.0
    %2094 = vst.msk [vmem:[#allocation3 + $0x2] sm:$0x3] %vm1973, %v2093
    %v2096 = vsel %vm2087, %v2091, %v1978
    %v2098 = vsel %vm285, %v2096, 0
    %2100 = vmatprep.subr.mxu0 0.0
    %2101 = vmatpush1.msra.mxu0 0.0
    %2102 = vmatprep.subr.mxu0 0.0
    %2103 = vmatpush1.msra.mxu0 0.0
    %2104 = vmatprep.subr.mxu0 0.0
    %2105 = vmatpush1.msra.mxu0 0.0
    %2106 = vmatprep.subr.mxu0 0.0
    %2107 = vmatpush1.msra.mxu0 0.0
    %2108 = vmatprep.subr.mxu0 0.0
    %2109 = vmatpush1.msra.mxu0 0.0
    %2110 = vmatprep.subr.mxu0 0.0
    %2111 = vmatpush1.msra.mxu0 0.0
    %2112 = vmatprep.subr.mxu0 0.0
    %2113 = vmatpush1.msra.mxu0 0.0
    %2114 = vmatprep.subr.mxu0 0.0
    %2115 = vmatpush1.msra.mxu0 0.0
    %2116 = vmatprep.subr.mxu0 0.0
    %2117 = vmatpush1.msra.mxu0 0.0
    %2118 = vmatprep.subr.mxu0 0.0
    %2119 = vmatpush1.msra.mxu0 0.0
    %2120 = vmatprep.subr.mxu0 0.0
    %2121 = vmatpush1.msra.mxu0 0.0
    %2122 = vmatprep.subr.mxu0 0.0
    %2123 = vmatpush1.msra.mxu0 0.0
    %2124 = vmatprep.subr.mxu0 0.0
    %2125 = vmatpush1.msra.mxu0 %v375
    %2126 = vmatprep.subr.mxu0 0.0
    %2127 = vmatpush1.msra.mxu0 %v374
    %2128 = vmatprep.subr.mxu0 0.0
    %2129 = vmatpush1.msra.mxu0 %v373
    %2130 = vmatprep.subr.mxu0 0.0
    %2131 = vmatpush1.msra.mxu0 %v372
    %2132 = vmatprep.subr.mxu0 0.0
    %2133 = vmatpush2.msra.mxu0 0.0
    %2134 = vmatprep.subr.mxu0 0.0
    %2135 = vmatpush2.msra.mxu0 0.0
    %2136 = vmatprep.subr.mxu0 0.0
    %2137 = vmatpush2.msra.mxu0 0.0
    %2138 = vmatprep.subr.mxu0 0.0
    %2139 = vmatpush2.msra.mxu0 0.0
    %2140 = vmatprep.subr.mxu0 0.0
    %2141 = vmatpush2.msra.mxu0 0.0
    %2142 = vmatprep.subr.mxu0 0.0
    %2143 = vmatpush2.msra.mxu0 0.0
    %2144 = vmatprep.subr.mxu0 0.0
    %2145 = vmatpush2.msra.mxu0 0.0
    %2146 = vmatprep.subr.mxu0 0.0
    %2147 = vmatpush2.msra.mxu0 0.0
    %2148 = vmatprep.subr.mxu0 0.0
    %2149 = vmatpush2.msra.mxu0 0.0
    %2150 = vmatprep.subr.mxu0 0.0
    %2151 = vmatpush2.msra.mxu0 0.0
    %2152 = vmatprep.subr.mxu0 0.0
    %2153 = vmatpush2.msra.mxu0 0.0
    %2154 = vmatprep.subr.mxu0 0.0
    %2155 = vmatpush2.msra.mxu0 0.0
    %2156 = vmatprep.subr.mxu0 0.0
    %2157 = vmatpush2.msra.mxu0 0.0
    %2158 = vmatprep.subr.mxu0 0.0
    %2159 = vmatpush2.msra.mxu0 0.0
    %2160 = vmatprep.subr.mxu0 0.0
    %2161 = vmatpush2.msra.mxu0 0.0
    %2162 = vmatprep.subr.mxu0 0.0
    %2163 = vmatpush2.msra.mxu0 0.0
    %2164 = vmatprep.mubr.f32.mxu0 0.0
    %2165 = vmatmul.mubr.f32.gmra.mxu0 %v2098
    %v2166 = vpop.f32.mrf.mxu0
    %v2167 = vadd.f32 %v1857, %v2166
    %v2168 = vpop.f32.mrf.mxu0
    %2169 = vdwg.mxu0
    %v2171 = vrot.slane %v2167, 4
    %v2173 = vadd.f32 %v359, %v2171
    %v2174 = vxor.u32 %v2173, 2147483648
    %v2175 = vmul.f32 %v2174, 1.442695
    %v2176 = vpow.pop %v2175
    %v2177 = vadd.f32 %v2176, 1.0
    %v2178 = vrcp.pop %v2177
    %v2179 = vmul.f32 1.0, %v2178
    %2180 = vrot.lane.b32.xlu0 %v2171, 64
    %v2181 = vpop.permute.xlu0 %2180
    %v2183 = vmul.f32 %v2179, %v2181
    %2185 = vrot.lane.b32.xlu0 %v2183, 64
    %v2186 = vpop.permute.xlu0 %2185
    %v2188 = vadd.f32 %v359, %v2186
    %v2189 = vtanh.pop %v2188
    %v2190 = vsub.f32 1.0, %v2179
    %2192 = vrot.lane.b32.xlu0 %v2189, 96
    %v2193 = vpop.permute.xlu0 %2192
    %v2195 = vmul.f32 %v2190, %v2193
    %v2196 = vrot.slane %v2096, 4
    %2197 = vrot.lane.b32.xlu0 %v2196, 32
    %v2198 = vpop.permute.xlu0 %2197
    %v2200 = vmul.f32 %v2179, %v2198
    %v2201 = vadd.f32 %v2195, %v2200
    %v2202 = vld [vmem:[%s3 + $0x4] sm:$0x3]
    %vm2203 = vcmp.gt.f32.partialorder %v2202, 0.0
    %v2204 = vsel %vm2203, 1, 0
    %2205 = vset.pattern.permute.xlu0 0
    %2206 = vperm.xlu0 %2205, %v2204
    %v2207 = vpop.permute.xlu0 %2206
    %vm2208 = vcmp.eq.s32.totalorder %v2207, 1
    %v2210 = vrot.slane %v2201, 4
    %2211 = vrot.lane.b32.xlu0 %v2210, 96
    %v2212 = vpop.permute.xlu0 %2211
    %v2214 = vsel %vm2208, %v2212, 0.0
    %2215 = vst.msk [vmem:[#allocation3 + $0x4] sm:$0x3] %vm1973, %v2214
    %v2216 = vsel %vm2208, %v2212, %v2096
    %v2218 = vsel %vm285, %v2216, 0
    %2220 = vmatprep.subr.mxu0 0.0
    %2221 = vmatpush1.msra.mxu0 0.0
    %2222 = vmatprep.subr.mxu0 0.0
    %2223 = vmatpush1.msra.mxu0 0.0
    %2224 = vmatprep.subr.mxu0 0.0
    %2225 = vmatpush1.msra.mxu0 0.0
    %2226 = vmatprep.subr.mxu0 0.0
    %2227 = vmatpush1.msra.mxu0 0.0
    %2228 = vmatprep.subr.mxu0 0.0
    %2229 = vmatpush1.msra.mxu0 0.0
    %2230 = vmatprep.subr.mxu0 0.0
    %2231 = vmatpush1.msra.mxu0 0.0
    %2232 = vmatprep.subr.mxu0 0.0
    %2233 = vmatpush1.msra.mxu0 0.0
    %2234 = vmatprep.subr.mxu0 0.0
    %2235 = vmatpush1.msra.mxu0 0.0
    %2236 = vmatprep.subr.mxu0 0.0
    %2237 = vmatpush1.msra.mxu0 0.0
    %2238 = vmatprep.subr.mxu0 0.0
    %2239 = vmatpush1.msra.mxu0 0.0
    %2240 = vmatprep.subr.mxu0 0.0
    %2241 = vmatpush1.msra.mxu0 0.0
    %2242 = vmatprep.subr.mxu0 0.0
    %2243 = vmatpush1.msra.mxu0 0.0
    %2244 = vmatprep.subr.mxu0 0.0
    %2245 = vmatpush1.msra.mxu0 %v375
    %2246 = vmatprep.subr.mxu0 0.0
    %2247 = vmatpush1.msra.mxu0 %v374
    %2248 = vmatprep.subr.mxu0 0.0
    %2249 = vmatpush1.msra.mxu0 %v373
    %2250 = vmatprep.subr.mxu0 0.0
    %2251 = vmatpush1.msra.mxu0 %v372
    %2252 = vmatprep.subr.mxu0 0.0
    %2253 = vmatpush2.msra.mxu0 0.0
    %2254 = vmatprep.subr.mxu0 0.0
    %2255 = vmatpush2.msra.mxu0 0.0
    %2256 = vmatprep.subr.mxu0 0.0
    %2257 = vmatpush2.msra.mxu0 0.0
    %2258 = vmatprep.subr.mxu0 0.0
    %2259 = vmatpush2.msra.mxu0 0.0
    %2260 = vmatprep.subr.mxu0 0.0
    %2261 = vmatpush2.msra.mxu0 0.0
    %2262 = vmatprep.subr.mxu0 0.0
    %2263 = vmatpush2.msra.mxu0 0.0
    %2264 = vmatprep.subr.mxu0 0.0
    %2265 = vmatpush2.msra.mxu0 0.0
    %2266 = vmatprep.subr.mxu0 0.0
    %2267 = vmatpush2.msra.mxu0 0.0
    %2268 = vmatprep.subr.mxu0 0.0
    %2269 = vmatpush2.msra.mxu0 0.0
    %2270 = vmatprep.subr.mxu0 0.0
    %2271 = vmatpush2.msra.mxu0 0.0
    %2272 = vmatprep.subr.mxu0 0.0
    %2273 = vmatpush2.msra.mxu0 0.0
    %2274 = vmatprep.subr.mxu0 0.0
    %2275 = vmatpush2.msra.mxu0 0.0
    %2276 = vmatprep.subr.mxu0 0.0
    %2277 = vmatpush2.msra.mxu0 0.0
    %2278 = vmatprep.subr.mxu0 0.0
    %2279 = vmatpush2.msra.mxu0 0.0
    %2280 = vmatprep.subr.mxu0 0.0
    %2281 = vmatpush2.msra.mxu0 0.0
    %2282 = vmatprep.subr.mxu0 0.0
    %2283 = vmatpush2.msra.mxu0 0.0
    %2284 = vmatprep.mubr.f32.mxu0 0.0
    %2285 = vmatmul.mubr.f32.gmra.mxu0 %v2218
    %v2286 = vpop.f32.mrf.mxu0
    %v2287 = vadd.f32 %v1857, %v2286
    %v2288 = vpop.f32.mrf.mxu0
    %2289 = vdwg.mxu0
    %v2291 = vrot.slane %v2287, 2
    %v2293 = vadd.f32 %v359, %v2291
    %v2294 = vxor.u32 %v2293, 2147483648
    %v2295 = vmul.f32 %v2294, 1.442695
    %v2296 = vpow.pop %v2295
    %v2297 = vadd.f32 %v2296, 1.0
    %v2298 = vrcp.pop %v2297
    %v2299 = vmul.f32 1.0, %v2298
    %2300 = vrot.lane.b32.xlu0 %v2291, 64
    %v2301 = vpop.permute.xlu0 %2300
    %v2303 = vmul.f32 %v2299, %v2301
    %2305 = vrot.lane.b32.xlu0 %v2303, 64
    %v2306 = vpop.permute.xlu0 %2305
    %v2308 = vadd.f32 %v359, %v2306
    %v2309 = vtanh.pop %v2308
    %v2310 = vsub.f32 1.0, %v2299
    %2312 = vrot.lane.b32.xlu0 %v2309, 96
    %v2313 = vpop.permute.xlu0 %2312
    %v2315 = vmul.f32 %v2310, %v2313
    %v2316 = vrot.slane %v2216, 2
    %2317 = vrot.lane.b32.xlu0 %v2316, 32
    %v2318 = vpop.permute.xlu0 %2317
    %v2320 = vmul.f32 %v2299, %v2318
    %v2321 = vadd.f32 %v2315, %v2320
    %v2322 = vld [vmem:[%s3 + $0x6] sm:$0x3]
    %vm2323 = vcmp.gt.f32.partialorder %v2322, 0.0
    %v2324 = vsel %vm2323, 1, 0
    %2325 = vset.pattern.permute.xlu0 0
    %2326 = vperm.xlu0 %2325, %v2324
    %v2327 = vpop.permute.xlu0 %2326
    %vm2328 = vcmp.eq.s32.totalorder %v2327, 1
    %v2330 = vrot.slane %v2321, 6
    %2331 = vrot.lane.b32.xlu0 %v2330, 96
    %v2332 = vpop.permute.xlu0 %2331
    %v2334 = vsel %vm2328, %v2332, 0.0
    %2335 = vst.msk [vmem:[#allocation3 + $0x6] sm:$0x3] %vm1973, %v2334
    %v2336 = vsel %vm2328, %v2332, %v2216
    %v2338 = vsel %vm285, %v2336, 0
    %2340 = vmatprep.subr.mxu0 0.0
    %2341 = vmatpush1.msra.mxu0 0.0
    %2342 = vmatprep.subr.mxu0 0.0
    %2343 = vmatpush1.msra.mxu0 0.0
    %2344 = vmatprep.subr.mxu0 0.0
    %2345 = vmatpush1.msra.mxu0 0.0
    %2346 = vmatprep.subr.mxu0 0.0
    %2347 = vmatpush1.msra.mxu0 0.0
    %2348 = vmatprep.subr.mxu0 0.0
    %2349 = vmatpush1.msra.mxu0 0.0
    %2350 = vmatprep.subr.mxu0 0.0
    %2351 = vmatpush1.msra.mxu0 0.0
    %2352 = vmatprep.subr.mxu0 0.0
    %2353 = vmatpush1.msra.mxu0 0.0
    %2354 = vmatprep.subr.mxu0 0.0
    %2355 = vmatpush1.msra.mxu0 0.0
    %2356 = vmatprep.subr.mxu0 0.0
    %2357 = vmatpush1.msra.mxu0 0.0
    %2358 = vmatprep.subr.mxu0 0.0
    %2359 = vmatpush1.msra.mxu0 0.0
    %2360 = vmatprep.subr.mxu0 0.0
    %2361 = vmatpush1.msra.mxu0 0.0
    %2362 = vmatprep.subr.mxu0 0.0
    %2363 = vmatpush1.msra.mxu0 0.0
    %2364 = vmatprep.subr.mxu0 0.0
    %2365 = vmatpush1.msra.mxu0 %v375
    %2366 = vmatprep.subr.mxu0 0.0
    %2367 = vmatpush1.msra.mxu0 %v374
    %2368 = vmatprep.subr.mxu0 0.0
    %2369 = vmatpush1.msra.mxu0 %v373
    %2370 = vmatprep.subr.mxu0 0.0
    %2371 = vmatpush1.msra.mxu0 %v372
    %2372 = vmatprep.subr.mxu0 0.0
    %2373 = vmatpush2.msra.mxu0 0.0
    %2374 = vmatprep.subr.mxu0 0.0
    %2375 = vmatpush2.msra.mxu0 0.0
    %2376 = vmatprep.subr.mxu0 0.0
    %2377 = vmatpush2.msra.mxu0 0.0
    %2378 = vmatprep.subr.mxu0 0.0
    %2379 = vmatpush2.msra.mxu0 0.0
    %2380 = vmatprep.subr.mxu0 0.0
    %2381 = vmatpush2.msra.mxu0 0.0
    %2382 = vmatprep.subr.mxu0 0.0
    %2383 = vmatpush2.msra.mxu0 0.0
    %2384 = vmatprep.subr.mxu0 0.0
    %2385 = vmatpush2.msra.mxu0 0.0
    %2386 = vmatprep.subr.mxu0 0.0
    %2387 = vmatpush2.msra.mxu0 0.0
    %2388 = vmatprep.subr.mxu0 0.0
    %2389 = vmatpush2.msra.mxu0 0.0
    %2390 = vmatprep.subr.mxu0 0.0
    %2391 = vmatpush2.msra.mxu0 0.0
    %2392 = vmatprep.subr.mxu0 0.0
    %2393 = vmatpush2.msra.mxu0 0.0
    %2394 = vmatprep.subr.mxu0 0.0
    %2395 = vmatpush2.msra.mxu0 0.0
    %2396 = vmatprep.subr.mxu0 0.0
    %2397 = vmatpush2.msra.mxu0 0.0
    %2398 = vmatprep.subr.mxu0 0.0
    %2399 = vmatpush2.msra.mxu0 0.0
    %2400 = vmatprep.subr.mxu0 0.0
    %2401 = vmatpush2.msra.mxu0 0.0
    %2402 = vmatprep.subr.mxu0 0.0
    %2403 = vmatpush2.msra.mxu0 0.0
    %2404 = vmatprep.mubr.f32.mxu0 0.0
    %2405 = vmatmul.mubr.f32.gmra.mxu0 %v2338
    %v2406 = vpop.f32.mrf.mxu0
    %v2407 = vadd.f32 %v1857, %v2406
    %v2408 = vpop.f32.mrf.mxu0
    %2409 = vdwg.mxu0
    %v2410 = vadd.f32 %v364, %v2407
    %v2411 = vxor.u32 %v2410, 2147483648
    %v2412 = vmul.f32 %v2411, 1.442695
    %v2413 = vpow.pop %v2412
    %v2414 = vadd.f32 %v2413, 1.0
    %v2415 = vrcp.pop %v2414
    %v2416 = vmul.f32 1.0, %v2415
    %2418 = vrot.lane.b32.xlu0 %v2407, 64
    %v2419 = vpop.permute.xlu0 %2418
    %v2421 = vmul.f32 %v2416, %v2419
    %2423 = vrot.lane.b32.xlu0 %v2421, 64
    %v2424 = vpop.permute.xlu0 %2423
    %v2426 = vadd.f32 %v364, %v2424
    %v2427 = vtanh.pop %v2426
    %v2428 = vsub.f32 1.0, %v2416
    %2430 = vrot.lane.b32.xlu0 %v2427, 96
    %v2431 = vpop.permute.xlu0 %2430
    %v2433 = vmul.f32 %v2428, %v2431
    %2434 = vrot.lane.b32.xlu0 %v2336, 32
    %v2435 = vpop.permute.xlu0 %2434
    %v2437 = vmul.f32 %v2416, %v2435
    %v2438 = vadd.f32 %v2433, %v2437
    %v2439 = vld [vmem:[%s3 + $0x8] sm:$0x3]
    %vm2440 = vcmp.gt.f32.partialorder %v2439, 0.0
    %v2441 = vsel %vm2440, 1, 0
    %2442 = vset.pattern.permute.xlu0 0
    %2443 = vperm.xlu0 %2442, %v2441
    %v2444 = vpop.permute.xlu0 %2443
    %vm2445 = vcmp.eq.s32.totalorder %v2444, 1
    %v2446 = vsel %vm2445, %v2438, 0.0
    %2448 = vrot.lane.b32.xlu0 %v2446, 96
    %v2449 = vpop.permute.xlu0 %2448
    %2451 = vst.msk [vmem:[#allocation3 + $0x8] sm:$0x3] %vm1973, %v2449
    %v2452 = vsel %vm2445, %v2438, %v2435
    %2454 = vrot.lane.b32.xlu0 %v2452, 96
    %v2455 = vpop.permute.xlu0 %2454
    %v2456 = vsel %vm285, %v2455, 0
    %2458 = vmatprep.subr.mxu0 0.0
    %2459 = vmatpush1.msra.mxu0 0.0
    %2460 = vmatprep.subr.mxu0 0.0
    %2461 = vmatpush1.msra.mxu0 0.0
    %2462 = vmatprep.subr.mxu0 0.0
    %2463 = vmatpush1.msra.mxu0 0.0
    %2464 = vmatprep.subr.mxu0 0.0
    %2465 = vmatpush1.msra.mxu0 0.0
    %2466 = vmatprep.subr.mxu0 0.0
    %2467 = vmatpush1.msra.mxu0 0.0
    %2468 = vmatprep.subr.mxu0 0.0
    %2469 = vmatpush1.msra.mxu0 0.0
    %2470 = vmatprep.subr.mxu0 0.0
    %2471 = vmatpush1.msra.mxu0 0.0
    %2472 = vmatprep.subr.mxu0 0.0
    %2473 = vmatpush1.msra.mxu0 0.0
    %2474 = vmatprep.subr.mxu0 0.0
    %2475 = vmatpush1.msra.mxu0 0.0
    %2476 = vmatprep.subr.mxu0 0.0
    %2477 = vmatpush1.msra.mxu0 0.0
    %2478 = vmatprep.subr.mxu0 0.0
    %2479 = vmatpush1.msra.mxu0 0.0
    %2480 = vmatprep.subr.mxu0 0.0
    %2481 = vmatpush1.msra.mxu0 0.0
    %2482 = vmatprep.subr.mxu0 0.0
    %2483 = vmatpush1.msra.mxu0 %v375
    %2484 = vmatprep.subr.mxu0 0.0
    %2485 = vmatpush1.msra.mxu0 %v374
    %2486 = vmatprep.subr.mxu0 0.0
    %2487 = vmatpush1.msra.mxu0 %v373
    %2488 = vmatprep.subr.mxu0 0.0
    %2489 = vmatpush1.msra.mxu0 %v372
    %2490 = vmatprep.subr.mxu0 0.0
    %2491 = vmatpush2.msra.mxu0 0.0
    %2492 = vmatprep.subr.mxu0 0.0
    %2493 = vmatpush2.msra.mxu0 0.0
    %2494 = vmatprep.subr.mxu0 0.0
    %2495 = vmatpush2.msra.mxu0 0.0
    %2496 = vmatprep.subr.mxu0 0.0
    %2497 = vmatpush2.msra.mxu0 0.0
    %2498 = vmatprep.subr.mxu0 0.0
    %2499 = vmatpush2.msra.mxu0 0.0
    %2500 = vmatprep.subr.mxu0 0.0
    %2501 = vmatpush2.msra.mxu0 0.0
    %2502 = vmatprep.subr.mxu0 0.0
    %2503 = vmatpush2.msra.mxu0 0.0
    %2504 = vmatprep.subr.mxu0 0.0
    %2505 = vmatpush2.msra.mxu0 0.0
    %2506 = vmatprep.subr.mxu0 0.0
    %2507 = vmatpush2.msra.mxu0 0.0
    %2508 = vmatprep.subr.mxu0 0.0
    %2509 = vmatpush2.msra.mxu0 0.0
    %2510 = vmatprep.subr.mxu0 0.0
    %2511 = vmatpush2.msra.mxu0 0.0
    %2512 = vmatprep.subr.mxu0 0.0
    %2513 = vmatpush2.msra.mxu0 0.0
    %2514 = vmatprep.subr.mxu0 0.0
    %2515 = vmatpush2.msra.mxu0 0.0
    %2516 = vmatprep.subr.mxu0 0.0
    %2517 = vmatpush2.msra.mxu0 0.0
    %2518 = vmatprep.subr.mxu0 0.0
    %2519 = vmatpush2.msra.mxu0 0.0
    %2520 = vmatprep.subr.mxu0 0.0
    %2521 = vmatpush2.msra.mxu0 0.0
    %2522 = vmatprep.mubr.f32.mxu0 0.0
    %2523 = vmatmul.mubr.f32.gmra.mxu0 %v2456
    %v2524 = vpop.f32.mrf.mxu0
    %v2525 = vadd.f32 %v1857, %v2524
    %v2526 = vpop.f32.mrf.mxu0
    %2527 = vdwg.mxu0
    %v2529 = vrot.slane %v2525, 6
    %v2531 = vadd.f32 %v364, %v2529
    %v2532 = vxor.u32 %v2531, 2147483648
    %v2533 = vmul.f32 %v2532, 1.442695
    %v2534 = vpow.pop %v2533
    %v2535 = vadd.f32 %v2534, 1.0
    %v2536 = vrcp.pop %v2535
    %v2537 = vmul.f32 1.0, %v2536
    %2538 = vrot.lane.b32.xlu0 %v2529, 64
    %v2539 = vpop.permute.xlu0 %2538
    %v2541 = vmul.f32 %v2537, %v2539
    %2543 = vrot.lane.b32.xlu0 %v2541, 64
    %v2544 = vpop.permute.xlu0 %2543
    %v2546 = vadd.f32 %v364, %v2544
    %v2547 = vtanh.pop %v2546
    %v2548 = vsub.f32 1.0, %v2537
    %2550 = vrot.lane.b32.xlu0 %v2547, 96
    %v2551 = vpop.permute.xlu0 %2550
    %v2553 = vmul.f32 %v2548, %v2551
    %v2554 = vrot.slane %v2452, 6
    %v2556 = vmul.f32 %v2537, %v2554
    %v2557 = vadd.f32 %v2553, %v2556
    %v2558 = vld [vmem:[%s3 + $0xa] sm:$0x3]
    %vm2559 = vcmp.gt.f32.partialorder %v2558, 0.0
    %v2560 = vsel %vm2559, 1, 0
    %2561 = vset.pattern.permute.xlu0 0
    %2562 = vperm.xlu0 %2561, %v2560
    %v2563 = vpop.permute.xlu0 %2562
    %vm2564 = vcmp.eq.s32.totalorder %v2563, 1
    %v2566 = vrot.slane %v2557, 2
    %2567 = vrot.lane.b32.xlu0 %v2566, 96
    %v2568 = vpop.permute.xlu0 %2567
    %v2570 = vsel %vm2564, %v2568, 0.0
    %2571 = vst.msk [vmem:[#allocation3 + $0xa] sm:$0x3] %vm1973, %v2570
    %v2573 = vsel %vm2564, %v2568, %v2455
    %v2575 = vsel %vm285, %v2573, 0
    %2577 = vmatprep.subr.mxu0 0.0
    %2578 = vmatpush1.msra.mxu0 0.0
    %2579 = vmatprep.subr.mxu0 0.0
    %2580 = vmatpush1.msra.mxu0 0.0
    %2581 = vmatprep.subr.mxu0 0.0
    %2582 = vmatpush1.msra.mxu0 0.0
    %2583 = vmatprep.subr.mxu0 0.0
    %2584 = vmatpush1.msra.mxu0 0.0
    %2585 = vmatprep.subr.mxu0 0.0
    %2586 = vmatpush1.msra.mxu0 0.0
    %2587 = vmatprep.subr.mxu0 0.0
    %2588 = vmatpush1.msra.mxu0 0.0
    %2589 = vmatprep.subr.mxu0 0.0
    %2590 = vmatpush1.msra.mxu0 0.0
    %2591 = vmatprep.subr.mxu0 0.0
    %2592 = vmatpush1.msra.mxu0 0.0
    %2593 = vmatprep.subr.mxu0 0.0
    %2594 = vmatpush1.msra.mxu0 0.0
    %2595 = vmatprep.subr.mxu0 0.0
    %2596 = vmatpush1.msra.mxu0 0.0
    %2597 = vmatprep.subr.mxu0 0.0
    %2598 = vmatpush1.msra.mxu0 0.0
    %2599 = vmatprep.subr.mxu0 0.0
    %2600 = vmatpush1.msra.mxu0 0.0
    %2601 = vmatprep.subr.mxu0 0.0
    %2602 = vmatpush1.msra.mxu0 %v375
    %2603 = vmatprep.subr.mxu0 0.0
    %2604 = vmatpush1.msra.mxu0 %v374
    %2605 = vmatprep.subr.mxu0 0.0
    %2606 = vmatpush1.msra.mxu0 %v373
    %2607 = vmatprep.subr.mxu0 0.0
    %2608 = vmatpush1.msra.mxu0 %v372
    %2609 = vmatprep.subr.mxu0 0.0
    %2610 = vmatpush2.msra.mxu0 0.0
    %2611 = vmatprep.subr.mxu0 0.0
    %2612 = vmatpush2.msra.mxu0 0.0
    %2613 = vmatprep.subr.mxu0 0.0
    %2614 = vmatpush2.msra.mxu0 0.0
    %2615 = vmatprep.subr.mxu0 0.0
    %2616 = vmatpush2.msra.mxu0 0.0
    %2617 = vmatprep.subr.mxu0 0.0
    %2618 = vmatpush2.msra.mxu0 0.0
    %2619 = vmatprep.subr.mxu0 0.0
    %2620 = vmatpush2.msra.mxu0 0.0
    %2621 = vmatprep.subr.mxu0 0.0
    %2622 = vmatpush2.msra.mxu0 0.0
    %2623 = vmatprep.subr.mxu0 0.0
    %2624 = vmatpush2.msra.mxu0 0.0
    %2625 = vmatprep.subr.mxu0 0.0
    %2626 = vmatpush2.msra.mxu0 0.0
    %2627 = vmatprep.subr.mxu0 0.0
    %2628 = vmatpush2.msra.mxu0 0.0
    %2629 = vmatprep.subr.mxu0 0.0
    %2630 = vmatpush2.msra.mxu0 0.0
    %2631 = vmatprep.subr.mxu0 0.0
    %2632 = vmatpush2.msra.mxu0 0.0
    %2633 = vmatprep.subr.mxu0 0.0
    %2634 = vmatpush2.msra.mxu0 0.0
    %2635 = vmatprep.subr.mxu0 0.0
    %2636 = vmatpush2.msra.mxu0 0.0
    %2637 = vmatprep.subr.mxu0 0.0
    %2638 = vmatpush2.msra.mxu0 0.0
    %2639 = vmatprep.subr.mxu0 0.0
    %2640 = vmatpush2.msra.mxu0 0.0
    %2641 = vmatprep.mubr.f32.mxu0 0.0
    %2642 = vmatmul.mubr.f32.gmra.mxu0 %v2575
    %v2643 = vpop.f32.mrf.mxu0
    %v2644 = vadd.f32 %v1857, %v2643
    %v2645 = vpop.f32.mrf.mxu0
    %2646 = vdwg.mxu0
    %v2648 = vrot.slane %v2644, 4
    %v2650 = vadd.f32 %v364, %v2648
    %v2651 = vxor.u32 %v2650, 2147483648
    %v2652 = vmul.f32 %v2651, 1.442695
    %v2653 = vpow.pop %v2652
    %v2654 = vadd.f32 %v2653, 1.0
    %v2655 = vrcp.pop %v2654
    %v2656 = vmul.f32 1.0, %v2655
    %2657 = vrot.lane.b32.xlu0 %v2648, 64
    %v2658 = vpop.permute.xlu0 %2657
    %v2660 = vmul.f32 %v2656, %v2658
    %2662 = vrot.lane.b32.xlu0 %v2660, 64
    %v2663 = vpop.permute.xlu0 %2662
    %v2665 = vadd.f32 %v364, %v2663
    %v2666 = vtanh.pop %v2665
    %v2667 = vsub.f32 1.0, %v2656
    %2669 = vrot.lane.b32.xlu0 %v2666, 96
    %v2670 = vpop.permute.xlu0 %2669
    %v2672 = vmul.f32 %v2667, %v2670
    %v2673 = vrot.slane %v2573, 4
    %2674 = vrot.lane.b32.xlu0 %v2673, 32
    %v2675 = vpop.permute.xlu0 %2674
    %v2677 = vmul.f32 %v2656, %v2675
    %v2678 = vadd.f32 %v2672, %v2677
    %v2679 = vld [vmem:[%s3 + $0xc] sm:$0x3]
    %vm2680 = vcmp.gt.f32.partialorder %v2679, 0.0
    %v2681 = vsel %vm2680, 1, 0
    %2682 = vset.pattern.permute.xlu0 0
    %2683 = vperm.xlu0 %2682, %v2681
    %v2684 = vpop.permute.xlu0 %2683
    %vm2685 = vcmp.eq.s32.totalorder %v2684, 1
    %v2687 = vrot.slane %v2678, 4
    %2688 = vrot.lane.b32.xlu0 %v2687, 96
    %v2689 = vpop.permute.xlu0 %2688
    %v2691 = vsel %vm2685, %v2689, 0.0
    %2692 = vst.msk [vmem:[#allocation3 + $0xc] sm:$0x3] %vm1973, %v2691
    %v2693 = vsel %vm2685, %v2689, %v2573
    %v2695 = vsel %vm285, %v2693, 0
    %2697 = vmatprep.subr.mxu0 0.0
    %2698 = vmatpush1.msra.mxu0 0.0
    %2699 = vmatprep.subr.mxu0 0.0
    %2700 = vmatpush1.msra.mxu0 0.0
    %2701 = vmatprep.subr.mxu0 0.0
    %2702 = vmatpush1.msra.mxu0 0.0
    %2703 = vmatprep.subr.mxu0 0.0
    %2704 = vmatpush1.msra.mxu0 0.0
    %2705 = vmatprep.subr.mxu0 0.0
    %2706 = vmatpush1.msra.mxu0 0.0
    %2707 = vmatprep.subr.mxu0 0.0
    %2708 = vmatpush1.msra.mxu0 0.0
    %2709 = vmatprep.subr.mxu0 0.0
    %2710 = vmatpush1.msra.mxu0 0.0
    %2711 = vmatprep.subr.mxu0 0.0
    %2712 = vmatpush1.msra.mxu0 0.0
    %2713 = vmatprep.subr.mxu0 0.0
    %2714 = vmatpush1.msra.mxu0 0.0
    %2715 = vmatprep.subr.mxu0 0.0
    %2716 = vmatpush1.msra.mxu0 0.0
    %2717 = vmatprep.subr.mxu0 0.0
    %2718 = vmatpush1.msra.mxu0 0.0
    %2719 = vmatprep.subr.mxu0 0.0
    %2720 = vmatpush1.msra.mxu0 0.0
    %2721 = vmatprep.subr.mxu0 0.0
    %2722 = vmatpush1.msra.mxu0 %v375
    %2723 = vmatprep.subr.mxu0 0.0
    %2724 = vmatpush1.msra.mxu0 %v374
    %2725 = vmatprep.subr.mxu0 0.0
    %2726 = vmatpush1.msra.mxu0 %v373
    %2727 = vmatprep.subr.mxu0 0.0
    %2728 = vmatpush1.msra.mxu0 %v372
    %2729 = vmatprep.subr.mxu0 0.0
    %2730 = vmatpush2.msra.mxu0 0.0
    %2731 = vmatprep.subr.mxu0 0.0
    %2732 = vmatpush2.msra.mxu0 0.0
    %2733 = vmatprep.subr.mxu0 0.0
    %2734 = vmatpush2.msra.mxu0 0.0
    %2735 = vmatprep.subr.mxu0 0.0
    %2736 = vmatpush2.msra.mxu0 0.0
    %2737 = vmatprep.subr.mxu0 0.0
    %2738 = vmatpush2.msra.mxu0 0.0
    %2739 = vmatprep.subr.mxu0 0.0
    %2740 = vmatpush2.msra.mxu0 0.0
    %2741 = vmatprep.subr.mxu0 0.0
    %2742 = vmatpush2.msra.mxu0 0.0
    %2743 = vmatprep.subr.mxu0 0.0
    %2744 = vmatpush2.msra.mxu0 0.0
    %2745 = vmatprep.subr.mxu0 0.0
    %2746 = vmatpush2.msra.mxu0 0.0
    %2747 = vmatprep.subr.mxu0 0.0
    %2748 = vmatpush2.msra.mxu0 0.0
    %2749 = vmatprep.subr.mxu0 0.0
    %2750 = vmatpush2.msra.mxu0 0.0
    %2751 = vmatprep.subr.mxu0 0.0
    %2752 = vmatpush2.msra.mxu0 0.0
    %2753 = vmatprep.subr.mxu0 0.0
    %2754 = vmatpush2.msra.mxu0 0.0
    %2755 = vmatprep.subr.mxu0 0.0
    %2756 = vmatpush2.msra.mxu0 0.0
    %2757 = vmatprep.subr.mxu0 0.0
    %2758 = vmatpush2.msra.mxu0 0.0
    %2759 = vmatprep.subr.mxu0 0.0
    %2760 = vmatpush2.msra.mxu0 0.0
    %2761 = vmatprep.mubr.f32.mxu0 0.0
    %2762 = vmatmul.mubr.f32.gmra.mxu0 %v2695
    %v2763 = vpop.f32.mrf.mxu0
    %v2764 = vadd.f32 %v1857, %v2763
    %v2765 = vpop.f32.mrf.mxu0
    %2766 = vdwg.mxu0
    %v2768 = vrot.slane %v2764, 2
    %v2770 = vadd.f32 %v364, %v2768
    %v2771 = vxor.u32 %v2770, 2147483648
    %v2772 = vmul.f32 %v2771, 1.442695
    %v2773 = vpow.pop %v2772
    %v2774 = vadd.f32 %v2773, 1.0
    %v2775 = vrcp.pop %v2774
    %v2776 = vmul.f32 1.0, %v2775
    %2777 = vrot.lane.b32.xlu0 %v2768, 64
    %v2778 = vpop.permute.xlu0 %2777
    %v2780 = vmul.f32 %v2776, %v2778
    %2782 = vrot.lane.b32.xlu0 %v2780, 64
    %v2783 = vpop.permute.xlu0 %2782
    %v2785 = vadd.f32 %v364, %v2783
    %v2786 = vtanh.pop %v2785
    %v2787 = vsub.f32 1.0, %v2776
    %2789 = vrot.lane.b32.xlu0 %v2786, 96
    %v2790 = vpop.permute.xlu0 %2789
    %v2792 = vmul.f32 %v2787, %v2790
    %v2793 = vrot.slane %v2693, 2
    %2794 = vrot.lane.b32.xlu0 %v2793, 32
    %v2795 = vpop.permute.xlu0 %2794
    %v2797 = vmul.f32 %v2776, %v2795
    %v2798 = vadd.f32 %v2792, %v2797
    %v2799 = vld [vmem:[%s3 + $0xe] sm:$0x3]
    %vm2800 = vcmp.gt.f32.partialorder %v2799, 0.0
    %v2801 = vsel %vm2800, 1, 0
    %2802 = vset.pattern.permute.xlu0 0
    %2803 = vperm.xlu0 %2802, %v2801
    %v2804 = vpop.permute.xlu0 %2803
    %vm2805 = vcmp.eq.s32.totalorder %v2804, 1
    %v2807 = vrot.slane %v2798, 6
    %2808 = vrot.lane.b32.xlu0 %v2807, 96
    %v2809 = vpop.permute.xlu0 %2808
    %v2811 = vsel %vm2805, %v2809, 0.0
    %2812 = vst.msk [vmem:[#allocation3 + $0xe] sm:$0x3] %vm1973, %v2811
    %v2813 = vld [vmem:[#allocation2] sm:$0xff]
    %v2814 = vld [vmem:[#allocation2 + $0x8] sm:$0xff]
    %v2815 = vld [vmem:[#allocation3] sm:$0xff]
    %v2816 = vld [vmem:[#allocation3 + $0x8] sm:$0xff]
    %v2817 = vld [vmem:[%s4] sm:$0xff]
    %v2818 = vld [vmem:[%s4 + $0x8] sm:$0xff]
    %v2819 = vld [vmem:[#allocation9] sm:$0xff]
    %v2820 = vld [vmem:[#allocation9 + $0x8] sm:$0xff]
    %v2821 = vld [vmem:[#allocation9 + $0x10] sm:$0xff]
    %v2822 = vld [vmem:[#allocation9 + $0x18] sm:$0xff]
    %v2824 = vsel %vm285, %v2813, 0
    %v2827 = vsel %vm285, %v2814, 0
    %2829 = vmatprep.subr.mxu0 0.0
    %2830 = vmatpush1.msra.mxu0 0.0
    %2831 = vmatprep.subr.mxu0 0.0
    %2832 = vmatpush1.msra.mxu0 0.0
    %2833 = vmatprep.subr.mxu0 0.0
    %2834 = vmatpush1.msra.mxu0 0.0
    %2835 = vmatprep.subr.mxu0 0.0
    %2836 = vmatpush1.msra.mxu0 0.0
    %2837 = vmatprep.subr.mxu0 0.0
    %2838 = vmatpush1.msra.mxu0 0.0
    %2839 = vmatprep.subr.mxu0 0.0
    %2840 = vmatpush1.msra.mxu0 0.0
    %2841 = vmatprep.subr.mxu0 0.0
    %2842 = vmatpush1.msra.mxu0 0.0
    %2843 = vmatprep.subr.mxu0 0.0
    %2844 = vmatpush1.msra.mxu0 0.0
    %2845 = vmatprep.subr.mxu0 0.0
    %2846 = vmatpush1.msra.mxu0 0.0
    %2847 = vmatprep.subr.mxu0 0.0
    %2848 = vmatpush1.msra.mxu0 0.0
    %2849 = vmatprep.subr.mxu0 0.0
    %2850 = vmatpush1.msra.mxu0 0.0
    %2851 = vmatprep.subr.mxu0 0.0
    %2852 = vmatpush1.msra.mxu0 0.0
    %2853 = vmatprep.subr.mxu0 0.0
    %2854 = vmatpush1.msra.mxu0 %v2822
    %2855 = vmatprep.subr.mxu0 0.0
    %2856 = vmatpush1.msra.mxu0 %v2821
    %2857 = vmatprep.subr.mxu0 0.0
    %2858 = vmatpush1.msra.mxu0 %v2820
    %2859 = vmatprep.subr.mxu0 0.0
    %2860 = vmatpush1.msra.mxu0 %v2819
    %2861 = vmatprep.subr.mxu0 0.0
    %2862 = vmatpush2.msra.mxu0 0.0
    %2863 = vmatprep.subr.mxu0 0.0
    %2864 = vmatpush2.msra.mxu0 0.0
    %2865 = vmatprep.subr.mxu0 0.0
    %2866 = vmatpush2.msra.mxu0 0.0
    %2867 = vmatprep.subr.mxu0 0.0
    %2868 = vmatpush2.msra.mxu0 0.0
    %2869 = vmatprep.subr.mxu0 0.0
    %2870 = vmatpush2.msra.mxu0 0.0
    %2871 = vmatprep.subr.mxu0 0.0
    %2872 = vmatpush2.msra.mxu0 0.0
    %2873 = vmatprep.subr.mxu0 0.0
    %2874 = vmatpush2.msra.mxu0 0.0
    %2875 = vmatprep.subr.mxu0 0.0
    %2876 = vmatpush2.msra.mxu0 0.0
    %2877 = vmatprep.subr.mxu0 0.0
    %2878 = vmatpush2.msra.mxu0 0.0
    %2879 = vmatprep.subr.mxu0 0.0
    %2880 = vmatpush2.msra.mxu0 0.0
    %2881 = vmatprep.subr.mxu0 0.0
    %2882 = vmatpush2.msra.mxu0 0.0
    %2883 = vmatprep.subr.mxu0 0.0
    %2884 = vmatpush2.msra.mxu0 0.0
    %2885 = vmatprep.subr.mxu0 0.0
    %2886 = vmatpush2.msra.mxu0 0.0
    %2887 = vmatprep.subr.mxu0 0.0
    %2888 = vmatpush2.msra.mxu0 0.0
    %2889 = vmatprep.subr.mxu0 0.0
    %2890 = vmatpush2.msra.mxu0 0.0
    %2891 = vmatprep.subr.mxu0 0.0
    %2892 = vmatpush2.msra.mxu0 0.0
    %2893 = vmatprep.mubr.f32.mxu0 0.0
    %2894 = vmatmul.mubr.f32.gmra.mxu0 %v2824
    %v2895 = vpop.f32.mrf.mxu0
    %v2896 = vadd.f32 0.0, %v2895
    %v2897 = vpop.f32.mrf.mxu0
    %2898 = vmatprep.mubr.f32.mxu0 0.0
    %2899 = vmatmul.mubr.f32.gmra.mxu0 %v2827
    %v2900 = vpop.f32.mrf.mxu0
    %v2901 = vadd.f32 0.0, %v2900
    %v2902 = vpop.f32.mrf.mxu0
    %2903 = vdwg.mxu0
    %v2905 = vsel %vm285, %v2815, 0
    %v2908 = vsel %vm285, %v2816, 0
    %v2911 = vsel %vm285, %v2896, 0
    %v2914 = vsel %vm285, %v2901, 0
    %2916 = vmatprep.subr.mxu0 0.0
    %2917 = vmatpush1.xpose.msra.mxu0 0.0
    %2918 = vmatprep.subr.mxu0 0.0
    %2919 = vmatpush1.xpose.msra.mxu0 0.0
    %2920 = vmatprep.subr.mxu0 0.0
    %2921 = vmatpush1.xpose.msra.mxu0 0.0
    %2922 = vmatprep.subr.mxu0 0.0
    %2923 = vmatpush1.xpose.msra.mxu0 0.0
    %2924 = vmatprep.subr.mxu0 0.0
    %2925 = vmatpush1.xpose.msra.mxu0 0.0
    %2926 = vmatprep.subr.mxu0 0.0
    %2927 = vmatpush1.xpose.msra.mxu0 0.0
    %2928 = vmatprep.subr.mxu0 0.0
    %2929 = vmatpush1.xpose.msra.mxu0 0.0
    %2930 = vmatprep.subr.mxu0 0.0
    %2931 = vmatpush1.xpose.msra.mxu0 0.0
    %2932 = vmatprep.subr.mxu0 0.0
    %2933 = vmatpush1.xpose.msra.mxu0 0.0
    %2934 = vmatprep.subr.mxu0 0.0
    %2935 = vmatpush1.xpose.msra.mxu0 0.0
    %2936 = vmatprep.subr.mxu0 0.0
    %2937 = vmatpush1.xpose.msra.mxu0 0.0
    %2938 = vmatprep.subr.mxu0 0.0
    %2939 = vmatpush1.xpose.msra.mxu0 0.0
    %2940 = vmatprep.subr.mxu0 0.0
    %2941 = vmatpush1.xpose.msra.mxu0 0.0
    %2942 = vmatprep.subr.mxu0 0.0
    %2943 = vmatpush1.xpose.msra.mxu0 0.0
    %2944 = vmatprep.subr.mxu0 0.0
    %2945 = vmatpush1.xpose.msra.mxu0 %v2914
    %2946 = vmatprep.subr.mxu0 0.0
    %2947 = vmatpush1.xpose.msra.mxu0 %v2911
    %2948 = vmatprep.subr.mxu0 0.0
    %2949 = vmatpush2.xpose.msra.mxu0 0.0
    %2950 = vmatprep.subr.mxu0 0.0
    %2951 = vmatpush2.xpose.msra.mxu0 0.0
    %2952 = vmatprep.subr.mxu0 0.0
    %2953 = vmatpush2.xpose.msra.mxu0 0.0
    %2954 = vmatprep.subr.mxu0 0.0
    %2955 = vmatpush2.xpose.msra.mxu0 0.0
    %2956 = vmatprep.subr.mxu0 0.0
    %2957 = vmatpush2.xpose.msra.mxu0 0.0
    %2958 = vmatprep.subr.mxu0 0.0
    %2959 = vmatpush2.xpose.msra.mxu0 0.0
    %2960 = vmatprep.subr.mxu0 0.0
    %2961 = vmatpush2.xpose.msra.mxu0 0.0
    %2962 = vmatprep.subr.mxu0 0.0
    %2963 = vmatpush2.xpose.msra.mxu0 0.0
    %2964 = vmatprep.subr.mxu0 0.0
    %2965 = vmatpush2.xpose.msra.mxu0 0.0
    %2966 = vmatprep.subr.mxu0 0.0
    %2967 = vmatpush2.xpose.msra.mxu0 0.0
    %2968 = vmatprep.subr.mxu0 0.0
    %2969 = vmatpush2.xpose.msra.mxu0 0.0
    %2970 = vmatprep.subr.mxu0 0.0
    %2971 = vmatpush2.xpose.msra.mxu0 0.0
    %2972 = vmatprep.subr.mxu0 0.0
    %2973 = vmatpush2.xpose.msra.mxu0 0.0
    %2974 = vmatprep.subr.mxu0 0.0
    %2975 = vmatpush2.xpose.msra.mxu0 0.0
    %2976 = vmatprep.subr.mxu0 0.0
    %2977 = vmatpush2.xpose.msra.mxu0 0.0
    %2978 = vmatprep.subr.mxu0 0.0
    %2979 = vmatpush2.xpose.msra.mxu0 0.0
    %2980 = vmatprep.mubr.f32.mxu0 0.0
    %2981 = vmatmul.mubr.f32.gmra.mxu0 %v2905
    %v2982 = vpop.f32.mrf.mxu0
    %v2983 = vadd.f32 0.0, %v2982
    %v2984 = vpop.f32.mrf.mxu0
    %2985 = vmatprep.mubr.f32.mxu0 0.0
    %2986 = vmatmul.mubr.f32.gmra.mxu0 %v2908
    %v2987 = vpop.f32.mrf.mxu0
    %v2988 = vadd.f32 0.0, %v2987
    %v2989 = vpop.f32.mrf.mxu0
    %2990 = vdwg.mxu0
    %vm2991 = vcmp.eq.f32.partialorder %v2817, 0.0
    %vm2992 = vcmp.eq.f32.partialorder %v2818, 0.0
    %v2993 = vsel %vm2991, %v2983, %v2817
    %v2994 = vsel %vm2992, %v2988, %v2818
    %v2995 = vsel %vm542, %v2993, -inf
    %2996 = vmax.xlane.f32.xlu0 %v2995
    %v2997 = vpop.xlane.xlu0 %2996
    %v2998 = vsel %vm542, %v2994, -inf
    %2999 = vmax.xlane.f32.xlu0 %v2998
    %v3000 = vpop.xlane.xlu0 %2999
    %v3001 = vsub.f32 %v2993, %v2997
    %v3002 = vsub.f32 %v2994, %v3000
    %v3003 = vmul.f32 %v3001, 1.442695
    %v3004 = vpow.pop %v3003
    %v3005 = vmul.f32 %v3002, 1.442695
    %v3006 = vpow.pop %v3005
    %v3007 = vsel %vm542, %v3004, 0.0
    %3008 = vadd.xlane.f32.xlu0 %v3007
    %v3009 = vpop.xlane.xlu0 %3008
    %v3010 = vsel %vm542, %v3006, 0.0
    %3011 = vadd.xlane.f32.xlu0 %v3010
    %v3012 = vpop.xlane.xlu0 %3011
    %v3013 = vrcp.pop %v3009
    %v3014 = vmul.f32 %v3004, %v3013
    %v3015 = vrcp.pop %v3012
    %v3016 = vmul.f32 %v3006, %v3015
    %v3018 = vsel %vm542, %v3014, 0
    %v3021 = vsel %vm542, %v3016, 0
    %3023 = vmatprep.subr.mxu0 0.0
    %3024 = vmatpush1.msra.mxu0 0.0
    %3025 = vmatprep.subr.mxu0 0.0
    %3026 = vmatpush1.msra.mxu0 0.0
    %3027 = vmatprep.subr.mxu0 0.0
    %3028 = vmatpush1.msra.mxu0 0.0
    %3029 = vmatprep.subr.mxu0 0.0
    %3030 = vmatpush1.msra.mxu0 0.0
    %3031 = vmatprep.subr.mxu0 0.0
    %3032 = vmatpush1.msra.mxu0 0.0
    %3033 = vmatprep.subr.mxu0 0.0
    %3034 = vmatpush1.msra.mxu0 0.0
    %3035 = vmatprep.subr.mxu0 0.0
    %3036 = vmatpush1.msra.mxu0 0.0
    %3037 = vmatprep.subr.mxu0 0.0
    %3038 = vmatpush1.msra.mxu0 0.0
    %3039 = vmatprep.subr.mxu0 0.0
    %3040 = vmatpush1.msra.mxu0 0.0
    %3041 = vmatprep.subr.mxu0 0.0
    %3042 = vmatpush1.msra.mxu0 0.0
    %3043 = vmatprep.subr.mxu0 0.0
    %3044 = vmatpush1.msra.mxu0 0.0
    %3045 = vmatprep.subr.mxu0 0.0
    %3046 = vmatpush1.msra.mxu0 0.0
    %3047 = vmatprep.subr.mxu0 0.0
    %3048 = vmatpush1.msra.mxu0 0.0
    %3049 = vmatprep.subr.mxu0 0.0
    %3050 = vmatpush1.msra.mxu0 0.0
    %3051 = vmatprep.subr.mxu0 0.0
    %3052 = vmatpush1.msra.mxu0 %v2814
    %3053 = vmatprep.subr.mxu0 0.0
    %3054 = vmatpush1.msra.mxu0 %v2813
    %3055 = vmatprep.subr.mxu0 0.0
    %3056 = vmatpush2.msra.mxu0 0.0
    %3057 = vmatprep.subr.mxu0 0.0
    %3058 = vmatpush2.msra.mxu0 0.0
    %3059 = vmatprep.subr.mxu0 0.0
    %3060 = vmatpush2.msra.mxu0 0.0
    %3061 = vmatprep.subr.mxu0 0.0
    %3062 = vmatpush2.msra.mxu0 0.0
    %3063 = vmatprep.subr.mxu0 0.0
    %3064 = vmatpush2.msra.mxu0 0.0
    %3065 = vmatprep.subr.mxu0 0.0
    %3066 = vmatpush2.msra.mxu0 0.0
    %3067 = vmatprep.subr.mxu0 0.0
    %3068 = vmatpush2.msra.mxu0 0.0
    %3069 = vmatprep.subr.mxu0 0.0
    %3070 = vmatpush2.msra.mxu0 0.0
    %3071 = vmatprep.subr.mxu0 0.0
    %3072 = vmatpush2.msra.mxu0 0.0
    %3073 = vmatprep.subr.mxu0 0.0
    %3074 = vmatpush2.msra.mxu0 0.0
    %3075 = vmatprep.subr.mxu0 0.0
    %3076 = vmatpush2.msra.mxu0 0.0
    %3077 = vmatprep.subr.mxu0 0.0
    %3078 = vmatpush2.msra.mxu0 0.0
    %3079 = vmatprep.subr.mxu0 0.0
    %3080 = vmatpush2.msra.mxu0 0.0
    %3081 = vmatprep.subr.mxu0 0.0
    %3082 = vmatpush2.msra.mxu0 0.0
    %3083 = vmatprep.subr.mxu0 0.0
    %3084 = vmatpush2.msra.mxu0 0.0
    %3085 = vmatprep.subr.mxu0 0.0
    %3086 = vmatpush2.msra.mxu0 0.0
    %3087 = vmatprep.mubr.f32.mxu0 0.0
    %3088 = vmatmul.mubr.f32.gmra.mxu0 %v3018
    %v3089 = vpop.f32.mrf.mxu0
    %v3090 = vadd.f32 0.0, %v3089
    %v3091 = vpop.f32.mrf.mxu0
    %3092 = vmatprep.mubr.f32.mxu0 0.0
    %3093 = vmatmul.mubr.f32.gmra.mxu0 %v3021
    %v3094 = vpop.f32.mrf.mxu0
    %v3095 = vadd.f32 0.0, %v3094
    %v3096 = vpop.f32.mrf.mxu0
    %3097 = vdwg.mxu0
    %3098 = vrot.lane.b32.xlu0 %v2815, 32
    %v3099 = vpop.permute.xlu0 %3098
    %3100 = vrot.lane.b32.xlu0 %v2816, 32
    %v3101 = vpop.permute.xlu0 %3100
    %v3104 = vsel %vm285, %v3090, %v3099
    %v3105 = vsel %vm285, %v3095, %v3101
    %v3106 = vld [vmem:[%s16] sm:$0xff]
    %v3107 = vld [vmem:[%s16 + $0x8] sm:$0xff]
    %v3108 = vld [vmem:[%s16 + $0x10] sm:$0xff]
    %v3109 = vld [vmem:[%s16 + $0x18] sm:$0xff]
    %v3110 = vld [vmem:[%s16 + $0x20] sm:$0xff]
    %v3111 = vld [vmem:[%s16 + $0x28] sm:$0xff]
    %v3112 = vld [vmem:[%s16 + $0x30] sm:$0xff]
    %v3113 = vld [vmem:[%s16 + $0x38] sm:$0xff]
    %v3114 = vld [vmem:[#allocation11] sm:$0x1]
    %v3116 = vlaneseq
    %v3117 = vshrl.u32 %v3116, 7
    %v3118 = vsub.s32 0, %v3117
    %v3119 = vrot.slane %v3114, %v3118
    %vm3121 = vcmask 523264
    %v3123 = vsel %vm3121, %v3104, 0
    %v3126 = vsel %vm3121, %v3105, 0
    %3128 = vmatprep.subr.mxu0 0.0
    %3129 = vmatpush1.msra.mxu0 0.0
    %3130 = vmatprep.subr.mxu0 0.0
    %3131 = vmatpush1.msra.mxu0 0.0
    %3132 = vmatprep.subr.mxu0 0.0
    %3133 = vmatpush1.msra.mxu0 0.0
    %3134 = vmatprep.subr.mxu0 0.0
    %3135 = vmatpush1.msra.mxu0 0.0
    %3136 = vmatprep.subr.mxu0 0.0
    %3137 = vmatpush1.msra.mxu0 0.0
    %3138 = vmatprep.subr.mxu0 0.0
    %3139 = vmatpush1.msra.mxu0 0.0
    %3140 = vmatprep.subr.mxu0 0.0
    %3141 = vmatpush1.msra.mxu0 0.0
    %3142 = vmatprep.subr.mxu0 0.0
    %3143 = vmatpush1.msra.mxu0 0.0
    %3144 = vmatprep.subr.mxu0 0.0
    %3145 = vmatpush1.msra.mxu0 %v3113
    %3146 = vmatprep.subr.mxu0 0.0
    %3147 = vmatpush1.msra.mxu0 %v3112
    %3148 = vmatprep.subr.mxu0 0.0
    %3149 = vmatpush1.msra.mxu0 %v3111
    %3150 = vmatprep.subr.mxu0 0.0
    %3151 = vmatpush1.msra.mxu0 %v3110
    %3152 = vmatprep.subr.mxu0 0.0
    %3153 = vmatpush1.msra.mxu0 %v3109
    %3154 = vmatprep.subr.mxu0 0.0
    %3155 = vmatpush1.msra.mxu0 %v3108
    %3156 = vmatprep.subr.mxu0 0.0
    %3157 = vmatpush1.msra.mxu0 %v3107
    %3158 = vmatprep.subr.mxu0 0.0
    %3159 = vmatpush1.msra.mxu0 %v3106
    %3160 = vmatprep.subr.mxu0 0.0
    %3161 = vmatpush2.msra.mxu0 0.0
    %3162 = vmatprep.subr.mxu0 0.0
    %3163 = vmatpush2.msra.mxu0 0.0
    %3164 = vmatprep.subr.mxu0 0.0
    %3165 = vmatpush2.msra.mxu0 0.0
    %3166 = vmatprep.subr.mxu0 0.0
    %3167 = vmatpush2.msra.mxu0 0.0
    %3168 = vmatprep.subr.mxu0 0.0
    %3169 = vmatpush2.msra.mxu0 0.0
    %3170 = vmatprep.subr.mxu0 0.0
    %3171 = vmatpush2.msra.mxu0 0.0
    %3172 = vmatprep.subr.mxu0 0.0
    %3173 = vmatpush2.msra.mxu0 0.0
    %3174 = vmatprep.subr.mxu0 0.0
    %3175 = vmatpush2.msra.mxu0 0.0
    %3176 = vmatprep.subr.mxu0 0.0
    %3177 = vmatpush2.msra.mxu0 0.0
    %3178 = vmatprep.subr.mxu0 0.0
    %3179 = vmatpush2.msra.mxu0 0.0
    %3180 = vmatprep.subr.mxu0 0.0
    %3181 = vmatpush2.msra.mxu0 0.0
    %3182 = vmatprep.subr.mxu0 0.0
    %3183 = vmatpush2.msra.mxu0 0.0
    %3184 = vmatprep.subr.mxu0 0.0
    %3185 = vmatpush2.msra.mxu0 0.0
    %3186 = vmatprep.subr.mxu0 0.0
    %3187 = vmatpush2.msra.mxu0 0.0
    %3188 = vmatprep.subr.mxu0 0.0
    %3189 = vmatpush2.msra.mxu0 0.0
    %3190 = vmatprep.subr.mxu0 0.0
    %3191 = vmatpush2.msra.mxu0 0.0
    %3192 = vmatprep.mubr.f32.mxu0 0.0
    %3193 = vmatmul.mubr.f32.gmra.mxu0 %v3123
    %v3194 = vpop.f32.mrf.mxu0
    %v3195 = vadd.f32 %v3119, %v3194
    %v3196 = vpop.f32.mrf.mxu0
    %3197 = vmatprep.mubr.f32.mxu0 0.0
    %3198 = vmatmul.mubr.f32.gmra.mxu0 %v3126
    %v3199 = vpop.f32.mrf.mxu0
    %v3200 = vadd.f32 %v3119, %v3199
    %v3201 = vpop.f32.mrf.mxu0
    %3202 = vdwg.mxu0
    %v3203 = vtanh.pop %v3195
    %v3204 = vtanh.pop %v3200
    %v3205 = vld [vmem:[#allocation12] sm:$0xff]
    %v3206 = vld [vmem:[#allocation12 + $0x8] sm:$0xff]
    %v3207 = vld [vmem:[#allocation12 + $0x10] sm:$0xff]
    %v3208 = vld [vmem:[#allocation12 + $0x18] sm:$0xff]
    %v3209 = vld [vmem:[#allocation14] sm:$0x1]
    %v3211 = vlaneseq
    %v3212 = vshrl.u32 %v3211, 7
    %v3213 = vsub.s32 0, %v3212
    %v3214 = vrot.slane %v3209, %v3213
    %v3217 = vsel %vm285, %v3203, 0
    %v3220 = vsel %vm285, %v3204, 0
    %3222 = vmatprep.subr.mxu0 0.0
    %3223 = vmatpush1.msra.mxu0 0.0
    %3224 = vmatprep.subr.mxu0 0.0
    %3225 = vmatpush1.msra.mxu0 0.0
    %3226 = vmatprep.subr.mxu0 0.0
    %3227 = vmatpush1.msra.mxu0 0.0
    %3228 = vmatprep.subr.mxu0 0.0
    %3229 = vmatpush1.msra.mxu0 0.0
    %3230 = vmatprep.subr.mxu0 0.0
    %3231 = vmatpush1.msra.mxu0 0.0
    %3232 = vmatprep.subr.mxu0 0.0
    %3233 = vmatpush1.msra.mxu0 0.0
    %3234 = vmatprep.subr.mxu0 0.0
    %3235 = vmatpush1.msra.mxu0 0.0
    %3236 = vmatprep.subr.mxu0 0.0
    %3237 = vmatpush1.msra.mxu0 0.0
    %3238 = vmatprep.subr.mxu0 0.0
    %3239 = vmatpush1.msra.mxu0 0.0
    %3240 = vmatprep.subr.mxu0 0.0
    %3241 = vmatpush1.msra.mxu0 0.0
    %3242 = vmatprep.subr.mxu0 0.0
    %3243 = vmatpush1.msra.mxu0 0.0
    %3244 = vmatprep.subr.mxu0 0.0
    %3245 = vmatpush1.msra.mxu0 0.0
    %3246 = vmatprep.subr.mxu0 0.0
    %3247 = vmatpush1.msra.mxu0 %v3208
    %3248 = vmatprep.subr.mxu0 0.0
    %3249 = vmatpush1.msra.mxu0 %v3207
    %3250 = vmatprep.subr.mxu0 0.0
    %3251 = vmatpush1.msra.mxu0 %v3206
    %3252 = vmatprep.subr.mxu0 0.0
    %3253 = vmatpush1.msra.mxu0 %v3205
    %3254 = vmatprep.subr.mxu0 0.0
    %3255 = vmatpush2.msra.mxu0 0.0
    %3256 = vmatprep.subr.mxu0 0.0
    %3257 = vmatpush2.msra.mxu0 0.0
    %3258 = vmatprep.subr.mxu0 0.0
    %3259 = vmatpush2.msra.mxu0 0.0
    %3260 = vmatprep.subr.mxu0 0.0
    %3261 = vmatpush2.msra.mxu0 0.0
    %3262 = vmatprep.subr.mxu0 0.0
    %3263 = vmatpush2.msra.mxu0 0.0
    %3264 = vmatprep.subr.mxu0 0.0
    %3265 = vmatpush2.msra.mxu0 0.0
    %3266 = vmatprep.subr.mxu0 0.0
    %3267 = vmatpush2.msra.mxu0 0.0
    %3268 = vmatprep.subr.mxu0 0.0
    %3269 = vmatpush2.msra.mxu0 0.0
    %3270 = vmatprep.subr.mxu0 0.0
    %3271 = vmatpush2.msra.mxu0 0.0
    %3272 = vmatprep.subr.mxu0 0.0
    %3273 = vmatpush2.msra.mxu0 0.0
    %3274 = vmatprep.subr.mxu0 0.0
    %3275 = vmatpush2.msra.mxu0 0.0
    %3276 = vmatprep.subr.mxu0 0.0
    %3277 = vmatpush2.msra.mxu0 0.0
    %3278 = vmatprep.subr.mxu0 0.0
    %3279 = vmatpush2.msra.mxu0 0.0
    %3280 = vmatprep.subr.mxu0 0.0
    %3281 = vmatpush2.msra.mxu0 0.0
    %3282 = vmatprep.subr.mxu0 0.0
    %3283 = vmatpush2.msra.mxu0 0.0
    %3284 = vmatprep.subr.mxu0 0.0
    %3285 = vmatpush2.msra.mxu0 0.0
    %3286 = vmatprep.mubr.f32.mxu0 0.0
    %3287 = vmatmul.mubr.f32.gmra.mxu0 %v3217
    %v3288 = vpop.f32.mrf.mxu0
    %v3289 = vadd.f32 %v3214, %v3288
    %v3290 = vpop.f32.mrf.mxu0
    %3291 = vmatprep.mubr.f32.mxu0 0.0
    %3292 = vmatmul.mubr.f32.gmra.mxu0 %v3220
    %v3293 = vpop.f32.mrf.mxu0
    %v3294 = vadd.f32 %v3214, %v3293
    %v3295 = vpop.f32.mrf.mxu0
    %3296 = vdwg.mxu0
    %v3297 = vsel %vm285, %v3289, -inf
    %3298 = vmax.xlane.f32.xlu0 %v3297
    %v3299 = vpop.xlane.xlu0 %3298
    %v3300 = vsel %vm285, %v3294, -inf
    %3301 = vmax.xlane.f32.xlu0 %v3300
    %v3302 = vpop.xlane.xlu0 %3301
    %v3303 = vsub.f32 %v3289, %v3299
    %v3304 = vsub.f32 %v3294, %v3302
    %v3305 = vmul.f32 %v3303, 1.442695
    %v3306 = vpow.pop %v3305
    %v3307 = vmul.f32 %v3304, 1.442695
    %v3308 = vpow.pop %v3307
    %v3309 = vsel %vm285, %v3306, 0.0
    %3310 = vadd.xlane.f32.xlu0 %v3309
    %v3311 = vpop.xlane.xlu0 %3310
    %v3312 = vsel %vm285, %v3308, 0.0
    %3313 = vadd.xlane.f32.xlu0 %v3312
    %v3314 = vpop.xlane.xlu0 %3313
    %v3315 = vlog2.pop %v3311
    %v3316 = vmul.f32 %v3315, 0.6931472
    %v3317 = vlog2.pop %v3314
    %v3318 = vmul.f32 %v3317, 0.6931472
    %v3319 = vadd.f32 %v3299, %v3316
    %v3320 = vadd.f32 %v3302, %v3318
    %v3321 = vsub.f32 %v3289, %v3319
    %v3322 = vsub.f32 %v3294, %v3320
    %3323 = vst.msk [vmem:[%s20] sm:$0xff] %vm285, %v3321
    %3324 = vst.msk [vmem:[%s20 + $0x8] sm:$0xff] %vm285, %v3322
    %3325 = vst.msk [vmem:[%s21] sm:$0xff] %vm542, %v3014
    %3326 = vst.msk [vmem:[%s21 + $0x8] sm:$0xff] %vm542, %v3016
    // Predicated region
    $region110: #{seq2seq_forward.1} parent=1 // pred_check
      _
    $region111: #{seq2seq_forward.1} parent=1 // pred_check_branch
      %3328 = sbr.rel (0) target = $region113
    $region112: #{seq2seq_forward.1} parent=1 // pred_region
      _
    $region113: #{seq2seq_forward.1} parent=1 // pred_fallthru
      _
    // Predicated region
    $region114: #{seq2seq_forward.1} parent=1 // pred_check
      _
    $region115: #{seq2seq_forward.1} parent=1 // pred_check_branch
      %3330 = sbr.rel (0) target = $region117
    $region116: #{seq2seq_forward.1} parent=1 // pred_region
      _
    $region117: #{seq2seq_forward.1} parent=1 // pred_fallthru
      _
    // Predicated region
    $region118: #{seq2seq_forward.1} parent=1 // pred_check
      _
    $region119: #{seq2seq_forward.1} parent=1 // pred_check_branch
      %3332 = sbr.rel (0) target = $region121
    $region120: #{seq2seq_forward.1} parent=1 // pred_region
      _
    $region121: #{seq2seq_forward.1} parent=1 // pred_fallthru
      _
    // Predicated region
    $region122: #{seq2seq_forward.1} parent=1 // pred_check
      _
    $region123: #{seq2seq_forward.1} parent=1 // pred_check_branch
      %3334 = sbr.rel (0) target = $region125
    $region124: #{seq2seq_forward.1} parent=1 // pred_region
      _
    $region125: #{seq2seq_forward.1} parent=1 // pred_fallthru
      _
    %3335 = vsyncpa [#allocation5], 1
    %3336 = vsyncpa [#allocation7], 1
    %3337 = vsyncpa [#allocation10], 1
    %3338 = vsyncpa [#allocation13], 1

</llo_original>
